<compile_context>
chip_gen: v7x
topology: tpu7x:2x2x1
jax: 0.10.0
libtpu: 0.0.40
codegen_flags: <defaults>
</compile_context>

<pallas_src>
import functools

import jax
import jax.numpy as jnp
from jax import lax
from jax.experimental import pallas as pl
from jax.experimental.pallas import tpu as pltpu

NUM_HEADS = 2


def plane_embed_kernel(idx_ref, node_ref, w1_ref, wout_ref, bias_ref, o_ref,
                       *, num_strokes, num_heads):
    FS = idx_ref.shape[0]                # F * S
    N, E = node_ref.shape
    Hd, O = wout_ref.shape
    S = num_strokes
    F = FS // S
    D = E // num_heads
    inv_s = 1.0 / float(S)

    # ---- fused gather: strokes[f*S+s] = node_embed[face_indices[f, s]] ------
    # one-hot (FS, N) @ (N, E) on the MXU -- vectorized, no dynamic indexing.
    idx = idx_ref[...]                                            # (FS, 1) i32
    iota = lax.broadcasted_iota(jnp.int32, (FS, N), 1)
    onehot = (iota == idx).astype(jnp.float32)                    # (FS, N)
    strokes = jnp.dot(onehot, node_ref[...],
                      preferred_element_type=jnp.float32)         # (FS, E)

    acc = jnp.zeros((F, Hd), jnp.float32)
    for h in range(num_heads):                                    # static loop
        lo = h * D
        # per-head projections as 2-D matmuls over the collapsed (F*S) batch;
        # head columns sliced from the weight ref (static views).  The
        # attention scale is pre-folded into Wq/bq; bk cancels under softmax
        # and bv is pre-folded into the hidden bias, so k/v need no bias add.
        qh = (jnp.dot(strokes, w1_ref[:, lo:lo + D],
                      preferred_element_type=jnp.float32)
              + bias_ref[:, lo:lo + D])                           # (FS, D)
        kh = jnp.dot(strokes, w1_ref[:, E + lo:E + lo + D],
                     preferred_element_type=jnp.float32)          # (FS, D)
        vh = jnp.dot(strokes, w1_ref[:, 2 * E + lo:2 * E + lo + D],
                     preferred_element_type=jnp.float32)          # (FS, D)

        # restore per-face structure (leading-axis split only; layout-free)
        qh = qh.reshape(F, S, D)
        kh = kh.reshape(F, S, D)
        vh = vh.reshape(F, S, D)

        scores = jnp.einsum("fsd,ftd->fst", qh, kh,
                            preferred_element_type=jnp.float32)   # (F, S, S)
        scores = scores - jnp.max(scores, axis=-1, keepdims=True)
        p = jnp.exp(scores)
        p = p * pl.reciprocal(jnp.sum(p, axis=-1, keepdims=True), approx=False)
        ctx = jnp.einsum("fst,ftd->fsd", p, vh,
                         preferred_element_type=jnp.float32)      # (F, S, D)

        # sum-pool over strokes (1/S applied once after the loop), then push
        # the pooled head through its pre-folded (Wo @ Wfc) row-slice.
        pooled = jnp.sum(ctx, axis=1)                             # (F, D)
        acc = acc + jnp.dot(pooled, w1_ref[lo:lo + D, 3 * E:3 * E + Hd],
                            preferred_element_type=jnp.float32)   # (F, Hd)

    # fused hidden bias = bv@Wo@Wfc + bo@Wfc + bfc ; ReLU ; fc_output
    h1 = jnp.maximum(acc * inv_s + bias_ref[:, E:E + Hd], 0.0)
    out = (jnp.dot(h1, wout_ref[...], preferred_element_type=jnp.float32)
           + bias_ref[:, E + Hd:E + Hd + O])
    o_ref[...] = out.astype(o_ref.dtype)


def init_params(key, stroke_embedding_dim=16, hidden_dim=32, output_dim=32):
    """Raw parameters, stored as (in_features, out_features) == PyTorch W.T."""
    E, Hd, O = stroke_embedding_dim, hidden_dim, output_dim
    ks = jax.random.split(key, 12)
    s = 0.1

    def w(k, shape):
        return jax.random.normal(k, shape, jnp.float32) * s

    return {
        "wq": w(ks[0], (E, E)), "bq": w(ks[1], (1, E)),
        "wk": w(ks[2], (E, E)), "bk": w(ks[3], (1, E)),
        "wv": w(ks[4], (E, E)), "bv": w(ks[5], (1, E)),
        "wo": w(ks[6], (E, E)), "bo": w(ks[7], (1, E)),
        "wfc": w(ks[8], (E, Hd)), "bfc": w(ks[9], (1, Hd)),
        "wout": w(ks[10], (Hd, O)), "bout": w(ks[11], (1, O)),
    }


def pack_params(params, num_heads=NUM_HEADS):
    """One-time host-side packing/folding (see header comment)."""
    E = params["wq"].shape[0]
    D = E // num_heads
    scale = 1.0 / jnp.sqrt(jnp.float32(D))

    w_comb = params["wo"] @ params["wfc"]                     # (E, Hd)
    # bk cancels under softmax; bv rides through (softmax rows sum to 1) and
    # folds with bo@Wfc + bfc into a single post-pool hidden bias.
    b_hidden = (params["bv"] @ w_comb
                + params["bo"] @ params["wfc"]
                + params["bfc"])                              # (1, Hd)

    w1 = jnp.concatenate(
        [params["wq"] * scale, params["wk"], params["wv"], w_comb], axis=1)
    bias = jnp.concatenate(
        [params["bq"] * scale, b_hidden, params["bout"]], axis=1)
    return {"w1": w1, "wout": params["wout"], "bias": bias}


@jax.jit
def plane_embedding_forward(face_indices, node_embed, packed):
    """face_indices: (F, S) int; node_embed: (1, N, E) -> (1, F, output_dim)."""
    node = node_embed[0]                                      # (N, E)
    F, S = face_indices.shape
    Hd, O = packed["wout"].shape
    idx = face_indices.reshape(F * S, 1).astype(jnp.int32)

    kernel = functools.partial(plane_embed_kernel,
                               num_strokes=S, num_heads=NUM_HEADS)
    vmem = pl.BlockSpec(memory_space=pltpu.MemorySpace.VMEM)
    out = pl.pallas_call(
        kernel,
        out_shape=jax.ShapeDtypeStruct((F, O), jnp.float32),
        in_specs=[vmem] * 5,
        out_specs=vmem,
    )(idx, node, packed["w1"], packed["wout"], packed["bias"])
    return out[None]                                          # (1, F, O)


def reference_forward(face_indices, node_embed, params):
    """Pure-JAX reference reproducing the PyTorch semantics (for verification)."""
    strokes = jnp.take(node_embed[0], face_indices, axis=0)   # (F, S, E)
    E = strokes.shape[-1]
    D = E // NUM_HEADS
    scale = 1.0 / jnp.sqrt(jnp.float32(D))

    q = strokes @ params["wq"] + params["bq"]
    k = strokes @ params["wk"] + params["bk"]
    v = strokes @ params["wv"] + params["bv"]

    outs = []
    for h in range(NUM_HEADS):
        qh = q[..., h * D:(h + 1) * D] * scale
        kh = k[..., h * D:(h + 1) * D]
        vh = v[..., h * D:(h + 1) * D]
        p = jax.nn.softmax(jnp.einsum("fsd,ftd->fst", qh, kh), axis=-1)
        outs.append(jnp.einsum("fst,ftd->fsd", p, vh))
    attn = jnp.concatenate(outs, axis=-1) @ params["wo"] + params["bo"]
    pooled = attn.mean(axis=1)
    h1 = jnp.maximum(pooled @ params["wfc"] + params["bfc"], 0.0)
    out = h1 @ params["wout"] + params["bout"]
    return out[None]


if __name__ == "__main__":
    E, Hd, O = 16, 32, 32          # stroke_embedding_dim, hidden_dim, output_dim
    N = 20                         # nodes in node_embed
    F, S = 6, 8                    # faces, strokes per face

    key = jax.random.PRNGKey(0)
    k_param, k_embed, k_idx = jax.random.split(key, 3)

    params = init_params(k_param, E, Hd, O)
    packed = pack_params(params)
    node_embed = jax.random.normal(k_embed, (1, N, E), jnp.float32)
    face_indices = jax.random.randint(k_idx, (F, S), 0, N, dtype=jnp.int32)

    out = plane_embedding_forward(face_indices, node_embed, packed)
    out = jax.block_until_ready(out)

    ref = reference_forward(face_indices, node_embed, params)
    assert out.shape == (1, F, O), out.shape
    # Folding Wo@Wfc / bv / bo / bfc and pooling before the out-projection is
    # exact math but reassociates fp32; tolerance reflects that (~1e-7 diffs).
    assert jnp.allclose(out, ref, rtol=1e-4, atol=2e-5), "mismatch vs JAX reference"

    print("KERNEL_OK")
</pallas_src>

<mosaic_0001>
module attributes {stable_mosaic.version = 11 : i64} {
  func.func @plane_embed_kernel(%arg0: memref<48x1xi32, #tpu.memory_space<vmem>>, %arg1: memref<20x16xf32, #tpu.memory_space<vmem>>, %arg2: memref<16x80xf32, #tpu.memory_space<vmem>>, %arg3: memref<32x32xf32, #tpu.memory_space<vmem>>, %arg4: memref<1x80xf32, #tpu.memory_space<vmem>>, %arg5: memref<6x32xf32, #tpu.memory_space<vmem>>) attributes {dimension_semantics = [], scalar_prefetch = 0 : i64, scratch_operands = 0 : i64, tpu.core_type = #tpu.core_type<tc>} {
    %c0 = arith.constant 0 : index
    %c0_0 = arith.constant 0 : index
    %0 = vector.load %arg0[%c0, %c0_0] : memref<48x1xi32, #tpu.memory_space<vmem>>, vector<48x1xi32>
    %1 = tpu.iota {dimensions = array<i32: 1>} : vector<48x20xi32>
    %2 = vector.broadcast %0 : vector<48x1xi32> to vector<48x20xi32>
    %3 = arith.cmpi eq, %1, %2 : vector<48x20xi32>
    %4 = arith.extui %3 : vector<48x20xi1> to vector<48x20xi32>
    %5 = arith.sitofp %4 : vector<48x20xi32> to vector<48x20xf32>
    %c0_1 = arith.constant 0 : index
    %c0_2 = arith.constant 0 : index
    %6 = vector.load %arg1[%c0_1, %c0_2] : memref<20x16xf32, #tpu.memory_space<vmem>>, vector<20x16xf32>
    %cst = arith.constant dense<0.000000e+00> : vector<48x16xf32>
    %7 = tpu.matmul %5, %6, %cst {dimension_numbers = #tpu.dot_dimension_numbers<[1], [0], [0], [1], [0, 0, 1, 1], [], []>} : vector<48x20xf32>, vector<20x16xf32>, vector<48x16xf32> -> vector<48x16xf32>
    %cst_3 = arith.constant 0.000000e+00 : f32
    %8 = vector.broadcast %cst_3 : f32 to vector<6x32xf32>
    %c0_4 = arith.constant 0 : index
    %c0_5 = arith.constant 0 : index
    %9 = vector.load %arg2[%c0_4, %c0_5] : memref<16x80xf32, #tpu.memory_space<vmem>>, vector<16x8xf32>
    %cst_6 = arith.constant dense<0.000000e+00> : vector<48x8xf32>
    %10 = tpu.matmul %7, %9, %cst_6 {dimension_numbers = #tpu.dot_dimension_numbers<[1], [0], [0], [1], [0, 0, 1, 1], [], []>} : vector<48x16xf32>, vector<16x8xf32>, vector<48x8xf32> -> vector<48x8xf32>
    %c0_7 = arith.constant 0 : index
    %c0_8 = arith.constant 0 : index
    %11 = vector.load %arg4[%c0_7, %c0_8] : memref<1x80xf32, #tpu.memory_space<vmem>>, vector<1x8xf32>
    %12 = vector.broadcast %11 : vector<1x8xf32> to vector<48x8xf32>
    %13 = arith.addf %10, %12 : vector<48x8xf32>
    %c0_9 = arith.constant 0 : index
    %c16 = arith.constant 16 : index
    %14 = vector.load %arg2[%c0_9, %c16] : memref<16x80xf32, #tpu.memory_space<vmem>>, vector<16x8xf32>
    %cst_10 = arith.constant dense<0.000000e+00> : vector<48x8xf32>
    %15 = tpu.matmul %7, %14, %cst_10 {dimension_numbers = #tpu.dot_dimension_numbers<[1], [0], [0], [1], [0, 0, 1, 1], [], []>} : vector<48x16xf32>, vector<16x8xf32>, vector<48x8xf32> -> vector<48x8xf32>
    %c0_11 = arith.constant 0 : index
    %c32 = arith.constant 32 : index
    %16 = vector.load %arg2[%c0_11, %c32] : memref<16x80xf32, #tpu.memory_space<vmem>>, vector<16x8xf32>
    %cst_12 = arith.constant dense<0.000000e+00> : vector<48x8xf32>
    %17 = tpu.matmul %7, %16, %cst_12 {dimension_numbers = #tpu.dot_dimension_numbers<[1], [0], [0], [1], [0, 0, 1, 1], [], []>} : vector<48x16xf32>, vector<16x8xf32>, vector<48x8xf32> -> vector<48x8xf32>
    %18 = vector.shape_cast %13 : vector<48x8xf32> to vector<6x8x8xf32>
    %19 = vector.shape_cast %15 : vector<48x8xf32> to vector<6x8x8xf32>
    %20 = vector.shape_cast %17 : vector<48x8xf32> to vector<6x8x8xf32>
    "tpu.trace_start"() <{level = 10 : i32, message = "fsd,ftd->fst"}> : () -> ()
    %cst_13 = arith.constant dense<0.000000e+00> : vector<6x8x8xf32>
    %21 = tpu.matmul %18, %19, %cst_13 {dimension_numbers = #tpu.dot_dimension_numbers<[2], [2], [1], [1], [0, 0, 0, 1, 1, 1], [0], [0]>} : vector<6x8x8xf32>, vector<6x8x8xf32>, vector<6x8x8xf32> -> vector<6x8x8xf32>
    "tpu.trace_stop"() : () -> ()
    %cst_14 = arith.constant dense<0xFF800000> : vector<6x8xf32>
    %22 = vector.multi_reduction <maximumf>, %21, %cst_14 [2] : vector<6x8x8xf32> to vector<6x8xf32>
    %23 = vector.shape_cast %22 : vector<6x8xf32> to vector<6x8x1xf32>
    %24 = vector.broadcast %23 : vector<6x8x1xf32> to vector<6x8x8xf32>
    %25 = arith.subf %21, %24 : vector<6x8x8xf32>
    %26 = math.exp %25 : vector<6x8x8xf32>
    %cst_15 = arith.constant dense<0.000000e+00> : vector<6x8xf32>
    %27 = vector.multi_reduction <add>, %26, %cst_15 [2] : vector<6x8x8xf32> to vector<6x8xf32>
    %28 = vector.shape_cast %27 : vector<6x8xf32> to vector<6x8x1xf32>
    %29 = tpu.reciprocal %28 : vector<6x8x1xf32> -> vector<6x8x1xf32>
    %30 = vector.broadcast %29 : vector<6x8x1xf32> to vector<6x8x8xf32>
    %31 = arith.mulf %26, %30 : vector<6x8x8xf32>
    "tpu.trace_start"() <{level = 10 : i32, message = "fst,ftd->fsd"}> : () -> ()
    %cst_16 = arith.constant dense<0.000000e+00> : vector<6x8x8xf32>
    %32 = tpu.matmul %31, %20, %cst_16 {dimension_numbers = #tpu.dot_dimension_numbers<[2], [1], [1], [2], [0, 0, 0, 1, 1, 2], [0], [0]>} : vector<6x8x8xf32>, vector<6x8x8xf32>, vector<6x8x8xf32> -> vector<6x8x8xf32>
    "tpu.trace_stop"() : () -> ()
    %cst_17 = arith.constant dense<0.000000e+00> : vector<6x8xf32>
    %33 = vector.multi_reduction <add>, %32, %cst_17 [1] : vector<6x8x8xf32> to vector<6x8xf32>
    %c0_18 = arith.constant 0 : index
    %c48 = arith.constant 48 : index
    %34 = vector.load %arg2[%c0_18, %c48] : memref<16x80xf32, #tpu.memory_space<vmem>>, vector<8x32xf32>
    %cst_19 = arith.constant dense<0.000000e+00> : vector<6x32xf32>
    %35 = tpu.matmul %33, %34, %cst_19 {dimension_numbers = #tpu.dot_dimension_numbers<[1], [0], [0], [1], [0, 0, 1, 1], [], []>} : vector<6x8xf32>, vector<8x32xf32>, vector<6x32xf32> -> vector<6x32xf32>
    %36 = arith.addf %8, %35 : vector<6x32xf32>
    %c0_20 = arith.constant 0 : index
    %c8 = arith.constant 8 : index
    %37 = vector.load %arg2[%c0_20, %c8] : memref<16x80xf32, #tpu.memory_space<vmem>>, vector<16x8xf32>
    %cst_21 = arith.constant dense<0.000000e+00> : vector<48x8xf32>
    %38 = tpu.matmul %7, %37, %cst_21 {dimension_numbers = #tpu.dot_dimension_numbers<[1], [0], [0], [1], [0, 0, 1, 1], [], []>} : vector<48x16xf32>, vector<16x8xf32>, vector<48x8xf32> -> vector<48x8xf32>
    %c0_22 = arith.constant 0 : index
    %c8_23 = arith.constant 8 : index
    %39 = vector.load %arg4[%c0_22, %c8_23] : memref<1x80xf32, #tpu.memory_space<vmem>>, vector<1x8xf32>
    %40 = vector.broadcast %39 : vector<1x8xf32> to vector<48x8xf32>
    %41 = arith.addf %38, %40 : vector<48x8xf32>
    %c0_24 = arith.constant 0 : index
    %c24 = arith.constant 24 : index
    %42 = vector.load %arg2[%c0_24, %c24] : memref<16x80xf32, #tpu.memory_space<vmem>>, vector<16x8xf32>
    %cst_25 = arith.constant dense<0.000000e+00> : vector<48x8xf32>
    %43 = tpu.matmul %7, %42, %cst_25 {dimension_numbers = #tpu.dot_dimension_numbers<[1], [0], [0], [1], [0, 0, 1, 1], [], []>} : vector<48x16xf32>, vector<16x8xf32>, vector<48x8xf32> -> vector<48x8xf32>
    %c0_26 = arith.constant 0 : index
    %c40 = arith.constant 40 : index
    %44 = vector.load %arg2[%c0_26, %c40] : memref<16x80xf32, #tpu.memory_space<vmem>>, vector<16x8xf32>
    %cst_27 = arith.constant dense<0.000000e+00> : vector<48x8xf32>
    %45 = tpu.matmul %7, %44, %cst_27 {dimension_numbers = #tpu.dot_dimension_numbers<[1], [0], [0], [1], [0, 0, 1, 1], [], []>} : vector<48x16xf32>, vector<16x8xf32>, vector<48x8xf32> -> vector<48x8xf32>
    %46 = vector.shape_cast %41 : vector<48x8xf32> to vector<6x8x8xf32>
    %47 = vector.shape_cast %43 : vector<48x8xf32> to vector<6x8x8xf32>
    %48 = vector.shape_cast %45 : vector<48x8xf32> to vector<6x8x8xf32>
    "tpu.trace_start"() <{level = 10 : i32, message = "fsd,ftd->fst"}> : () -> ()
    %cst_28 = arith.constant dense<0.000000e+00> : vector<6x8x8xf32>
    %49 = tpu.matmul %46, %47, %cst_28 {dimension_numbers = #tpu.dot_dimension_numbers<[2], [2], [1], [1], [0, 0, 0, 1, 1, 1], [0], [0]>} : vector<6x8x8xf32>, vector<6x8x8xf32>, vector<6x8x8xf32> -> vector<6x8x8xf32>
    "tpu.trace_stop"() : () -> ()
    %cst_29 = arith.constant dense<0xFF800000> : vector<6x8xf32>
    %50 = vector.multi_reduction <maximumf>, %49, %cst_29 [2] : vector<6x8x8xf32> to vector<6x8xf32>
    %51 = vector.shape_cast %50 : vector<6x8xf32> to vector<6x8x1xf32>
    %52 = vector.broadcast %51 : vector<6x8x1xf32> to vector<6x8x8xf32>
    %53 = arith.subf %49, %52 : vector<6x8x8xf32>
    %54 = math.exp %53 : vector<6x8x8xf32>
    %cst_30 = arith.constant dense<0.000000e+00> : vector<6x8xf32>
    %55 = vector.multi_reduction <add>, %54, %cst_30 [2] : vector<6x8x8xf32> to vector<6x8xf32>
    %56 = vector.shape_cast %55 : vector<6x8xf32> to vector<6x8x1xf32>
    %57 = tpu.reciprocal %56 : vector<6x8x1xf32> -> vector<6x8x1xf32>
    %58 = vector.broadcast %57 : vector<6x8x1xf32> to vector<6x8x8xf32>
    %59 = arith.mulf %54, %58 : vector<6x8x8xf32>
    "tpu.trace_start"() <{level = 10 : i32, message = "fst,ftd->fsd"}> : () -> ()
    %cst_31 = arith.constant dense<0.000000e+00> : vector<6x8x8xf32>
    %60 = tpu.matmul %59, %48, %cst_31 {dimension_numbers = #tpu.dot_dimension_numbers<[2], [1], [1], [2], [0, 0, 0, 1, 1, 2], [0], [0]>} : vector<6x8x8xf32>, vector<6x8x8xf32>, vector<6x8x8xf32> -> vector<6x8x8xf32>
    "tpu.trace_stop"() : () -> ()
    %cst_32 = arith.constant dense<0.000000e+00> : vector<6x8xf32>
    %61 = vector.multi_reduction <add>, %60, %cst_32 [1] : vector<6x8x8xf32> to vector<6x8xf32>
    %c8_33 = arith.constant 8 : index
    %c48_34 = arith.constant 48 : index
    %62 = vector.load %arg2[%c8_33, %c48_34] : memref<16x80xf32, #tpu.memory_space<vmem>>, vector<8x32xf32>
    %cst_35 = arith.constant dense<0.000000e+00> : vector<6x32xf32>
    %63 = tpu.matmul %61, %62, %cst_35 {dimension_numbers = #tpu.dot_dimension_numbers<[1], [0], [0], [1], [0, 0, 1, 1], [], []>} : vector<6x8xf32>, vector<8x32xf32>, vector<6x32xf32> -> vector<6x32xf32>
    %64 = arith.addf %36, %63 : vector<6x32xf32>
    %cst_36 = arith.constant 1.250000e-01 : f32
    %65 = vector.broadcast %cst_36 : f32 to vector<6x32xf32>
    %66 = arith.mulf %64, %65 : vector<6x32xf32>
    %c0_37 = arith.constant 0 : index
    %c16_38 = arith.constant 16 : index
    %67 = vector.load %arg4[%c0_37, %c16_38] : memref<1x80xf32, #tpu.memory_space<vmem>>, vector<1x32xf32>
    %68 = vector.broadcast %67 : vector<1x32xf32> to vector<6x32xf32>
    %69 = arith.addf %66, %68 : vector<6x32xf32>
    %cst_39 = arith.constant 0.000000e+00 : f32
    %70 = vector.broadcast %cst_39 : f32 to vector<6x32xf32>
    %71 = arith.maximumf %69, %70 : vector<6x32xf32>
    %c0_40 = arith.constant 0 : index
    %c0_41 = arith.constant 0 : index
    %72 = vector.load %arg3[%c0_40, %c0_41] : memref<32x32xf32, #tpu.memory_space<vmem>>, vector<32x32xf32>
    %cst_42 = arith.constant dense<0.000000e+00> : vector<6x32xf32>
    %73 = tpu.matmul %71, %72, %cst_42 {dimension_numbers = #tpu.dot_dimension_numbers<[1], [0], [0], [1], [0, 0, 1, 1], [], []>} : vector<6x32xf32>, vector<32x32xf32>, vector<6x32xf32> -> vector<6x32xf32>
    %c0_43 = arith.constant 0 : index
    %c48_44 = arith.constant 48 : index
    %74 = vector.load %arg4[%c0_43, %c48_44] : memref<1x80xf32, #tpu.memory_space<vmem>>, vector<1x32xf32>
    %75 = vector.broadcast %74 : vector<1x32xf32> to vector<6x32xf32>
    %76 = arith.addf %73, %75 : vector<6x32xf32>
    %c0_45 = arith.constant 0 : index
    %c0_46 = arith.constant 0 : index
    %77 = vector.load %arg5[%c0_45, %c0_46] : memref<6x32xf32, #tpu.memory_space<vmem>>, vector<6x32xf32>
    tpu.vector_store %arg5[%c0_45, %c0_46], %76 {strides = array<i32>} : memref<6x32xf32, #tpu.memory_space<vmem>>, vector<6x32xf32>,
    return
  }
}

</mosaic_0001>

<llo_original>
// kernel: plane_embedding_forward.1
$region0: #{plane_embedding_forward.1}
  #allocation0 [shape = 'u32[]', space=smem, size = 0x4, offset = 0x4, fixed_abs, tag = 'smem constant byte address 0x4 - core index']
  #allocation1 [shape = 'u32[144,128]{1,0:T(1,128)}', space=vmem, size = 0x12000, scoped, tag = 'internal scratch']
  %s0 = inlined_call_operand.vmem [shape: s32[48,1], index: 0, kind: input, shape index: {}]
  %s1 = inlined_call_operand.vmem [shape: f32[20,16], index: 1, kind: input, shape index: {}]
  %s2 = inlined_call_operand.vmem [shape: f32[16,80], index: 2, kind: input, shape index: {}]
  %s3 = inlined_call_operand.vmem [shape: f32[32,32], index: 3, kind: input, shape index: {}]
  %s4 = inlined_call_operand.vmem [shape: f32[1,80], index: 4, kind: input, shape index: {}]
  %s5 = inlined_call_operand.vmem [shape: f32[6,32], index: 5, kind: output, shape index: {}]
  %s6 = sld [smem:[#allocation0]]
  $region30: #{plane_embedding_forward.1} parent=0
    _
  %s8 = ssub.s32 1, %s6
  %s9 = scalar_select 0, %s8, %s6
  // Predicated region
  $region2: #{plane_embedding_forward.1} parent=0 // pred_check
    _
  $region3: #{plane_embedding_forward.1} parent=0 // pred_check_branch
    %11 = sbr.rel (0) target = $region5
  $region4: #{plane_embedding_forward.1} parent=0 // pred_region
    _
  $region5: #{plane_embedding_forward.1} parent=0 // pred_fallthru
    _
  // Predicated region
  $region6: #{plane_embedding_forward.1} parent=0 // pred_check
    _
  $region7: #{plane_embedding_forward.1} parent=0 // pred_check_branch
    %13 = sbr.rel (0) target = $region9
  $region8: #{plane_embedding_forward.1} parent=0 // pred_region
    _
  $region9: #{plane_embedding_forward.1} parent=0 // pred_fallthru
    _
  // Predicated region
  $region10: #{plane_embedding_forward.1} parent=0 // pred_check
    _
  $region11: #{plane_embedding_forward.1} parent=0 // pred_check_branch
    %15 = sbr.rel (0) target = $region13
  $region12: #{plane_embedding_forward.1} parent=0 // pred_region
    _
  $region13: #{plane_embedding_forward.1} parent=0 // pred_fallthru
    _
  // Predicated region
  $region14: #{plane_embedding_forward.1} parent=0 // pred_check
    _
  $region15: #{plane_embedding_forward.1} parent=0 // pred_check_branch
    %17 = sbr.rel (0) target = $region17
  $region16: #{plane_embedding_forward.1} parent=0 // pred_region
    _
  $region17: #{plane_embedding_forward.1} parent=0 // pred_fallthru
    _
  // Predicated region
  $region18: #{plane_embedding_forward.1} parent=0 // pred_check
    _
  $region19: #{plane_embedding_forward.1} parent=0 // pred_check_branch
    %19 = sbr.rel (0) target = $region21
  $region20: #{plane_embedding_forward.1} parent=0 // pred_region
    _
  $region21: #{plane_embedding_forward.1} parent=0 // pred_fallthru
    _
  %v20 = vld [vmem:[%s0] sm:$0xff]
  %v21 = vld [vmem:[%s0 + $0x8] sm:$0xff]
  %v22 = vld [vmem:[%s0 + $0x10] sm:$0xff]
  %v23 = vld [vmem:[%s0 + $0x18] sm:$0xff]
  %v24 = vld [vmem:[%s0 + $0x20] sm:$0xff]
  %v25 = vld [vmem:[%s0 + $0x28] sm:$0xff]
  %v26 = vlaneseq
  %v27 = vand.u32 %v26, 127
  %28 = vset.pattern.permute.xlu0 0
  %29 = vperm.xlu0 %28, %v20
  %v30 = vpop.permute.xlu0 %29
  %31 = vset.pattern.permute.xlu0 0
  %32 = vperm.xlu0 %31, %v21
  %v33 = vpop.permute.xlu0 %32
  %34 = vset.pattern.permute.xlu0 0
  %35 = vperm.xlu0 %34, %v22
  %v36 = vpop.permute.xlu0 %35
  %37 = vset.pattern.permute.xlu0 0
  %38 = vperm.xlu0 %37, %v23
  %v39 = vpop.permute.xlu0 %38
  %40 = vset.pattern.permute.xlu0 0
  %41 = vperm.xlu0 %40, %v24
  %v42 = vpop.permute.xlu0 %41
  %43 = vset.pattern.permute.xlu0 0
  %44 = vperm.xlu0 %43, %v25
  %v45 = vpop.permute.xlu0 %44
  %vm46 = vcmp.eq.s32.totalorder %v27, %v30
  %vm47 = vcmp.eq.s32.totalorder %v27, %v33
  %vm48 = vcmp.eq.s32.totalorder %v27, %v36
  %vm49 = vcmp.eq.s32.totalorder %v27, %v39
  %vm50 = vcmp.eq.s32.totalorder %v27, %v42
  %vm51 = vcmp.eq.s32.totalorder %v27, %v45
  %v52 = vsel %vm46, 1, 0
  %v53 = vsel %vm47, 1, 0
  %v54 = vsel %vm48, 1, 0
  %v55 = vsel %vm49, 1, 0
  %v56 = vsel %vm50, 1, 0
  %v57 = vsel %vm51, 1, 0
  %v58 = vcvt.s32.f32 %v52
  %v59 = vcvt.s32.f32 %v53
  %v60 = vcvt.s32.f32 %v54
  %v61 = vcvt.s32.f32 %v55
  %v62 = vcvt.s32.f32 %v56
  %v63 = vcvt.s32.f32 %v57
  %v64 = vld [vmem:[%s1] sm:$0xff]
  %v65 = vld [vmem:[%s1 + $0x8] sm:$0xff]
  %v66 = vld [vmem:[%s1 + $0x10] sm:$0xf]
  %vm67 = vcmask 162816
  %v69 = vsel %vm67, %v58, 0
  %v72 = vsel %vm67, %v59, 0
  %v75 = vsel %vm67, %v60, 0
  %v78 = vsel %vm67, %v61, 0
  %v81 = vsel %vm67, %v62, 0
  %v84 = vsel %vm67, %v63, 0
  %vm86 = vcmask 1043456
  %v88 = vsel %vm86, %v66, 0
  %90 = vmatprep.subr.mxu0 0.0
  %91 = vmatpush1.msra.mxu0 %v64
  %92 = vmatprep.subr.mxu0 0.0
  %93 = vmatpush1.msra.mxu0 %v65
  %94 = vmatprep.subr.mxu0 0.0
  %95 = vmatpush1.msra.mxu0 %v88
  %96 = vmatprep.subr.mxu0 0.0
  %97 = vmatpush1.msra.mxu0 0.0
  %98 = vmatprep.subr.mxu0 0.0
  %99 = vmatpush1.msra.mxu0 0.0
  %100 = vmatprep.subr.mxu0 0.0
  %101 = vmatpush1.msra.mxu0 0.0
  %102 = vmatprep.subr.mxu0 0.0
  %103 = vmatpush1.msra.mxu0 0.0
  %104 = vmatprep.subr.mxu0 0.0
  %105 = vmatpush1.msra.mxu0 0.0
  %106 = vmatprep.subr.mxu0 0.0
  %107 = vmatpush1.msra.mxu0 0.0
  %108 = vmatprep.subr.mxu0 0.0
  %109 = vmatpush1.msra.mxu0 0.0
  %110 = vmatprep.subr.mxu0 0.0
  %111 = vmatpush1.msra.mxu0 0.0
  %112 = vmatprep.subr.mxu0 0.0
  %113 = vmatpush1.msra.mxu0 0.0
  %114 = vmatprep.subr.mxu0 0.0
  %115 = vmatpush1.msra.mxu0 0.0
  %116 = vmatprep.subr.mxu0 0.0
  %117 = vmatpush1.msra.mxu0 0.0
  %118 = vmatprep.subr.mxu0 0.0
  %119 = vmatpush1.msra.mxu0 0.0
  %120 = vmatprep.subr.mxu0 0.0
  %121 = vmatpush1.msra.mxu0 0.0
  %122 = vmatprep.subr.mxu0 0.0
  %123 = vmatpush1.msra.mxu0 0.0
  %124 = vmatprep.subr.mxu0 0.0
  %125 = vmatpush1.msra.mxu0 0.0
  %126 = vmatprep.subr.mxu0 0.0
  %127 = vmatpush1.msra.mxu0 0.0
  %128 = vmatprep.subr.mxu0 0.0
  %129 = vmatpush1.msra.mxu0 0.0
  %130 = vmatprep.subr.mxu0 0.0
  %131 = vmatpush1.msra.mxu0 0.0
  %132 = vmatprep.subr.mxu0 0.0
  %133 = vmatpush1.msra.mxu0 0.0
  %134 = vmatprep.subr.mxu0 0.0
  %135 = vmatpush1.msra.mxu0 0.0
  %136 = vmatprep.subr.mxu0 0.0
  %137 = vmatpush1.msra.mxu0 0.0
  %138 = vmatprep.subr.mxu0 0.0
  %139 = vmatpush1.msra.mxu0 0.0
  %140 = vmatprep.subr.mxu0 0.0
  %141 = vmatpush1.msra.mxu0 0.0
  %142 = vmatprep.subr.mxu0 0.0
  %143 = vmatpush1.msra.mxu0 0.0
  %144 = vmatprep.subr.mxu0 0.0
  %145 = vmatpush1.msra.mxu0 0.0
  %146 = vmatprep.subr.mxu0 0.0
  %147 = vmatpush1.msra.mxu0 0.0
  %148 = vmatprep.subr.mxu0 0.0
  %149 = vmatpush1.msra.mxu0 0.0
  %150 = vmatprep.subr.mxu0 0.0
  %151 = vmatpush1.msra.mxu0 0.0
  %152 = vmatprep.subr.mxu0 0.0
  %153 = vmatpush1.msra.mxu0 0.0
  %154 = vmatprep.mubr.f32.mxu0 0.0
  %155 = vmatmul.mubr.f32.gmra.mrb[0].mxu0 %v69
  %v156 = vpop.f32.mrb[0].mxu0
  %v157 = vadd.f32 0.0, %v156
  %v158 = vpop.f32.mrb[0].mxu0
  %159 = vmatprep.mubr.f32.mxu0 0.0
  %160 = vmatmul.mubr.f32.gmra.mrb[0].mxu0 %v72
  %v161 = vpop.f32.mrb[0].mxu0
  %v162 = vadd.f32 0.0, %v161
  %v163 = vpop.f32.mrb[0].mxu0
  %164 = vmatprep.mubr.f32.mxu0 0.0
  %165 = vmatmul.mubr.f32.gmra.mrb[0].mxu0 %v75
  %v166 = vpop.f32.mrb[0].mxu0
  %v167 = vadd.f32 0.0, %v166
  %v168 = vpop.f32.mrb[0].mxu0
  %169 = vmatprep.mubr.f32.mxu0 0.0
  %170 = vmatmul.mubr.f32.gmra.mrb[0].mxu0 %v78
  %v171 = vpop.f32.mrb[0].mxu0
  %v172 = vadd.f32 0.0, %v171
  %v173 = vpop.f32.mrb[0].mxu0
  %174 = vmatprep.mubr.f32.mxu0 0.0
  %175 = vmatmul.mubr.f32.gmra.mrb[0].mxu0 %v81
  %v176 = vpop.f32.mrb[0].mxu0
  %v177 = vadd.f32 0.0, %v176
  %v178 = vpop.f32.mrb[0].mxu0
  %179 = vmatprep.mubr.f32.mxu0 0.0
  %180 = vmatmul.mubr.f32.gmra.mrb[0].mxu0 %v84
  %v181 = vpop.f32.mrb[0].mxu0
  %v182 = vadd.f32 0.0, %v181
  %v183 = vpop.f32.mrb[0].mxu0
  %184 = vdwg.mxu0
  %v185 = vld [vmem:[%s2] sm:$0xff]
  %v186 = vld [vmem:[%s2 + $0x8] sm:$0xff]
  %v187 = vld [vmem:[%s4] sm:$0x1]
  %v189 = vlaneseq
  %v190 = vshrl.u32 %v189, 7
  %v191 = vsub.s32 0, %v190
  %v192 = vrot.slane %v187, %v191
  %vm194 = vcmask 130048
  %v196 = vsel %vm194, %v157, 0
  %v199 = vsel %vm194, %v162, 0
  %v202 = vsel %vm194, %v167, 0
  %v205 = vsel %vm194, %v172, 0
  %v208 = vsel %vm194, %v177, 0
  %v211 = vsel %vm194, %v182, 0
  %213 = vmatprep.subr.mxu0 0.0
  %214 = vmatpush1.msra.mxu0 %v185
  %215 = vmatprep.subr.mxu0 0.0
  %216 = vmatpush1.msra.mxu0 %v186
  %217 = vmatprep.subr.mxu0 0.0
  %218 = vmatpush1.msra.mxu0 0.0
  %219 = vmatprep.subr.mxu0 0.0
  %220 = vmatpush1.msra.mxu0 0.0
  %221 = vmatprep.subr.mxu0 0.0
  %222 = vmatpush1.msra.mxu0 0.0
  %223 = vmatprep.subr.mxu0 0.0
  %224 = vmatpush1.msra.mxu0 0.0
  %225 = vmatprep.subr.mxu0 0.0
  %226 = vmatpush1.msra.mxu0 0.0
  %227 = vmatprep.subr.mxu0 0.0
  %228 = vmatpush1.msra.mxu0 0.0
  %229 = vmatprep.subr.mxu0 0.0
  %230 = vmatpush1.msra.mxu0 0.0
  %231 = vmatprep.subr.mxu0 0.0
  %232 = vmatpush1.msra.mxu0 0.0
  %233 = vmatprep.subr.mxu0 0.0
  %234 = vmatpush1.msra.mxu0 0.0
  %235 = vmatprep.subr.mxu0 0.0
  %236 = vmatpush1.msra.mxu0 0.0
  %237 = vmatprep.subr.mxu0 0.0
  %238 = vmatpush1.msra.mxu0 0.0
  %239 = vmatprep.subr.mxu0 0.0
  %240 = vmatpush1.msra.mxu0 0.0
  %241 = vmatprep.subr.mxu0 0.0
  %242 = vmatpush1.msra.mxu0 0.0
  %243 = vmatprep.subr.mxu0 0.0
  %244 = vmatpush1.msra.mxu0 0.0
  %245 = vmatprep.subr.mxu0 0.0
  %246 = vmatpush1.msra.mxu0 0.0
  %247 = vmatprep.subr.mxu0 0.0
  %248 = vmatpush1.msra.mxu0 0.0
  %249 = vmatprep.subr.mxu0 0.0
  %250 = vmatpush1.msra.mxu0 0.0
  %251 = vmatprep.subr.mxu0 0.0
  %252 = vmatpush1.msra.mxu0 0.0
  %253 = vmatprep.subr.mxu0 0.0
  %254 = vmatpush1.msra.mxu0 0.0
  %255 = vmatprep.subr.mxu0 0.0
  %256 = vmatpush1.msra.mxu0 0.0
  %257 = vmatprep.subr.mxu0 0.0
  %258 = vmatpush1.msra.mxu0 0.0
  %259 = vmatprep.subr.mxu0 0.0
  %260 = vmatpush1.msra.mxu0 0.0
  %261 = vmatprep.subr.mxu0 0.0
  %262 = vmatpush1.msra.mxu0 0.0
  %263 = vmatprep.subr.mxu0 0.0
  %264 = vmatpush1.msra.mxu0 0.0
  %265 = vmatprep.subr.mxu0 0.0
  %266 = vmatpush1.msra.mxu0 0.0
  %267 = vmatprep.subr.mxu0 0.0
  %268 = vmatpush1.msra.mxu0 0.0
  %269 = vmatprep.subr.mxu0 0.0
  %270 = vmatpush1.msra.mxu0 0.0
  %271 = vmatprep.subr.mxu0 0.0
  %272 = vmatpush1.msra.mxu0 0.0
  %273 = vmatprep.subr.mxu0 0.0
  %274 = vmatpush1.msra.mxu0 0.0
  %275 = vmatprep.subr.mxu0 0.0
  %276 = vmatpush1.msra.mxu0 0.0
  %277 = vmatprep.mubr.f32.mxu0 0.0
  %278 = vmatmul.mubr.f32.gmra.mrb[0].mxu0 %v196
  %v279 = vpop.f32.mrb[0].mxu0
  %v280 = vadd.f32 %v192, %v279
  %v281 = vpop.f32.mrb[0].mxu0
  %282 = vmatprep.mubr.f32.mxu0 0.0
  %283 = vmatmul.mubr.f32.gmra.mrb[0].mxu0 %v199
  %v284 = vpop.f32.mrb[0].mxu0
  %v285 = vadd.f32 %v192, %v284
  %v286 = vpop.f32.mrb[0].mxu0
  %287 = vmatprep.mubr.f32.mxu0 0.0
  %288 = vmatmul.mubr.f32.gmra.mrb[0].mxu0 %v202
  %v289 = vpop.f32.mrb[0].mxu0
  %v290 = vadd.f32 %v192, %v289
  %v291 = vpop.f32.mrb[0].mxu0
  %292 = vmatprep.mubr.f32.mxu0 0.0
  %293 = vmatmul.mubr.f32.gmra.mrb[0].mxu0 %v205
  %v294 = vpop.f32.mrb[0].mxu0
  %v295 = vadd.f32 %v192, %v294
  %v296 = vpop.f32.mrb[0].mxu0
  %297 = vmatprep.mubr.f32.mxu0 0.0
  %298 = vmatmul.mubr.f32.gmra.mrb[0].mxu0 %v208
  %v299 = vpop.f32.mrb[0].mxu0
  %v300 = vadd.f32 %v192, %v299
  %v301 = vpop.f32.mrb[0].mxu0
  %302 = vmatprep.mubr.f32.mxu0 0.0
  %303 = vmatmul.mubr.f32.gmra.mrb[0].mxu0 %v211
  %v304 = vpop.f32.mrb[0].mxu0
  %v305 = vadd.f32 %v192, %v304
  %v306 = vpop.f32.mrb[0].mxu0
  %307 = vdwg.mxu0
  %310 = vrot.lane.b32.xlu0 %v185, 112
  %v311 = vpop.permute.xlu0 %310
  %312 = vrot.lane.b32.xlu0 %v186, 112
  %v313 = vpop.permute.xlu0 %312
  %316 = vmatprep.subr.mxu0 0.0
  %317 = vmatpush1.msra.mxu0 %v311
  %318 = vmatprep.subr.mxu0 0.0
  %319 = vmatpush1.msra.mxu0 %v313
  %320 = vmatprep.subr.mxu0 0.0
  %321 = vmatpush1.msra.mxu0 0.0
  %322 = vmatprep.subr.mxu0 0.0
  %323 = vmatpush1.msra.mxu0 0.0
  %324 = vmatprep.subr.mxu0 0.0
  %325 = vmatpush1.msra.mxu0 0.0
  %326 = vmatprep.subr.mxu0 0.0
  %327 = vmatpush1.msra.mxu0 0.0
  %328 = vmatprep.subr.mxu0 0.0
  %329 = vmatpush1.msra.mxu0 0.0
  %330 = vmatprep.subr.mxu0 0.0
  %331 = vmatpush1.msra.mxu0 0.0
  %332 = vmatprep.subr.mxu0 0.0
  %333 = vmatpush1.msra.mxu0 0.0
  %334 = vmatprep.subr.mxu0 0.0
  %335 = vmatpush1.msra.mxu0 0.0
  %336 = vmatprep.subr.mxu0 0.0
  %337 = vmatpush1.msra.mxu0 0.0
  %338 = vmatprep.subr.mxu0 0.0
  %339 = vmatpush1.msra.mxu0 0.0
  %340 = vmatprep.subr.mxu0 0.0
  %341 = vmatpush1.msra.mxu0 0.0
  %342 = vmatprep.subr.mxu0 0.0
  %343 = vmatpush1.msra.mxu0 0.0
  %344 = vmatprep.subr.mxu0 0.0
  %345 = vmatpush1.msra.mxu0 0.0
  %346 = vmatprep.subr.mxu0 0.0
  %347 = vmatpush1.msra.mxu0 0.0
  %348 = vmatprep.subr.mxu0 0.0
  %349 = vmatpush1.msra.mxu0 0.0
  %350 = vmatprep.subr.mxu0 0.0
  %351 = vmatpush1.msra.mxu0 0.0
  %352 = vmatprep.subr.mxu0 0.0
  %353 = vmatpush1.msra.mxu0 0.0
  %354 = vmatprep.subr.mxu0 0.0
  %355 = vmatpush1.msra.mxu0 0.0
  %356 = vmatprep.subr.mxu0 0.0
  %357 = vmatpush1.msra.mxu0 0.0
  %358 = vmatprep.subr.mxu0 0.0
  %359 = vmatpush1.msra.mxu0 0.0
  %360 = vmatprep.subr.mxu0 0.0
  %361 = vmatpush1.msra.mxu0 0.0
  %362 = vmatprep.subr.mxu0 0.0
  %363 = vmatpush1.msra.mxu0 0.0
  %364 = vmatprep.subr.mxu0 0.0
  %365 = vmatpush1.msra.mxu0 0.0
  %366 = vmatprep.subr.mxu0 0.0
  %367 = vmatpush1.msra.mxu0 0.0
  %368 = vmatprep.subr.mxu0 0.0
  %369 = vmatpush1.msra.mxu0 0.0
  %370 = vmatprep.subr.mxu0 0.0
  %371 = vmatpush1.msra.mxu0 0.0
  %372 = vmatprep.subr.mxu0 0.0
  %373 = vmatpush1.msra.mxu0 0.0
  %374 = vmatprep.subr.mxu0 0.0
  %375 = vmatpush1.msra.mxu0 0.0
  %376 = vmatprep.subr.mxu0 0.0
  %377 = vmatpush1.msra.mxu0 0.0
  %378 = vmatprep.subr.mxu0 0.0
  %379 = vmatpush1.msra.mxu0 0.0
  %380 = vmatprep.mubr.f32.mxu0 0.0
  %381 = vmatmul.mubr.f32.gmra.mrb[0].mxu0 %v196
  %v382 = vpop.f32.mrb[0].mxu0
  %v383 = vadd.f32 0.0, %v382
  %v384 = vpop.f32.mrb[0].mxu0
  %385 = vmatprep.mubr.f32.mxu0 0.0
  %386 = vmatmul.mubr.f32.gmra.mrb[0].mxu0 %v199
  %v387 = vpop.f32.mrb[0].mxu0
  %v388 = vadd.f32 0.0, %v387
  %v389 = vpop.f32.mrb[0].mxu0
  %390 = vmatprep.mubr.f32.mxu0 0.0
  %391 = vmatmul.mubr.f32.gmra.mrb[0].mxu0 %v202
  %v392 = vpop.f32.mrb[0].mxu0
  %v393 = vadd.f32 0.0, %v392
  %v394 = vpop.f32.mrb[0].mxu0
  %395 = vmatprep.mubr.f32.mxu0 0.0
  %396 = vmatmul.mubr.f32.gmra.mrb[0].mxu0 %v205
  %v397 = vpop.f32.mrb[0].mxu0
  %v398 = vadd.f32 0.0, %v397
  %v399 = vpop.f32.mrb[0].mxu0
  %400 = vmatprep.mubr.f32.mxu0 0.0
  %401 = vmatmul.mubr.f32.gmra.mrb[0].mxu0 %v208
  %v402 = vpop.f32.mrb[0].mxu0
  %v403 = vadd.f32 0.0, %v402
  %v404 = vpop.f32.mrb[0].mxu0
  %405 = vmatprep.mubr.f32.mxu0 0.0
  %406 = vmatmul.mubr.f32.gmra.mrb[0].mxu0 %v211
  %v407 = vpop.f32.mrb[0].mxu0
  %v408 = vadd.f32 0.0, %v407
  %v409 = vpop.f32.mrb[0].mxu0
  %410 = vdwg.mxu0
  %411 = vrot.lane.b32.xlu0 %v185, 96
  %v412 = vpop.permute.xlu0 %411
  %413 = vrot.lane.b32.xlu0 %v186, 96
  %v414 = vpop.permute.xlu0 %413
  %417 = vmatprep.subr.mxu0 0.0
  %418 = vmatpush1.msra.mxu0 %v412
  %419 = vmatprep.subr.mxu0 0.0
  %420 = vmatpush1.msra.mxu0 %v414
  %421 = vmatprep.subr.mxu0 0.0
  %422 = vmatpush1.msra.mxu0 0.0
  %423 = vmatprep.subr.mxu0 0.0
  %424 = vmatpush1.msra.mxu0 0.0
  %425 = vmatprep.subr.mxu0 0.0
  %426 = vmatpush1.msra.mxu0 0.0
  %427 = vmatprep.subr.mxu0 0.0
  %428 = vmatpush1.msra.mxu0 0.0
  %429 = vmatprep.subr.mxu0 0.0
  %430 = vmatpush1.msra.mxu0 0.0
  %431 = vmatprep.subr.mxu0 0.0
  %432 = vmatpush1.msra.mxu0 0.0
  %433 = vmatprep.subr.mxu0 0.0
  %434 = vmatpush1.msra.mxu0 0.0
  %435 = vmatprep.subr.mxu0 0.0
  %436 = vmatpush1.msra.mxu0 0.0
  %437 = vmatprep.subr.mxu0 0.0
  %438 = vmatpush1.msra.mxu0 0.0
  %439 = vmatprep.subr.mxu0 0.0
  %440 = vmatpush1.msra.mxu0 0.0
  %441 = vmatprep.subr.mxu0 0.0
  %442 = vmatpush1.msra.mxu0 0.0
  %443 = vmatprep.subr.mxu0 0.0
  %444 = vmatpush1.msra.mxu0 0.0
  %445 = vmatprep.subr.mxu0 0.0
  %446 = vmatpush1.msra.mxu0 0.0
  %447 = vmatprep.subr.mxu0 0.0
  %448 = vmatpush1.msra.mxu0 0.0
  %449 = vmatprep.subr.mxu0 0.0
  %450 = vmatpush1.msra.mxu0 0.0
  %451 = vmatprep.subr.mxu0 0.0
  %452 = vmatpush1.msra.mxu0 0.0
  %453 = vmatprep.subr.mxu0 0.0
  %454 = vmatpush1.msra.mxu0 0.0
  %455 = vmatprep.subr.mxu0 0.0
  %456 = vmatpush1.msra.mxu0 0.0
  %457 = vmatprep.subr.mxu0 0.0
  %458 = vmatpush1.msra.mxu0 0.0
  %459 = vmatprep.subr.mxu0 0.0
  %460 = vmatpush1.msra.mxu0 0.0
  %461 = vmatprep.subr.mxu0 0.0
  %462 = vmatpush1.msra.mxu0 0.0
  %463 = vmatprep.subr.mxu0 0.0
  %464 = vmatpush1.msra.mxu0 0.0
  %465 = vmatprep.subr.mxu0 0.0
  %466 = vmatpush1.msra.mxu0 0.0
  %467 = vmatprep.subr.mxu0 0.0
  %468 = vmatpush1.msra.mxu0 0.0
  %469 = vmatprep.subr.mxu0 0.0
  %470 = vmatpush1.msra.mxu0 0.0
  %471 = vmatprep.subr.mxu0 0.0
  %472 = vmatpush1.msra.mxu0 0.0
  %473 = vmatprep.subr.mxu0 0.0
  %474 = vmatpush1.msra.mxu0 0.0
  %475 = vmatprep.subr.mxu0 0.0
  %476 = vmatpush1.msra.mxu0 0.0
  %477 = vmatprep.subr.mxu0 0.0
  %478 = vmatpush1.msra.mxu0 0.0
  %479 = vmatprep.subr.mxu0 0.0
  %480 = vmatpush1.msra.mxu0 0.0
  %481 = vmatprep.mubr.f32.mxu0 0.0
  %482 = vmatmul.mubr.f32.gmra.mrb[0].mxu0 %v196
  %v483 = vpop.f32.mrb[0].mxu0
  %v484 = vadd.f32 0.0, %v483
  %v485 = vpop.f32.mrb[0].mxu0
  %486 = vmatprep.mubr.f32.mxu0 0.0
  %487 = vmatmul.mubr.f32.gmra.mrb[0].mxu0 %v199
  %v488 = vpop.f32.mrb[0].mxu0
  %v489 = vadd.f32 0.0, %v488
  %v490 = vpop.f32.mrb[0].mxu0
  %491 = vmatprep.mubr.f32.mxu0 0.0
  %492 = vmatmul.mubr.f32.gmra.mrb[0].mxu0 %v202
  %v493 = vpop.f32.mrb[0].mxu0
  %v494 = vadd.f32 0.0, %v493
  %v495 = vpop.f32.mrb[0].mxu0
  %496 = vmatprep.mubr.f32.mxu0 0.0
  %497 = vmatmul.mubr.f32.gmra.mrb[0].mxu0 %v205
  %v498 = vpop.f32.mrb[0].mxu0
  %v499 = vadd.f32 0.0, %v498
  %v500 = vpop.f32.mrb[0].mxu0
  %501 = vmatprep.mubr.f32.mxu0 0.0
  %502 = vmatmul.mubr.f32.gmra.mrb[0].mxu0 %v208
  %v503 = vpop.f32.mrb[0].mxu0
  %v504 = vadd.f32 0.0, %v503
  %v505 = vpop.f32.mrb[0].mxu0
  %506 = vmatprep.mubr.f32.mxu0 0.0
  %507 = vmatmul.mubr.f32.gmra.mrb[0].mxu0 %v211
  %v508 = vpop.f32.mrb[0].mxu0
  %v509 = vadd.f32 0.0, %v508
  %v510 = vpop.f32.mrb[0].mxu0
  %511 = vdwg.mxu0
  %vm512 = vcmask 64512
  %v514 = vsel %vm512, %v280, 0
  %v517 = vsel %vm512, %v383, 0
  %519 = vmatprep.subr.mxu0 0.0
  %520 = vmatpush1.xpose.msra.mxu0 %v517
  %521 = vmatprep.subr.mxu0 0.0
  %522 = vmatpush1.xpose.msra.mxu0 0.0
  %523 = vmatprep.subr.mxu0 0.0
  %524 = vmatpush1.xpose.msra.mxu0 0.0
  %525 = vmatprep.subr.mxu0 0.0
  %526 = vmatpush1.xpose.msra.mxu0 0.0
  %527 = vmatprep.subr.mxu0 0.0
  %528 = vmatpush1.xpose.msra.mxu0 0.0
  %529 = vmatprep.subr.mxu0 0.0
  %530 = vmatpush1.xpose.msra.mxu0 0.0
  %531 = vmatprep.subr.mxu0 0.0
  %532 = vmatpush1.xpose.msra.mxu0 0.0
  %533 = vmatprep.subr.mxu0 0.0
  %534 = vmatpush1.xpose.msra.mxu0 0.0
  %535 = vmatprep.subr.mxu0 0.0
  %536 = vmatpush1.xpose.msra.mxu0 0.0
  %537 = vmatprep.subr.mxu0 0.0
  %538 = vmatpush1.xpose.msra.mxu0 0.0
  %539 = vmatprep.subr.mxu0 0.0
  %540 = vmatpush1.xpose.msra.mxu0 0.0
  %541 = vmatprep.subr.mxu0 0.0
  %542 = vmatpush1.xpose.msra.mxu0 0.0
  %543 = vmatprep.subr.mxu0 0.0
  %544 = vmatpush1.xpose.msra.mxu0 0.0
  %545 = vmatprep.subr.mxu0 0.0
  %546 = vmatpush1.xpose.msra.mxu0 0.0
  %547 = vmatprep.subr.mxu0 0.0
  %548 = vmatpush1.xpose.msra.mxu0 0.0
  %549 = vmatprep.subr.mxu0 0.0
  %550 = vmatpush1.xpose.msra.mxu0 0.0
  %551 = vmatprep.subr.mxu0 0.0
  %552 = vmatpush1.xpose.msra.mxu0 0.0
  %553 = vmatprep.subr.mxu0 0.0
  %554 = vmatpush1.xpose.msra.mxu0 0.0
  %555 = vmatprep.subr.mxu0 0.0
  %556 = vmatpush1.xpose.msra.mxu0 0.0
  %557 = vmatprep.subr.mxu0 0.0
  %558 = vmatpush1.xpose.msra.mxu0 0.0
  %559 = vmatprep.subr.mxu0 0.0
  %560 = vmatpush1.xpose.msra.mxu0 0.0
  %561 = vmatprep.subr.mxu0 0.0
  %562 = vmatpush1.xpose.msra.mxu0 0.0
  %563 = vmatprep.subr.mxu0 0.0
  %564 = vmatpush1.xpose.msra.mxu0 0.0
  %565 = vmatprep.subr.mxu0 0.0
  %566 = vmatpush1.xpose.msra.mxu0 0.0
  %567 = vmatprep.subr.mxu0 0.0
  %568 = vmatpush1.xpose.msra.mxu0 0.0
  %569 = vmatprep.subr.mxu0 0.0
  %570 = vmatpush1.xpose.msra.mxu0 0.0
  %571 = vmatprep.subr.mxu0 0.0
  %572 = vmatpush1.xpose.msra.mxu0 0.0
  %573 = vmatprep.subr.mxu0 0.0
  %574 = vmatpush1.xpose.msra.mxu0 0.0
  %575 = vmatprep.subr.mxu0 0.0
  %576 = vmatpush1.xpose.msra.mxu0 0.0
  %577 = vmatprep.subr.mxu0 0.0
  %578 = vmatpush1.xpose.msra.mxu0 0.0
  %579 = vmatprep.subr.mxu0 0.0
  %580 = vmatpush1.xpose.msra.mxu0 0.0
  %581 = vmatprep.subr.mxu0 0.0
  %582 = vmatpush1.xpose.msra.mxu0 0.0
  %583 = vmatprep.mubr.f32.mxu0 0.0
  %584 = vmatmul.mubr.f32.gmra.mrb[0].mxu0 %v514
  %v585 = vpop.f32.mrb[0].mxu0
  %v586 = vadd.f32 0.0, %v585
  %v587 = vpop.f32.mrb[0].mxu0
  %588 = vdwg.mxu0
  %v590 = vsel %vm512, %v285, 0
  %v593 = vsel %vm512, %v388, 0
  %595 = vmatprep.subr.mxu0 0.0
  %596 = vmatpush1.xpose.msra.mxu0 %v593
  %597 = vmatprep.subr.mxu0 0.0
  %598 = vmatpush1.xpose.msra.mxu0 0.0
  %599 = vmatprep.subr.mxu0 0.0
  %600 = vmatpush1.xpose.msra.mxu0 0.0
  %601 = vmatprep.subr.mxu0 0.0
  %602 = vmatpush1.xpose.msra.mxu0 0.0
  %603 = vmatprep.subr.mxu0 0.0
  %604 = vmatpush1.xpose.msra.mxu0 0.0
  %605 = vmatprep.subr.mxu0 0.0
  %606 = vmatpush1.xpose.msra.mxu0 0.0
  %607 = vmatprep.subr.mxu0 0.0
  %608 = vmatpush1.xpose.msra.mxu0 0.0
  %609 = vmatprep.subr.mxu0 0.0
  %610 = vmatpush1.xpose.msra.mxu0 0.0
  %611 = vmatprep.subr.mxu0 0.0
  %612 = vmatpush1.xpose.msra.mxu0 0.0
  %613 = vmatprep.subr.mxu0 0.0
  %614 = vmatpush1.xpose.msra.mxu0 0.0
  %615 = vmatprep.subr.mxu0 0.0
  %616 = vmatpush1.xpose.msra.mxu0 0.0
  %617 = vmatprep.subr.mxu0 0.0
  %618 = vmatpush1.xpose.msra.mxu0 0.0
  %619 = vmatprep.subr.mxu0 0.0
  %620 = vmatpush1.xpose.msra.mxu0 0.0
  %621 = vmatprep.subr.mxu0 0.0
  %622 = vmatpush1.xpose.msra.mxu0 0.0
  %623 = vmatprep.subr.mxu0 0.0
  %624 = vmatpush1.xpose.msra.mxu0 0.0
  %625 = vmatprep.subr.mxu0 0.0
  %626 = vmatpush1.xpose.msra.mxu0 0.0
  %627 = vmatprep.subr.mxu0 0.0
  %628 = vmatpush1.xpose.msra.mxu0 0.0
  %629 = vmatprep.subr.mxu0 0.0
  %630 = vmatpush1.xpose.msra.mxu0 0.0
  %631 = vmatprep.subr.mxu0 0.0
  %632 = vmatpush1.xpose.msra.mxu0 0.0
  %633 = vmatprep.subr.mxu0 0.0
  %634 = vmatpush1.xpose.msra.mxu0 0.0
  %635 = vmatprep.subr.mxu0 0.0
  %636 = vmatpush1.xpose.msra.mxu0 0.0
  %637 = vmatprep.subr.mxu0 0.0
  %638 = vmatpush1.xpose.msra.mxu0 0.0
  %639 = vmatprep.subr.mxu0 0.0
  %640 = vmatpush1.xpose.msra.mxu0 0.0
  %641 = vmatprep.subr.mxu0 0.0
  %642 = vmatpush1.xpose.msra.mxu0 0.0
  %643 = vmatprep.subr.mxu0 0.0
  %644 = vmatpush1.xpose.msra.mxu0 0.0
  %645 = vmatprep.subr.mxu0 0.0
  %646 = vmatpush1.xpose.msra.mxu0 0.0
  %647 = vmatprep.subr.mxu0 0.0
  %648 = vmatpush1.xpose.msra.mxu0 0.0
  %649 = vmatprep.subr.mxu0 0.0
  %650 = vmatpush1.xpose.msra.mxu0 0.0
  %651 = vmatprep.subr.mxu0 0.0
  %652 = vmatpush1.xpose.msra.mxu0 0.0
  %653 = vmatprep.subr.mxu0 0.0
  %654 = vmatpush1.xpose.msra.mxu0 0.0
  %655 = vmatprep.subr.mxu0 0.0
  %656 = vmatpush1.xpose.msra.mxu0 0.0
  %657 = vmatprep.subr.mxu0 0.0
  %658 = vmatpush1.xpose.msra.mxu0 0.0
  %659 = vmatprep.mubr.f32.mxu0 0.0
  %660 = vmatmul.mubr.f32.gmra.mrb[0].mxu0 %v590
  %v661 = vpop.f32.mrb[0].mxu0
  %v662 = vadd.f32 0.0, %v661
  %v663 = vpop.f32.mrb[0].mxu0
  %664 = vdwg.mxu0
  %v666 = vsel %vm512, %v290, 0
  %v669 = vsel %vm512, %v393, 0
  %671 = vmatprep.subr.mxu0 0.0
  %672 = vmatpush1.xpose.msra.mxu0 %v669
  %673 = vmatprep.subr.mxu0 0.0
  %674 = vmatpush1.xpose.msra.mxu0 0.0
  %675 = vmatprep.subr.mxu0 0.0
  %676 = vmatpush1.xpose.msra.mxu0 0.0
  %677 = vmatprep.subr.mxu0 0.0
  %678 = vmatpush1.xpose.msra.mxu0 0.0
  %679 = vmatprep.subr.mxu0 0.0
  %680 = vmatpush1.xpose.msra.mxu0 0.0
  %681 = vmatprep.subr.mxu0 0.0
  %682 = vmatpush1.xpose.msra.mxu0 0.0
  %683 = vmatprep.subr.mxu0 0.0
  %684 = vmatpush1.xpose.msra.mxu0 0.0
  %685 = vmatprep.subr.mxu0 0.0
  %686 = vmatpush1.xpose.msra.mxu0 0.0
  %687 = vmatprep.subr.mxu0 0.0
  %688 = vmatpush1.xpose.msra.mxu0 0.0
  %689 = vmatprep.subr.mxu0 0.0
  %690 = vmatpush1.xpose.msra.mxu0 0.0
  %691 = vmatprep.subr.mxu0 0.0
  %692 = vmatpush1.xpose.msra.mxu0 0.0
  %693 = vmatprep.subr.mxu0 0.0
  %694 = vmatpush1.xpose.msra.mxu0 0.0
  %695 = vmatprep.subr.mxu0 0.0
  %696 = vmatpush1.xpose.msra.mxu0 0.0
  %697 = vmatprep.subr.mxu0 0.0
  %698 = vmatpush1.xpose.msra.mxu0 0.0
  %699 = vmatprep.subr.mxu0 0.0
  %700 = vmatpush1.xpose.msra.mxu0 0.0
  %701 = vmatprep.subr.mxu0 0.0
  %702 = vmatpush1.xpose.msra.mxu0 0.0
  %703 = vmatprep.subr.mxu0 0.0
  %704 = vmatpush1.xpose.msra.mxu0 0.0
  %705 = vmatprep.subr.mxu0 0.0
  %706 = vmatpush1.xpose.msra.mxu0 0.0
  %707 = vmatprep.subr.mxu0 0.0
  %708 = vmatpush1.xpose.msra.mxu0 0.0
  %709 = vmatprep.subr.mxu0 0.0
  %710 = vmatpush1.xpose.msra.mxu0 0.0
  %711 = vmatprep.subr.mxu0 0.0
  %712 = vmatpush1.xpose.msra.mxu0 0.0
  %713 = vmatprep.subr.mxu0 0.0
  %714 = vmatpush1.xpose.msra.mxu0 0.0
  %715 = vmatprep.subr.mxu0 0.0
  %716 = vmatpush1.xpose.msra.mxu0 0.0
  %717 = vmatprep.subr.mxu0 0.0
  %718 = vmatpush1.xpose.msra.mxu0 0.0
  %719 = vmatprep.subr.mxu0 0.0
  %720 = vmatpush1.xpose.msra.mxu0 0.0
  %721 = vmatprep.subr.mxu0 0.0
  %722 = vmatpush1.xpose.msra.mxu0 0.0
  %723 = vmatprep.subr.mxu0 0.0
  %724 = vmatpush1.xpose.msra.mxu0 0.0
  %725 = vmatprep.subr.mxu0 0.0
  %726 = vmatpush1.xpose.msra.mxu0 0.0
  %727 = vmatprep.subr.mxu0 0.0
  %728 = vmatpush1.xpose.msra.mxu0 0.0
  %729 = vmatprep.subr.mxu0 0.0
  %730 = vmatpush1.xpose.msra.mxu0 0.0
  %731 = vmatprep.subr.mxu0 0.0
  %732 = vmatpush1.xpose.msra.mxu0 0.0
  %733 = vmatprep.subr.mxu0 0.0
  %734 = vmatpush1.xpose.msra.mxu0 0.0
  %735 = vmatprep.mubr.f32.mxu0 0.0
  %736 = vmatmul.mubr.f32.gmra.mrb[0].mxu0 %v666
  %v737 = vpop.f32.mrb[0].mxu0
  %v738 = vadd.f32 0.0, %v737
  %v739 = vpop.f32.mrb[0].mxu0
  %740 = vdwg.mxu0
  %v742 = vsel %vm512, %v295, 0
  %v745 = vsel %vm512, %v398, 0
  %747 = vmatprep.subr.mxu0 0.0
  %748 = vmatpush1.xpose.msra.mxu0 %v745
  %749 = vmatprep.subr.mxu0 0.0
  %750 = vmatpush1.xpose.msra.mxu0 0.0
  %751 = vmatprep.subr.mxu0 0.0
  %752 = vmatpush1.xpose.msra.mxu0 0.0
  %753 = vmatprep.subr.mxu0 0.0
  %754 = vmatpush1.xpose.msra.mxu0 0.0
  %755 = vmatprep.subr.mxu0 0.0
  %756 = vmatpush1.xpose.msra.mxu0 0.0
  %757 = vmatprep.subr.mxu0 0.0
  %758 = vmatpush1.xpose.msra.mxu0 0.0
  %759 = vmatprep.subr.mxu0 0.0
  %760 = vmatpush1.xpose.msra.mxu0 0.0
  %761 = vmatprep.subr.mxu0 0.0
  %762 = vmatpush1.xpose.msra.mxu0 0.0
  %763 = vmatprep.subr.mxu0 0.0
  %764 = vmatpush1.xpose.msra.mxu0 0.0
  %765 = vmatprep.subr.mxu0 0.0
  %766 = vmatpush1.xpose.msra.mxu0 0.0
  %767 = vmatprep.subr.mxu0 0.0
  %768 = vmatpush1.xpose.msra.mxu0 0.0
  %769 = vmatprep.subr.mxu0 0.0
  %770 = vmatpush1.xpose.msra.mxu0 0.0
  %771 = vmatprep.subr.mxu0 0.0
  %772 = vmatpush1.xpose.msra.mxu0 0.0
  %773 = vmatprep.subr.mxu0 0.0
  %774 = vmatpush1.xpose.msra.mxu0 0.0
  %775 = vmatprep.subr.mxu0 0.0
  %776 = vmatpush1.xpose.msra.mxu0 0.0
  %777 = vmatprep.subr.mxu0 0.0
  %778 = vmatpush1.xpose.msra.mxu0 0.0
  %779 = vmatprep.subr.mxu0 0.0
  %780 = vmatpush1.xpose.msra.mxu0 0.0
  %781 = vmatprep.subr.mxu0 0.0
  %782 = vmatpush1.xpose.msra.mxu0 0.0
  %783 = vmatprep.subr.mxu0 0.0
  %784 = vmatpush1.xpose.msra.mxu0 0.0
  %785 = vmatprep.subr.mxu0 0.0
  %786 = vmatpush1.xpose.msra.mxu0 0.0
  %787 = vmatprep.subr.mxu0 0.0
  %788 = vmatpush1.xpose.msra.mxu0 0.0
  %789 = vmatprep.subr.mxu0 0.0
  %790 = vmatpush1.xpose.msra.mxu0 0.0
  %791 = vmatprep.subr.mxu0 0.0
  %792 = vmatpush1.xpose.msra.mxu0 0.0
  %793 = vmatprep.subr.mxu0 0.0
  %794 = vmatpush1.xpose.msra.mxu0 0.0
  %795 = vmatprep.subr.mxu0 0.0
  %796 = vmatpush1.xpose.msra.mxu0 0.0
  %797 = vmatprep.subr.mxu0 0.0
  %798 = vmatpush1.xpose.msra.mxu0 0.0
  %799 = vmatprep.subr.mxu0 0.0
  %800 = vmatpush1.xpose.msra.mxu0 0.0
  %801 = vmatprep.subr.mxu0 0.0
  %802 = vmatpush1.xpose.msra.mxu0 0.0
  %803 = vmatprep.subr.mxu0 0.0
  %804 = vmatpush1.xpose.msra.mxu0 0.0
  %805 = vmatprep.subr.mxu0 0.0
  %806 = vmatpush1.xpose.msra.mxu0 0.0
  %807 = vmatprep.subr.mxu0 0.0
  %808 = vmatpush1.xpose.msra.mxu0 0.0
  %809 = vmatprep.subr.mxu0 0.0
  %810 = vmatpush1.xpose.msra.mxu0 0.0
  %811 = vmatprep.mubr.f32.mxu0 0.0
  %812 = vmatmul.mubr.f32.gmra.mrb[0].mxu0 %v742
  %v813 = vpop.f32.mrb[0].mxu0
  %v814 = vadd.f32 0.0, %v813
  %v815 = vpop.f32.mrb[0].mxu0
  %816 = vdwg.mxu0
  %v818 = vsel %vm512, %v300, 0
  %v821 = vsel %vm512, %v403, 0
  %823 = vmatprep.subr.mxu0 0.0
  %824 = vmatpush1.xpose.msra.mxu0 %v821
  %825 = vmatprep.subr.mxu0 0.0
  %826 = vmatpush1.xpose.msra.mxu0 0.0
  %827 = vmatprep.subr.mxu0 0.0
  %828 = vmatpush1.xpose.msra.mxu0 0.0
  %829 = vmatprep.subr.mxu0 0.0
  %830 = vmatpush1.xpose.msra.mxu0 0.0
  %831 = vmatprep.subr.mxu0 0.0
  %832 = vmatpush1.xpose.msra.mxu0 0.0
  %833 = vmatprep.subr.mxu0 0.0
  %834 = vmatpush1.xpose.msra.mxu0 0.0
  %835 = vmatprep.subr.mxu0 0.0
  %836 = vmatpush1.xpose.msra.mxu0 0.0
  %837 = vmatprep.subr.mxu0 0.0
  %838 = vmatpush1.xpose.msra.mxu0 0.0
  %839 = vmatprep.subr.mxu0 0.0
  %840 = vmatpush1.xpose.msra.mxu0 0.0
  %841 = vmatprep.subr.mxu0 0.0
  %842 = vmatpush1.xpose.msra.mxu0 0.0
  %843 = vmatprep.subr.mxu0 0.0
  %844 = vmatpush1.xpose.msra.mxu0 0.0
  %845 = vmatprep.subr.mxu0 0.0
  %846 = vmatpush1.xpose.msra.mxu0 0.0
  %847 = vmatprep.subr.mxu0 0.0
  %848 = vmatpush1.xpose.msra.mxu0 0.0
  %849 = vmatprep.subr.mxu0 0.0
  %850 = vmatpush1.xpose.msra.mxu0 0.0
  %851 = vmatprep.subr.mxu0 0.0
  %852 = vmatpush1.xpose.msra.mxu0 0.0
  %853 = vmatprep.subr.mxu0 0.0
  %854 = vmatpush1.xpose.msra.mxu0 0.0
  %855 = vmatprep.subr.mxu0 0.0
  %856 = vmatpush1.xpose.msra.mxu0 0.0
  %857 = vmatprep.subr.mxu0 0.0
  %858 = vmatpush1.xpose.msra.mxu0 0.0
  %859 = vmatprep.subr.mxu0 0.0
  %860 = vmatpush1.xpose.msra.mxu0 0.0
  %861 = vmatprep.subr.mxu0 0.0
  %862 = vmatpush1.xpose.msra.mxu0 0.0
  %863 = vmatprep.subr.mxu0 0.0
  %864 = vmatpush1.xpose.msra.mxu0 0.0
  %865 = vmatprep.subr.mxu0 0.0
  %866 = vmatpush1.xpose.msra.mxu0 0.0
  %867 = vmatprep.subr.mxu0 0.0
  %868 = vmatpush1.xpose.msra.mxu0 0.0
  %869 = vmatprep.subr.mxu0 0.0
  %870 = vmatpush1.xpose.msra.mxu0 0.0
  %871 = vmatprep.subr.mxu0 0.0
  %872 = vmatpush1.xpose.msra.mxu0 0.0
  %873 = vmatprep.subr.mxu0 0.0
  %874 = vmatpush1.xpose.msra.mxu0 0.0
  %875 = vmatprep.subr.mxu0 0.0
  %876 = vmatpush1.xpose.msra.mxu0 0.0
  %877 = vmatprep.subr.mxu0 0.0
  %878 = vmatpush1.xpose.msra.mxu0 0.0
  %879 = vmatprep.subr.mxu0 0.0
  %880 = vmatpush1.xpose.msra.mxu0 0.0
  %881 = vmatprep.subr.mxu0 0.0
  %882 = vmatpush1.xpose.msra.mxu0 0.0
  %883 = vmatprep.subr.mxu0 0.0
  %884 = vmatpush1.xpose.msra.mxu0 0.0
  %885 = vmatprep.subr.mxu0 0.0
  %886 = vmatpush1.xpose.msra.mxu0 0.0
  %887 = vmatprep.mubr.f32.mxu0 0.0
  %888 = vmatmul.mubr.f32.gmra.mrb[0].mxu0 %v818
  %v889 = vpop.f32.mrb[0].mxu0
  %v890 = vadd.f32 0.0, %v889
  %v891 = vpop.f32.mrb[0].mxu0
  %892 = vdwg.mxu0
  %v894 = vsel %vm512, %v305, 0
  %v897 = vsel %vm512, %v408, 0
  %899 = vmatprep.subr.mxu0 0.0
  %900 = vmatpush1.xpose.msra.mxu0 %v897
  %901 = vmatprep.subr.mxu0 0.0
  %902 = vmatpush1.xpose.msra.mxu0 0.0
  %903 = vmatprep.subr.mxu0 0.0
  %904 = vmatpush1.xpose.msra.mxu0 0.0
  %905 = vmatprep.subr.mxu0 0.0
  %906 = vmatpush1.xpose.msra.mxu0 0.0
  %907 = vmatprep.subr.mxu0 0.0
  %908 = vmatpush1.xpose.msra.mxu0 0.0
  %909 = vmatprep.subr.mxu0 0.0
  %910 = vmatpush1.xpose.msra.mxu0 0.0
  %911 = vmatprep.subr.mxu0 0.0
  %912 = vmatpush1.xpose.msra.mxu0 0.0
  %913 = vmatprep.subr.mxu0 0.0
  %914 = vmatpush1.xpose.msra.mxu0 0.0
  %915 = vmatprep.subr.mxu0 0.0
  %916 = vmatpush1.xpose.msra.mxu0 0.0
  %917 = vmatprep.subr.mxu0 0.0
  %918 = vmatpush1.xpose.msra.mxu0 0.0
  %919 = vmatprep.subr.mxu0 0.0
  %920 = vmatpush1.xpose.msra.mxu0 0.0
  %921 = vmatprep.subr.mxu0 0.0
  %922 = vmatpush1.xpose.msra.mxu0 0.0
  %923 = vmatprep.subr.mxu0 0.0
  %924 = vmatpush1.xpose.msra.mxu0 0.0
  %925 = vmatprep.subr.mxu0 0.0
  %926 = vmatpush1.xpose.msra.mxu0 0.0
  %927 = vmatprep.subr.mxu0 0.0
  %928 = vmatpush1.xpose.msra.mxu0 0.0
  %929 = vmatprep.subr.mxu0 0.0
  %930 = vmatpush1.xpose.msra.mxu0 0.0
  %931 = vmatprep.subr.mxu0 0.0
  %932 = vmatpush1.xpose.msra.mxu0 0.0
  %933 = vmatprep.subr.mxu0 0.0
  %934 = vmatpush1.xpose.msra.mxu0 0.0
  %935 = vmatprep.subr.mxu0 0.0
  %936 = vmatpush1.xpose.msra.mxu0 0.0
  %937 = vmatprep.subr.mxu0 0.0
  %938 = vmatpush1.xpose.msra.mxu0 0.0
  %939 = vmatprep.subr.mxu0 0.0
  %940 = vmatpush1.xpose.msra.mxu0 0.0
  %941 = vmatprep.subr.mxu0 0.0
  %942 = vmatpush1.xpose.msra.mxu0 0.0
  %943 = vmatprep.subr.mxu0 0.0
  %944 = vmatpush1.xpose.msra.mxu0 0.0
  %945 = vmatprep.subr.mxu0 0.0
  %946 = vmatpush1.xpose.msra.mxu0 0.0
  %947 = vmatprep.subr.mxu0 0.0
  %948 = vmatpush1.xpose.msra.mxu0 0.0
  %949 = vmatprep.subr.mxu0 0.0
  %950 = vmatpush1.xpose.msra.mxu0 0.0
  %951 = vmatprep.subr.mxu0 0.0
  %952 = vmatpush1.xpose.msra.mxu0 0.0
  %953 = vmatprep.subr.mxu0 0.0
  %954 = vmatpush1.xpose.msra.mxu0 0.0
  %955 = vmatprep.subr.mxu0 0.0
  %956 = vmatpush1.xpose.msra.mxu0 0.0
  %957 = vmatprep.subr.mxu0 0.0
  %958 = vmatpush1.xpose.msra.mxu0 0.0
  %959 = vmatprep.subr.mxu0 0.0
  %960 = vmatpush1.xpose.msra.mxu0 0.0
  %961 = vmatprep.subr.mxu0 0.0
  %962 = vmatpush1.xpose.msra.mxu0 0.0
  %963 = vmatprep.mubr.f32.mxu0 0.0
  %964 = vmatmul.mubr.f32.gmra.mrb[0].mxu0 %v894
  %v965 = vpop.f32.mrb[0].mxu0
  %v966 = vadd.f32 0.0, %v965
  %v967 = vpop.f32.mrb[0].mxu0
  %968 = vdwg.mxu0
  %v969 = vsel %vm512, %v586, -inf
  %970 = vmax.xlane.f32.xlu0 %v969
  %v971 = vpop.xlane.xlu0 %970
  %v972 = vsel %vm512, %v662, -inf
  %973 = vmax.xlane.f32.xlu0 %v972
  %v974 = vpop.xlane.xlu0 %973
  %v975 = vsel %vm512, %v738, -inf
  %976 = vmax.xlane.f32.xlu0 %v975
  %v977 = vpop.xlane.xlu0 %976
  %v978 = vsel %vm512, %v814, -inf
  %979 = vmax.xlane.f32.xlu0 %v978
  %v980 = vpop.xlane.xlu0 %979
  %v981 = vsel %vm512, %v890, -inf
  %982 = vmax.xlane.f32.xlu0 %v981
  %v983 = vpop.xlane.xlu0 %982
  %v984 = vsel %vm512, %v966, -inf
  %985 = vmax.xlane.f32.xlu0 %v984
  %v986 = vpop.xlane.xlu0 %985
  %v987 = vsub.f32 %v586, %v971
  %v988 = vsub.f32 %v662, %v974
  %v989 = vsub.f32 %v738, %v977
  %v990 = vsub.f32 %v814, %v980
  %v991 = vsub.f32 %v890, %v983
  %v992 = vsub.f32 %v966, %v986
  %v993 = vmul.f32 %v987, 1.442695
  %v994 = vpow.pop %v993
  %v995 = vmul.f32 %v988, 1.442695
  %v996 = vpow.pop %v995
  %v997 = vmul.f32 %v989, 1.442695
  %v998 = vpow.pop %v997
  %v999 = vmul.f32 %v990, 1.442695
  %v1000 = vpow.pop %v999
  %v1001 = vmul.f32 %v991, 1.442695
  %v1002 = vpow.pop %v1001
  %v1003 = vmul.f32 %v992, 1.442695
  %v1004 = vpow.pop %v1003
  %v1005 = vsel %vm512, %v994, 0.0
  %1006 = vadd.xlane.f32.xlu0 %v1005
  %v1007 = vpop.xlane.xlu0 %1006
  %v1008 = vsel %vm512, %v996, 0.0
  %1009 = vadd.xlane.f32.xlu0 %v1008
  %v1010 = vpop.xlane.xlu0 %1009
  %v1011 = vsel %vm512, %v998, 0.0
  %1012 = vadd.xlane.f32.xlu0 %v1011
  %v1013 = vpop.xlane.xlu0 %1012
  %v1014 = vsel %vm512, %v1000, 0.0
  %1015 = vadd.xlane.f32.xlu0 %v1014
  %v1016 = vpop.xlane.xlu0 %1015
  %v1017 = vsel %vm512, %v1002, 0.0
  %1018 = vadd.xlane.f32.xlu0 %v1017
  %v1019 = vpop.xlane.xlu0 %1018
  %v1020 = vsel %vm512, %v1004, 0.0
  %1021 = vadd.xlane.f32.xlu0 %v1020
  %v1022 = vpop.xlane.xlu0 %1021
  %v1023 = vrcp.pop %v1007
  %v1024 = vrcp.pop %v1010
  %v1025 = vrcp.pop %v1013
  %v1026 = vrcp.pop %v1016
  %v1027 = vrcp.pop %v1019
  %v1028 = vrcp.pop %v1022
  %v1029 = vmul.f32 %v994, %v1023
  %v1030 = vmul.f32 %v996, %v1024
  %v1031 = vmul.f32 %v998, %v1025
  %v1032 = vmul.f32 %v1000, %v1026
  %v1033 = vmul.f32 %v1002, %v1027
  %v1034 = vmul.f32 %v1004, %v1028
  %v1036 = vsel %vm512, %v1029, 0
  %1038 = vmatprep.subr.mxu0 0.0
  %1039 = vmatpush1.msra.mxu0 %v484
  %1040 = vmatprep.subr.mxu0 0.0
  %1041 = vmatpush1.msra.mxu0 0.0
  %1042 = vmatprep.subr.mxu0 0.0
  %1043 = vmatpush1.msra.mxu0 0.0
  %1044 = vmatprep.subr.mxu0 0.0
  %1045 = vmatpush1.msra.mxu0 0.0
  %1046 = vmatprep.subr.mxu0 0.0
  %1047 = vmatpush1.msra.mxu0 0.0
  %1048 = vmatprep.subr.mxu0 0.0
  %1049 = vmatpush1.msra.mxu0 0.0
  %1050 = vmatprep.subr.mxu0 0.0
  %1051 = vmatpush1.msra.mxu0 0.0
  %1052 = vmatprep.subr.mxu0 0.0
  %1053 = vmatpush1.msra.mxu0 0.0
  %1054 = vmatprep.subr.mxu0 0.0
  %1055 = vmatpush1.msra.mxu0 0.0
  %1056 = vmatprep.subr.mxu0 0.0
  %1057 = vmatpush1.msra.mxu0 0.0
  %1058 = vmatprep.subr.mxu0 0.0
  %1059 = vmatpush1.msra.mxu0 0.0
  %1060 = vmatprep.subr.mxu0 0.0
  %1061 = vmatpush1.msra.mxu0 0.0
  %1062 = vmatprep.subr.mxu0 0.0
  %1063 = vmatpush1.msra.mxu0 0.0
  %1064 = vmatprep.subr.mxu0 0.0
  %1065 = vmatpush1.msra.mxu0 0.0
  %1066 = vmatprep.subr.mxu0 0.0
  %1067 = vmatpush1.msra.mxu0 0.0
  %1068 = vmatprep.subr.mxu0 0.0
  %1069 = vmatpush1.msra.mxu0 0.0
  %1070 = vmatprep.subr.mxu0 0.0
  %1071 = vmatpush1.msra.mxu0 0.0
  %1072 = vmatprep.subr.mxu0 0.0
  %1073 = vmatpush1.msra.mxu0 0.0
  %1074 = vmatprep.subr.mxu0 0.0
  %1075 = vmatpush1.msra.mxu0 0.0
  %1076 = vmatprep.subr.mxu0 0.0
  %1077 = vmatpush1.msra.mxu0 0.0
  %1078 = vmatprep.subr.mxu0 0.0
  %1079 = vmatpush1.msra.mxu0 0.0
  %1080 = vmatprep.subr.mxu0 0.0
  %1081 = vmatpush1.msra.mxu0 0.0
  %1082 = vmatprep.subr.mxu0 0.0
  %1083 = vmatpush1.msra.mxu0 0.0
  %1084 = vmatprep.subr.mxu0 0.0
  %1085 = vmatpush1.msra.mxu0 0.0
  %1086 = vmatprep.subr.mxu0 0.0
  %1087 = vmatpush1.msra.mxu0 0.0
  %1088 = vmatprep.subr.mxu0 0.0
  %1089 = vmatpush1.msra.mxu0 0.0
  %1090 = vmatprep.subr.mxu0 0.0
  %1091 = vmatpush1.msra.mxu0 0.0
  %1092 = vmatprep.subr.mxu0 0.0
  %1093 = vmatpush1.msra.mxu0 0.0
  %1094 = vmatprep.subr.mxu0 0.0
  %1095 = vmatpush1.msra.mxu0 0.0
  %1096 = vmatprep.subr.mxu0 0.0
  %1097 = vmatpush1.msra.mxu0 0.0
  %1098 = vmatprep.subr.mxu0 0.0
  %1099 = vmatpush1.msra.mxu0 0.0
  %1100 = vmatprep.subr.mxu0 0.0
  %1101 = vmatpush1.msra.mxu0 0.0
  %1102 = vmatprep.mubr.f32.mxu0 0.0
  %1103 = vmatmul.mubr.f32.gmra.mrb[0].mxu0 %v1036
  %v1104 = vpop.f32.mrb[0].mxu0
  %v1105 = vadd.f32 0.0, %v1104
  %v1106 = vpop.f32.mrb[0].mxu0
  %1107 = vdwg.mxu0
  %v1109 = vsel %vm512, %v1030, 0
  %1111 = vmatprep.subr.mxu0 0.0
  %1112 = vmatpush1.msra.mxu0 %v489
  %1113 = vmatprep.subr.mxu0 0.0
  %1114 = vmatpush1.msra.mxu0 0.0
  %1115 = vmatprep.subr.mxu0 0.0
  %1116 = vmatpush1.msra.mxu0 0.0
  %1117 = vmatprep.subr.mxu0 0.0
  %1118 = vmatpush1.msra.mxu0 0.0
  %1119 = vmatprep.subr.mxu0 0.0
  %1120 = vmatpush1.msra.mxu0 0.0
  %1121 = vmatprep.subr.mxu0 0.0
  %1122 = vmatpush1.msra.mxu0 0.0
  %1123 = vmatprep.subr.mxu0 0.0
  %1124 = vmatpush1.msra.mxu0 0.0
  %1125 = vmatprep.subr.mxu0 0.0
  %1126 = vmatpush1.msra.mxu0 0.0
  %1127 = vmatprep.subr.mxu0 0.0
  %1128 = vmatpush1.msra.mxu0 0.0
  %1129 = vmatprep.subr.mxu0 0.0
  %1130 = vmatpush1.msra.mxu0 0.0
  %1131 = vmatprep.subr.mxu0 0.0
  %1132 = vmatpush1.msra.mxu0 0.0
  %1133 = vmatprep.subr.mxu0 0.0
  %1134 = vmatpush1.msra.mxu0 0.0
  %1135 = vmatprep.subr.mxu0 0.0
  %1136 = vmatpush1.msra.mxu0 0.0
  %1137 = vmatprep.subr.mxu0 0.0
  %1138 = vmatpush1.msra.mxu0 0.0
  %1139 = vmatprep.subr.mxu0 0.0
  %1140 = vmatpush1.msra.mxu0 0.0
  %1141 = vmatprep.subr.mxu0 0.0
  %1142 = vmatpush1.msra.mxu0 0.0
  %1143 = vmatprep.subr.mxu0 0.0
  %1144 = vmatpush1.msra.mxu0 0.0
  %1145 = vmatprep.subr.mxu0 0.0
  %1146 = vmatpush1.msra.mxu0 0.0
  %1147 = vmatprep.subr.mxu0 0.0
  %1148 = vmatpush1.msra.mxu0 0.0
  %1149 = vmatprep.subr.mxu0 0.0
  %1150 = vmatpush1.msra.mxu0 0.0
  %1151 = vmatprep.subr.mxu0 0.0
  %1152 = vmatpush1.msra.mxu0 0.0
  %1153 = vmatprep.subr.mxu0 0.0
  %1154 = vmatpush1.msra.mxu0 0.0
  %1155 = vmatprep.subr.mxu0 0.0
  %1156 = vmatpush1.msra.mxu0 0.0
  %1157 = vmatprep.subr.mxu0 0.0
  %1158 = vmatpush1.msra.mxu0 0.0
  %1159 = vmatprep.subr.mxu0 0.0
  %1160 = vmatpush1.msra.mxu0 0.0
  %1161 = vmatprep.subr.mxu0 0.0
  %1162 = vmatpush1.msra.mxu0 0.0
  %1163 = vmatprep.subr.mxu0 0.0
  %1164 = vmatpush1.msra.mxu0 0.0
  %1165 = vmatprep.subr.mxu0 0.0
  %1166 = vmatpush1.msra.mxu0 0.0
  %1167 = vmatprep.subr.mxu0 0.0
  %1168 = vmatpush1.msra.mxu0 0.0
  %1169 = vmatprep.subr.mxu0 0.0
  %1170 = vmatpush1.msra.mxu0 0.0
  %1171 = vmatprep.subr.mxu0 0.0
  %1172 = vmatpush1.msra.mxu0 0.0
  %1173 = vmatprep.subr.mxu0 0.0
  %1174 = vmatpush1.msra.mxu0 0.0
  %1175 = vmatprep.mubr.f32.mxu0 0.0
  %1176 = vmatmul.mubr.f32.gmra.mrb[0].mxu0 %v1109
  %v1177 = vpop.f32.mrb[0].mxu0
  %v1178 = vadd.f32 0.0, %v1177
  %v1179 = vpop.f32.mrb[0].mxu0
  %1180 = vdwg.mxu0
  %v1182 = vsel %vm512, %v1031, 0
  %1184 = vmatprep.subr.mxu0 0.0
  %1185 = vmatpush1.msra.mxu0 %v494
  %1186 = vmatprep.subr.mxu0 0.0
  %1187 = vmatpush1.msra.mxu0 0.0
  %1188 = vmatprep.subr.mxu0 0.0
  %1189 = vmatpush1.msra.mxu0 0.0
  %1190 = vmatprep.subr.mxu0 0.0
  %1191 = vmatpush1.msra.mxu0 0.0
  %1192 = vmatprep.subr.mxu0 0.0
  %1193 = vmatpush1.msra.mxu0 0.0
  %1194 = vmatprep.subr.mxu0 0.0
  %1195 = vmatpush1.msra.mxu0 0.0
  %1196 = vmatprep.subr.mxu0 0.0
  %1197 = vmatpush1.msra.mxu0 0.0
  %1198 = vmatprep.subr.mxu0 0.0
  %1199 = vmatpush1.msra.mxu0 0.0
  %1200 = vmatprep.subr.mxu0 0.0
  %1201 = vmatpush1.msra.mxu0 0.0
  %1202 = vmatprep.subr.mxu0 0.0
  %1203 = vmatpush1.msra.mxu0 0.0
  %1204 = vmatprep.subr.mxu0 0.0
  %1205 = vmatpush1.msra.mxu0 0.0
  %1206 = vmatprep.subr.mxu0 0.0
  %1207 = vmatpush1.msra.mxu0 0.0
  %1208 = vmatprep.subr.mxu0 0.0
  %1209 = vmatpush1.msra.mxu0 0.0
  %1210 = vmatprep.subr.mxu0 0.0
  %1211 = vmatpush1.msra.mxu0 0.0
  %1212 = vmatprep.subr.mxu0 0.0
  %1213 = vmatpush1.msra.mxu0 0.0
  %1214 = vmatprep.subr.mxu0 0.0
  %1215 = vmatpush1.msra.mxu0 0.0
  %1216 = vmatprep.subr.mxu0 0.0
  %1217 = vmatpush1.msra.mxu0 0.0
  %1218 = vmatprep.subr.mxu0 0.0
  %1219 = vmatpush1.msra.mxu0 0.0
  %1220 = vmatprep.subr.mxu0 0.0
  %1221 = vmatpush1.msra.mxu0 0.0
  %1222 = vmatprep.subr.mxu0 0.0
  %1223 = vmatpush1.msra.mxu0 0.0
  %1224 = vmatprep.subr.mxu0 0.0
  %1225 = vmatpush1.msra.mxu0 0.0
  %1226 = vmatprep.subr.mxu0 0.0
  %1227 = vmatpush1.msra.mxu0 0.0
  %1228 = vmatprep.subr.mxu0 0.0
  %1229 = vmatpush1.msra.mxu0 0.0
  %1230 = vmatprep.subr.mxu0 0.0
  %1231 = vmatpush1.msra.mxu0 0.0
  %1232 = vmatprep.subr.mxu0 0.0
  %1233 = vmatpush1.msra.mxu0 0.0
  %1234 = vmatprep.subr.mxu0 0.0
  %1235 = vmatpush1.msra.mxu0 0.0
  %1236 = vmatprep.subr.mxu0 0.0
  %1237 = vmatpush1.msra.mxu0 0.0
  %1238 = vmatprep.subr.mxu0 0.0
  %1239 = vmatpush1.msra.mxu0 0.0
  %1240 = vmatprep.subr.mxu0 0.0
  %1241 = vmatpush1.msra.mxu0 0.0
  %1242 = vmatprep.subr.mxu0 0.0
  %1243 = vmatpush1.msra.mxu0 0.0
  %1244 = vmatprep.subr.mxu0 0.0
  %1245 = vmatpush1.msra.mxu0 0.0
  %1246 = vmatprep.subr.mxu0 0.0
  %1247 = vmatpush1.msra.mxu0 0.0
  %1248 = vmatprep.mubr.f32.mxu0 0.0
  %1249 = vmatmul.mubr.f32.gmra.mrb[0].mxu0 %v1182
  %v1250 = vpop.f32.mrb[0].mxu0
  %v1251 = vadd.f32 0.0, %v1250
  %v1252 = vpop.f32.mrb[0].mxu0
  %1253 = vdwg.mxu0
  %v1255 = vsel %vm512, %v1032, 0
  %1257 = vmatprep.subr.mxu0 0.0
  %1258 = vmatpush1.msra.mxu0 %v499
  %1259 = vmatprep.subr.mxu0 0.0
  %1260 = vmatpush1.msra.mxu0 0.0
  %1261 = vmatprep.subr.mxu0 0.0
  %1262 = vmatpush1.msra.mxu0 0.0
  %1263 = vmatprep.subr.mxu0 0.0
  %1264 = vmatpush1.msra.mxu0 0.0
  %1265 = vmatprep.subr.mxu0 0.0
  %1266 = vmatpush1.msra.mxu0 0.0
  %1267 = vmatprep.subr.mxu0 0.0
  %1268 = vmatpush1.msra.mxu0 0.0
  %1269 = vmatprep.subr.mxu0 0.0
  %1270 = vmatpush1.msra.mxu0 0.0
  %1271 = vmatprep.subr.mxu0 0.0
  %1272 = vmatpush1.msra.mxu0 0.0
  %1273 = vmatprep.subr.mxu0 0.0
  %1274 = vmatpush1.msra.mxu0 0.0
  %1275 = vmatprep.subr.mxu0 0.0
  %1276 = vmatpush1.msra.mxu0 0.0
  %1277 = vmatprep.subr.mxu0 0.0
  %1278 = vmatpush1.msra.mxu0 0.0
  %1279 = vmatprep.subr.mxu0 0.0
  %1280 = vmatpush1.msra.mxu0 0.0
  %1281 = vmatprep.subr.mxu0 0.0
  %1282 = vmatpush1.msra.mxu0 0.0
  %1283 = vmatprep.subr.mxu0 0.0
  %1284 = vmatpush1.msra.mxu0 0.0
  %1285 = vmatprep.subr.mxu0 0.0
  %1286 = vmatpush1.msra.mxu0 0.0
  %1287 = vmatprep.subr.mxu0 0.0
  %1288 = vmatpush1.msra.mxu0 0.0
  %1289 = vmatprep.subr.mxu0 0.0
  %1290 = vmatpush1.msra.mxu0 0.0
  %1291 = vmatprep.subr.mxu0 0.0
  %1292 = vmatpush1.msra.mxu0 0.0
  %1293 = vmatprep.subr.mxu0 0.0
  %1294 = vmatpush1.msra.mxu0 0.0
  %1295 = vmatprep.subr.mxu0 0.0
  %1296 = vmatpush1.msra.mxu0 0.0
  %1297 = vmatprep.subr.mxu0 0.0
  %1298 = vmatpush1.msra.mxu0 0.0
  %1299 = vmatprep.subr.mxu0 0.0
  %1300 = vmatpush1.msra.mxu0 0.0
  %1301 = vmatprep.subr.mxu0 0.0
  %1302 = vmatpush1.msra.mxu0 0.0
  %1303 = vmatprep.subr.mxu0 0.0
  %1304 = vmatpush1.msra.mxu0 0.0
  %1305 = vmatprep.subr.mxu0 0.0
  %1306 = vmatpush1.msra.mxu0 0.0
  %1307 = vmatprep.subr.mxu0 0.0
  %1308 = vmatpush1.msra.mxu0 0.0
  %1309 = vmatprep.subr.mxu0 0.0
  %1310 = vmatpush1.msra.mxu0 0.0
  %1311 = vmatprep.subr.mxu0 0.0
  %1312 = vmatpush1.msra.mxu0 0.0
  %1313 = vmatprep.subr.mxu0 0.0
  %1314 = vmatpush1.msra.mxu0 0.0
  %1315 = vmatprep.subr.mxu0 0.0
  %1316 = vmatpush1.msra.mxu0 0.0
  %1317 = vmatprep.subr.mxu0 0.0
  %1318 = vmatpush1.msra.mxu0 0.0
  %1319 = vmatprep.subr.mxu0 0.0
  %1320 = vmatpush1.msra.mxu0 0.0
  %1321 = vmatprep.mubr.f32.mxu0 0.0
  %1322 = vmatmul.mubr.f32.gmra.mrb[0].mxu0 %v1255
  %v1323 = vpop.f32.mrb[0].mxu0
  %v1324 = vadd.f32 0.0, %v1323
  %v1325 = vpop.f32.mrb[0].mxu0
  %1326 = vdwg.mxu0
  %v1328 = vsel %vm512, %v1033, 0
  %1330 = vmatprep.subr.mxu0 0.0
  %1331 = vmatpush1.msra.mxu0 %v504
  %1332 = vmatprep.subr.mxu0 0.0
  %1333 = vmatpush1.msra.mxu0 0.0
  %1334 = vmatprep.subr.mxu0 0.0
  %1335 = vmatpush1.msra.mxu0 0.0
  %1336 = vmatprep.subr.mxu0 0.0
  %1337 = vmatpush1.msra.mxu0 0.0
  %1338 = vmatprep.subr.mxu0 0.0
  %1339 = vmatpush1.msra.mxu0 0.0
  %1340 = vmatprep.subr.mxu0 0.0
  %1341 = vmatpush1.msra.mxu0 0.0
  %1342 = vmatprep.subr.mxu0 0.0
  %1343 = vmatpush1.msra.mxu0 0.0
  %1344 = vmatprep.subr.mxu0 0.0
  %1345 = vmatpush1.msra.mxu0 0.0
  %1346 = vmatprep.subr.mxu0 0.0
  %1347 = vmatpush1.msra.mxu0 0.0
  %1348 = vmatprep.subr.mxu0 0.0
  %1349 = vmatpush1.msra.mxu0 0.0
  %1350 = vmatprep.subr.mxu0 0.0
  %1351 = vmatpush1.msra.mxu0 0.0
  %1352 = vmatprep.subr.mxu0 0.0
  %1353 = vmatpush1.msra.mxu0 0.0
  %1354 = vmatprep.subr.mxu0 0.0
  %1355 = vmatpush1.msra.mxu0 0.0
  %1356 = vmatprep.subr.mxu0 0.0
  %1357 = vmatpush1.msra.mxu0 0.0
  %1358 = vmatprep.subr.mxu0 0.0
  %1359 = vmatpush1.msra.mxu0 0.0
  %1360 = vmatprep.subr.mxu0 0.0
  %1361 = vmatpush1.msra.mxu0 0.0
  %1362 = vmatprep.subr.mxu0 0.0
  %1363 = vmatpush1.msra.mxu0 0.0
  %1364 = vmatprep.subr.mxu0 0.0
  %1365 = vmatpush1.msra.mxu0 0.0
  %1366 = vmatprep.subr.mxu0 0.0
  %1367 = vmatpush1.msra.mxu0 0.0
  %1368 = vmatprep.subr.mxu0 0.0
  %1369 = vmatpush1.msra.mxu0 0.0
  %1370 = vmatprep.subr.mxu0 0.0
  %1371 = vmatpush1.msra.mxu0 0.0
  %1372 = vmatprep.subr.mxu0 0.0
  %1373 = vmatpush1.msra.mxu0 0.0
  %1374 = vmatprep.subr.mxu0 0.0
  %1375 = vmatpush1.msra.mxu0 0.0
  %1376 = vmatprep.subr.mxu0 0.0
  %1377 = vmatpush1.msra.mxu0 0.0
  %1378 = vmatprep.subr.mxu0 0.0
  %1379 = vmatpush1.msra.mxu0 0.0
  %1380 = vmatprep.subr.mxu0 0.0
  %1381 = vmatpush1.msra.mxu0 0.0
  %1382 = vmatprep.subr.mxu0 0.0
  %1383 = vmatpush1.msra.mxu0 0.0
  %1384 = vmatprep.subr.mxu0 0.0
  %1385 = vmatpush1.msra.mxu0 0.0
  %1386 = vmatprep.subr.mxu0 0.0
  %1387 = vmatpush1.msra.mxu0 0.0
  %1388 = vmatprep.subr.mxu0 0.0
  %1389 = vmatpush1.msra.mxu0 0.0
  %1390 = vmatprep.subr.mxu0 0.0
  %1391 = vmatpush1.msra.mxu0 0.0
  %1392 = vmatprep.subr.mxu0 0.0
  %1393 = vmatpush1.msra.mxu0 0.0
  %1394 = vmatprep.mubr.f32.mxu0 0.0
  %1395 = vmatmul.mubr.f32.gmra.mrb[0].mxu0 %v1328
  %v1396 = vpop.f32.mrb[0].mxu0
  %v1397 = vadd.f32 0.0, %v1396
  %v1398 = vpop.f32.mrb[0].mxu0
  %1399 = vdwg.mxu0
  %v1401 = vsel %vm512, %v1034, 0
  %1403 = vmatprep.subr.mxu0 0.0
  %1404 = vmatpush1.msra.mxu0 %v509
  %1405 = vmatprep.subr.mxu0 0.0
  %1406 = vmatpush1.msra.mxu0 0.0
  %1407 = vmatprep.subr.mxu0 0.0
  %1408 = vmatpush1.msra.mxu0 0.0
  %1409 = vmatprep.subr.mxu0 0.0
  %1410 = vmatpush1.msra.mxu0 0.0
  %1411 = vmatprep.subr.mxu0 0.0
  %1412 = vmatpush1.msra.mxu0 0.0
  %1413 = vmatprep.subr.mxu0 0.0
  %1414 = vmatpush1.msra.mxu0 0.0
  %1415 = vmatprep.subr.mxu0 0.0
  %1416 = vmatpush1.msra.mxu0 0.0
  %1417 = vmatprep.subr.mxu0 0.0
  %1418 = vmatpush1.msra.mxu0 0.0
  %1419 = vmatprep.subr.mxu0 0.0
  %1420 = vmatpush1.msra.mxu0 0.0
  %1421 = vmatprep.subr.mxu0 0.0
  %1422 = vmatpush1.msra.mxu0 0.0
  %1423 = vmatprep.subr.mxu0 0.0
  %1424 = vmatpush1.msra.mxu0 0.0
  %1425 = vmatprep.subr.mxu0 0.0
  %1426 = vmatpush1.msra.mxu0 0.0
  %1427 = vmatprep.subr.mxu0 0.0
  %1428 = vmatpush1.msra.mxu0 0.0
  %1429 = vmatprep.subr.mxu0 0.0
  %1430 = vmatpush1.msra.mxu0 0.0
  %1431 = vmatprep.subr.mxu0 0.0
  %1432 = vmatpush1.msra.mxu0 0.0
  %1433 = vmatprep.subr.mxu0 0.0
  %1434 = vmatpush1.msra.mxu0 0.0
  %1435 = vmatprep.subr.mxu0 0.0
  %1436 = vmatpush1.msra.mxu0 0.0
  %1437 = vmatprep.subr.mxu0 0.0
  %1438 = vmatpush1.msra.mxu0 0.0
  %1439 = vmatprep.subr.mxu0 0.0
  %1440 = vmatpush1.msra.mxu0 0.0
  %1441 = vmatprep.subr.mxu0 0.0
  %1442 = vmatpush1.msra.mxu0 0.0
  %1443 = vmatprep.subr.mxu0 0.0
  %1444 = vmatpush1.msra.mxu0 0.0
  %1445 = vmatprep.subr.mxu0 0.0
  %1446 = vmatpush1.msra.mxu0 0.0
  %1447 = vmatprep.subr.mxu0 0.0
  %1448 = vmatpush1.msra.mxu0 0.0
  %1449 = vmatprep.subr.mxu0 0.0
  %1450 = vmatpush1.msra.mxu0 0.0
  %1451 = vmatprep.subr.mxu0 0.0
  %1452 = vmatpush1.msra.mxu0 0.0
  %1453 = vmatprep.subr.mxu0 0.0
  %1454 = vmatpush1.msra.mxu0 0.0
  %1455 = vmatprep.subr.mxu0 0.0
  %1456 = vmatpush1.msra.mxu0 0.0
  %1457 = vmatprep.subr.mxu0 0.0
  %1458 = vmatpush1.msra.mxu0 0.0
  %1459 = vmatprep.subr.mxu0 0.0
  %1460 = vmatpush1.msra.mxu0 0.0
  %1461 = vmatprep.subr.mxu0 0.0
  %1462 = vmatpush1.msra.mxu0 0.0
  %1463 = vmatprep.subr.mxu0 0.0
  %1464 = vmatpush1.msra.mxu0 0.0
  %1465 = vmatprep.subr.mxu0 0.0
  %1466 = vmatpush1.msra.mxu0 0.0
  %1467 = vmatprep.mubr.f32.mxu0 0.0
  %1468 = vmatmul.mubr.f32.gmra.mrb[0].mxu0 %v1401
  %v1469 = vpop.f32.mrb[0].mxu0
  %v1470 = vadd.f32 0.0, %v1469
  %v1471 = vpop.f32.mrb[0].mxu0
  %1472 = vdwg.mxu0
  %v1473 = vsel %vm512, %v1105, 0.0
  %v1474 = vrot.slane %v1473, 4
  %v1475 = vadd.f32 %v1473, %v1474
  %v1476 = vrot.slane %v1475, 2
  %v1477 = vadd.f32 %v1475, %v1476
  %v1478 = vrot.slane %v1477, 1
  %v1479 = vadd.f32 %v1477, %v1478
  %v1480 = vsel %vm512, %v1178, 0.0
  %v1481 = vrot.slane %v1480, 4
  %v1482 = vadd.f32 %v1480, %v1481
  %v1483 = vrot.slane %v1482, 2
  %v1484 = vadd.f32 %v1482, %v1483
  %v1485 = vrot.slane %v1484, 1
  %v1486 = vadd.f32 %v1484, %v1485
  %v1487 = vsel %vm512, %v1251, 0.0
  %v1488 = vrot.slane %v1487, 4
  %v1489 = vadd.f32 %v1487, %v1488
  %v1490 = vrot.slane %v1489, 2
  %v1491 = vadd.f32 %v1489, %v1490
  %v1492 = vrot.slane %v1491, 1
  %v1493 = vadd.f32 %v1491, %v1492
  %v1494 = vsel %vm512, %v1324, 0.0
  %v1495 = vrot.slane %v1494, 4
  %v1496 = vadd.f32 %v1494, %v1495
  %v1497 = vrot.slane %v1496, 2
  %v1498 = vadd.f32 %v1496, %v1497
  %v1499 = vrot.slane %v1498, 1
  %v1500 = vadd.f32 %v1498, %v1499
  %v1501 = vsel %vm512, %v1397, 0.0
  %v1502 = vrot.slane %v1501, 4
  %v1503 = vadd.f32 %v1501, %v1502
  %v1504 = vrot.slane %v1503, 2
  %v1505 = vadd.f32 %v1503, %v1504
  %v1506 = vrot.slane %v1505, 1
  %v1507 = vadd.f32 %v1505, %v1506
  %v1508 = vsel %vm512, %v1470, 0.0
  %v1509 = vrot.slane %v1508, 4
  %v1510 = vadd.f32 %v1508, %v1509
  %v1511 = vrot.slane %v1510, 2
  %v1512 = vadd.f32 %v1510, %v1511
  %v1513 = vrot.slane %v1512, 1
  %v1514 = vadd.f32 %v1512, %v1513
  %v1515 = vld [vmem:[%s2] sm:$0xff]
  %v1516 = vld [vmem:[%s2 + $0x8] sm:$0xff]
  %v1517 = vld [vmem:[%s4] sm:$0x1]
  %v1519 = vlaneseq
  %v1520 = vshrl.u32 %v1519, 7
  %v1521 = vsub.s32 0, %v1520
  %v1522 = vrot.slane %v1517, %v1521
  %1525 = vrot.lane.b32.xlu0 %v1515, 120
  %v1526 = vpop.permute.xlu0 %1525
  %1527 = vrot.lane.b32.xlu0 %v1516, 120
  %v1528 = vpop.permute.xlu0 %1527
  %1531 = vrot.lane.b32.xlu0 %v1522, 120
  %v1532 = vpop.permute.xlu0 %1531
  %1534 = vmatprep.subr.mxu0 0.0
  %1535 = vmatpush1.msra.mxu0 %v1526
  %1536 = vmatprep.subr.mxu0 0.0
  %1537 = vmatpush1.msra.mxu0 %v1528
  %1538 = vmatprep.subr.mxu0 0.0
  %1539 = vmatpush1.msra.mxu0 0.0
  %1540 = vmatprep.subr.mxu0 0.0
  %1541 = vmatpush1.msra.mxu0 0.0
  %1542 = vmatprep.subr.mxu0 0.0
  %1543 = vmatpush1.msra.mxu0 0.0
  %1544 = vmatprep.subr.mxu0 0.0
  %1545 = vmatpush1.msra.mxu0 0.0
  %1546 = vmatprep.subr.mxu0 0.0
  %1547 = vmatpush1.msra.mxu0 0.0
  %1548 = vmatprep.subr.mxu0 0.0
  %1549 = vmatpush1.msra.mxu0 0.0
  %1550 = vmatprep.subr.mxu0 0.0
  %1551 = vmatpush1.msra.mxu0 0.0
  %1552 = vmatprep.subr.mxu0 0.0
  %1553 = vmatpush1.msra.mxu0 0.0
  %1554 = vmatprep.subr.mxu0 0.0
  %1555 = vmatpush1.msra.mxu0 0.0
  %1556 = vmatprep.subr.mxu0 0.0
  %1557 = vmatpush1.msra.mxu0 0.0
  %1558 = vmatprep.subr.mxu0 0.0
  %1559 = vmatpush1.msra.mxu0 0.0
  %1560 = vmatprep.subr.mxu0 0.0
  %1561 = vmatpush1.msra.mxu0 0.0
  %1562 = vmatprep.subr.mxu0 0.0
  %1563 = vmatpush1.msra.mxu0 0.0
  %1564 = vmatprep.subr.mxu0 0.0
  %1565 = vmatpush1.msra.mxu0 0.0
  %1566 = vmatprep.subr.mxu0 0.0
  %1567 = vmatpush1.msra.mxu0 0.0
  %1568 = vmatprep.subr.mxu0 0.0
  %1569 = vmatpush1.msra.mxu0 0.0
  %1570 = vmatprep.subr.mxu0 0.0
  %1571 = vmatpush1.msra.mxu0 0.0
  %1572 = vmatprep.subr.mxu0 0.0
  %1573 = vmatpush1.msra.mxu0 0.0
  %1574 = vmatprep.subr.mxu0 0.0
  %1575 = vmatpush1.msra.mxu0 0.0
  %1576 = vmatprep.subr.mxu0 0.0
  %1577 = vmatpush1.msra.mxu0 0.0
  %1578 = vmatprep.subr.mxu0 0.0
  %1579 = vmatpush1.msra.mxu0 0.0
  %1580 = vmatprep.subr.mxu0 0.0
  %1581 = vmatpush1.msra.mxu0 0.0
  %1582 = vmatprep.subr.mxu0 0.0
  %1583 = vmatpush1.msra.mxu0 0.0
  %1584 = vmatprep.subr.mxu0 0.0
  %1585 = vmatpush1.msra.mxu0 0.0
  %1586 = vmatprep.subr.mxu0 0.0
  %1587 = vmatpush1.msra.mxu0 0.0
  %1588 = vmatprep.subr.mxu0 0.0
  %1589 = vmatpush1.msra.mxu0 0.0
  %1590 = vmatprep.subr.mxu0 0.0
  %1591 = vmatpush1.msra.mxu0 0.0
  %1592 = vmatprep.subr.mxu0 0.0
  %1593 = vmatpush1.msra.mxu0 0.0
  %1594 = vmatprep.subr.mxu0 0.0
  %1595 = vmatpush1.msra.mxu0 0.0
  %1596 = vmatprep.subr.mxu0 0.0
  %1597 = vmatpush1.msra.mxu0 0.0
  %1598 = vmatprep.mubr.f32.mxu0 0.0
  %1599 = vmatmul.mubr.f32.gmra.mrb[0].mxu0 %v196
  %v1600 = vpop.f32.mrb[0].mxu0
  %v1601 = vadd.f32 %v1532, %v1600
  %v1602 = vpop.f32.mrb[0].mxu0
  %1603 = vmatprep.mubr.f32.mxu0 0.0
  %1604 = vmatmul.mubr.f32.gmra.mrb[0].mxu0 %v199
  %v1605 = vpop.f32.mrb[0].mxu0
  %v1606 = vadd.f32 %v1532, %v1605
  %v1607 = vpop.f32.mrb[0].mxu0
  %1608 = vmatprep.mubr.f32.mxu0 0.0
  %1609 = vmatmul.mubr.f32.gmra.mrb[0].mxu0 %v202
  %v1610 = vpop.f32.mrb[0].mxu0
  %v1611 = vadd.f32 %v1532, %v1610
  %v1612 = vpop.f32.mrb[0].mxu0
  %1613 = vmatprep.mubr.f32.mxu0 0.0
  %1614 = vmatmul.mubr.f32.gmra.mrb[0].mxu0 %v205
  %v1615 = vpop.f32.mrb[0].mxu0
  %v1616 = vadd.f32 %v1532, %v1615
  %v1617 = vpop.f32.mrb[0].mxu0
  %1618 = vmatprep.mubr.f32.mxu0 0.0
  %1619 = vmatmul.mubr.f32.gmra.mrb[0].mxu0 %v208
  %v1620 = vpop.f32.mrb[0].mxu0
  %v1621 = vadd.f32 %v1532, %v1620
  %v1622 = vpop.f32.mrb[0].mxu0
  %1623 = vmatprep.mubr.f32.mxu0 0.0
  %1624 = vmatmul.mubr.f32.gmra.mrb[0].mxu0 %v211
  %v1625 = vpop.f32.mrb[0].mxu0
  %v1626 = vadd.f32 %v1532, %v1625
  %v1627 = vpop.f32.mrb[0].mxu0
  %1628 = vdwg.mxu0
  %1629 = vrot.lane.b32.xlu0 %v1515, 104
  %v1630 = vpop.permute.xlu0 %1629
  %1631 = vrot.lane.b32.xlu0 %v1516, 104
  %v1632 = vpop.permute.xlu0 %1631
  %1635 = vmatprep.subr.mxu0 0.0
  %1636 = vmatpush1.msra.mxu0 %v1630
  %1637 = vmatprep.subr.mxu0 0.0
  %1638 = vmatpush1.msra.mxu0 %v1632
  %1639 = vmatprep.subr.mxu0 0.0
  %1640 = vmatpush1.msra.mxu0 0.0
  %1641 = vmatprep.subr.mxu0 0.0
  %1642 = vmatpush1.msra.mxu0 0.0
  %1643 = vmatprep.subr.mxu0 0.0
  %1644 = vmatpush1.msra.mxu0 0.0
  %1645 = vmatprep.subr.mxu0 0.0
  %1646 = vmatpush1.msra.mxu0 0.0
  %1647 = vmatprep.subr.mxu0 0.0
  %1648 = vmatpush1.msra.mxu0 0.0
  %1649 = vmatprep.subr.mxu0 0.0
  %1650 = vmatpush1.msra.mxu0 0.0
  %1651 = vmatprep.subr.mxu0 0.0
  %1652 = vmatpush1.msra.mxu0 0.0
  %1653 = vmatprep.subr.mxu0 0.0
  %1654 = vmatpush1.msra.mxu0 0.0
  %1655 = vmatprep.subr.mxu0 0.0
  %1656 = vmatpush1.msra.mxu0 0.0
  %1657 = vmatprep.subr.mxu0 0.0
  %1658 = vmatpush1.msra.mxu0 0.0
  %1659 = vmatprep.subr.mxu0 0.0
  %1660 = vmatpush1.msra.mxu0 0.0
  %1661 = vmatprep.subr.mxu0 0.0
  %1662 = vmatpush1.msra.mxu0 0.0
  %1663 = vmatprep.subr.mxu0 0.0
  %1664 = vmatpush1.msra.mxu0 0.0
  %1665 = vmatprep.subr.mxu0 0.0
  %1666 = vmatpush1.msra.mxu0 0.0
  %1667 = vmatprep.subr.mxu0 0.0
  %1668 = vmatpush1.msra.mxu0 0.0
  %1669 = vmatprep.subr.mxu0 0.0
  %1670 = vmatpush1.msra.mxu0 0.0
  %1671 = vmatprep.subr.mxu0 0.0
  %1672 = vmatpush1.msra.mxu0 0.0
  %1673 = vmatprep.subr.mxu0 0.0
  %1674 = vmatpush1.msra.mxu0 0.0
  %1675 = vmatprep.subr.mxu0 0.0
  %1676 = vmatpush1.msra.mxu0 0.0
  %1677 = vmatprep.subr.mxu0 0.0
  %1678 = vmatpush1.msra.mxu0 0.0
  %1679 = vmatprep.subr.mxu0 0.0
  %1680 = vmatpush1.msra.mxu0 0.0
  %1681 = vmatprep.subr.mxu0 0.0
  %1682 = vmatpush1.msra.mxu0 0.0
  %1683 = vmatprep.subr.mxu0 0.0
  %1684 = vmatpush1.msra.mxu0 0.0
  %1685 = vmatprep.subr.mxu0 0.0
  %1686 = vmatpush1.msra.mxu0 0.0
  %1687 = vmatprep.subr.mxu0 0.0
  %1688 = vmatpush1.msra.mxu0 0.0
  %1689 = vmatprep.subr.mxu0 0.0
  %1690 = vmatpush1.msra.mxu0 0.0
  %1691 = vmatprep.subr.mxu0 0.0
  %1692 = vmatpush1.msra.mxu0 0.0
  %1693 = vmatprep.subr.mxu0 0.0
  %1694 = vmatpush1.msra.mxu0 0.0
  %1695 = vmatprep.subr.mxu0 0.0
  %1696 = vmatpush1.msra.mxu0 0.0
  %1697 = vmatprep.subr.mxu0 0.0
  %1698 = vmatpush1.msra.mxu0 0.0
  %1699 = vmatprep.mubr.f32.mxu0 0.0
  %1700 = vmatmul.mubr.f32.gmra.mrb[0].mxu0 %v196
  %v1701 = vpop.f32.mrb[0].mxu0
  %v1702 = vadd.f32 0.0, %v1701
  %v1703 = vpop.f32.mrb[0].mxu0
  %1704 = vmatprep.mubr.f32.mxu0 0.0
  %1705 = vmatmul.mubr.f32.gmra.mrb[0].mxu0 %v199
  %v1706 = vpop.f32.mrb[0].mxu0
  %v1707 = vadd.f32 0.0, %v1706
  %v1708 = vpop.f32.mrb[0].mxu0
  %1709 = vmatprep.mubr.f32.mxu0 0.0
  %1710 = vmatmul.mubr.f32.gmra.mrb[0].mxu0 %v202
  %v1711 = vpop.f32.mrb[0].mxu0
  %v1712 = vadd.f32 0.0, %v1711
  %v1713 = vpop.f32.mrb[0].mxu0
  %1714 = vmatprep.mubr.f32.mxu0 0.0
  %1715 = vmatmul.mubr.f32.gmra.mrb[0].mxu0 %v205
  %v1716 = vpop.f32.mrb[0].mxu0
  %v1717 = vadd.f32 0.0, %v1716
  %v1718 = vpop.f32.mrb[0].mxu0
  %1719 = vmatprep.mubr.f32.mxu0 0.0
  %1720 = vmatmul.mubr.f32.gmra.mrb[0].mxu0 %v208
  %v1721 = vpop.f32.mrb[0].mxu0
  %v1722 = vadd.f32 0.0, %v1721
  %v1723 = vpop.f32.mrb[0].mxu0
  %1724 = vmatprep.mubr.f32.mxu0 0.0
  %1725 = vmatmul.mubr.f32.gmra.mrb[0].mxu0 %v211
  %v1726 = vpop.f32.mrb[0].mxu0
  %v1727 = vadd.f32 0.0, %v1726
  %v1728 = vpop.f32.mrb[0].mxu0
  %1729 = vdwg.mxu0
  %1730 = vrot.lane.b32.xlu0 %v1515, 88
  %v1731 = vpop.permute.xlu0 %1730
  %1732 = vrot.lane.b32.xlu0 %v1516, 88
  %v1733 = vpop.permute.xlu0 %1732
  %1736 = vmatprep.subr.mxu0 0.0
  %1737 = vmatpush1.msra.mxu0 %v1731
  %1738 = vmatprep.subr.mxu0 0.0
  %1739 = vmatpush1.msra.mxu0 %v1733
  %1740 = vmatprep.subr.mxu0 0.0
  %1741 = vmatpush1.msra.mxu0 0.0
  %1742 = vmatprep.subr.mxu0 0.0
  %1743 = vmatpush1.msra.mxu0 0.0
  %1744 = vmatprep.subr.mxu0 0.0
  %1745 = vmatpush1.msra.mxu0 0.0
  %1746 = vmatprep.subr.mxu0 0.0
  %1747 = vmatpush1.msra.mxu0 0.0
  %1748 = vmatprep.subr.mxu0 0.0
  %1749 = vmatpush1.msra.mxu0 0.0
  %1750 = vmatprep.subr.mxu0 0.0
  %1751 = vmatpush1.msra.mxu0 0.0
  %1752 = vmatprep.subr.mxu0 0.0
  %1753 = vmatpush1.msra.mxu0 0.0
  %1754 = vmatprep.subr.mxu0 0.0
  %1755 = vmatpush1.msra.mxu0 0.0
  %1756 = vmatprep.subr.mxu0 0.0
  %1757 = vmatpush1.msra.mxu0 0.0
  %1758 = vmatprep.subr.mxu0 0.0
  %1759 = vmatpush1.msra.mxu0 0.0
  %1760 = vmatprep.subr.mxu0 0.0
  %1761 = vmatpush1.msra.mxu0 0.0
  %1762 = vmatprep.subr.mxu0 0.0
  %1763 = vmatpush1.msra.mxu0 0.0
  %1764 = vmatprep.subr.mxu0 0.0
  %1765 = vmatpush1.msra.mxu0 0.0
  %1766 = vmatprep.subr.mxu0 0.0
  %1767 = vmatpush1.msra.mxu0 0.0
  %1768 = vmatprep.subr.mxu0 0.0
  %1769 = vmatpush1.msra.mxu0 0.0
  %1770 = vmatprep.subr.mxu0 0.0
  %1771 = vmatpush1.msra.mxu0 0.0
  %1772 = vmatprep.subr.mxu0 0.0
  %1773 = vmatpush1.msra.mxu0 0.0
  %1774 = vmatprep.subr.mxu0 0.0
  %1775 = vmatpush1.msra.mxu0 0.0
  %1776 = vmatprep.subr.mxu0 0.0
  %1777 = vmatpush1.msra.mxu0 0.0
  %1778 = vmatprep.subr.mxu0 0.0
  %1779 = vmatpush1.msra.mxu0 0.0
  %1780 = vmatprep.subr.mxu0 0.0
  %1781 = vmatpush1.msra.mxu0 0.0
  %1782 = vmatprep.subr.mxu0 0.0
  %1783 = vmatpush1.msra.mxu0 0.0
  %1784 = vmatprep.subr.mxu0 0.0
  %1785 = vmatpush1.msra.mxu0 0.0
  %1786 = vmatprep.subr.mxu0 0.0
  %1787 = vmatpush1.msra.mxu0 0.0
  %1788 = vmatprep.subr.mxu0 0.0
  %1789 = vmatpush1.msra.mxu0 0.0
  %1790 = vmatprep.subr.mxu0 0.0
  %1791 = vmatpush1.msra.mxu0 0.0
  %1792 = vmatprep.subr.mxu0 0.0
  %1793 = vmatpush1.msra.mxu0 0.0
  %1794 = vmatprep.subr.mxu0 0.0
  %1795 = vmatpush1.msra.mxu0 0.0
  %1796 = vmatprep.subr.mxu0 0.0
  %1797 = vmatpush1.msra.mxu0 0.0
  %1798 = vmatprep.subr.mxu0 0.0
  %1799 = vmatpush1.msra.mxu0 0.0
  %1800 = vmatprep.mubr.f32.mxu0 0.0
  %1801 = vmatmul.mubr.f32.gmra.mrb[0].mxu0 %v196
  %v1802 = vpop.f32.mrb[0].mxu0
  %v1803 = vadd.f32 0.0, %v1802
  %v1804 = vpop.f32.mrb[0].mxu0
  %1805 = vmatprep.mubr.f32.mxu0 0.0
  %1806 = vmatmul.mubr.f32.gmra.mrb[0].mxu0 %v199
  %v1807 = vpop.f32.mrb[0].mxu0
  %v1808 = vadd.f32 0.0, %v1807
  %v1809 = vpop.f32.mrb[0].mxu0
  %1810 = vmatprep.mubr.f32.mxu0 0.0
  %1811 = vmatmul.mubr.f32.gmra.mrb[0].mxu0 %v202
  %v1812 = vpop.f32.mrb[0].mxu0
  %v1813 = vadd.f32 0.0, %v1812
  %v1814 = vpop.f32.mrb[0].mxu0
  %1815 = vmatprep.mubr.f32.mxu0 0.0
  %1816 = vmatmul.mubr.f32.gmra.mrb[0].mxu0 %v205
  %v1817 = vpop.f32.mrb[0].mxu0
  %v1818 = vadd.f32 0.0, %v1817
  %v1819 = vpop.f32.mrb[0].mxu0
  %1820 = vmatprep.mubr.f32.mxu0 0.0
  %1821 = vmatmul.mubr.f32.gmra.mrb[0].mxu0 %v208
  %v1822 = vpop.f32.mrb[0].mxu0
  %v1823 = vadd.f32 0.0, %v1822
  %v1824 = vpop.f32.mrb[0].mxu0
  %1825 = vmatprep.mubr.f32.mxu0 0.0
  %1826 = vmatmul.mubr.f32.gmra.mrb[0].mxu0 %v211
  %v1827 = vpop.f32.mrb[0].mxu0
  %v1828 = vadd.f32 0.0, %v1827
  %v1829 = vpop.f32.mrb[0].mxu0
  %1830 = vdwg.mxu0
  %v1832 = vsel %vm512, %v1601, 0
  %v1835 = vsel %vm512, %v1702, 0
  %1837 = vmatprep.subr.mxu0 0.0
  %1838 = vmatpush1.xpose.msra.mxu0 %v1835
  %1839 = vmatprep.subr.mxu0 0.0
  %1840 = vmatpush1.xpose.msra.mxu0 0.0
  %1841 = vmatprep.subr.mxu0 0.0
  %1842 = vmatpush1.xpose.msra.mxu0 0.0
  %1843 = vmatprep.subr.mxu0 0.0
  %1844 = vmatpush1.xpose.msra.mxu0 0.0
  %1845 = vmatprep.subr.mxu0 0.0
  %1846 = vmatpush1.xpose.msra.mxu0 0.0
  %1847 = vmatprep.subr.mxu0 0.0
  %1848 = vmatpush1.xpose.msra.mxu0 0.0
  %1849 = vmatprep.subr.mxu0 0.0
  %1850 = vmatpush1.xpose.msra.mxu0 0.0
  %1851 = vmatprep.subr.mxu0 0.0
  %1852 = vmatpush1.xpose.msra.mxu0 0.0
  %1853 = vmatprep.subr.mxu0 0.0
  %1854 = vmatpush1.xpose.msra.mxu0 0.0
  %1855 = vmatprep.subr.mxu0 0.0
  %1856 = vmatpush1.xpose.msra.mxu0 0.0
  %1857 = vmatprep.subr.mxu0 0.0
  %1858 = vmatpush1.xpose.msra.mxu0 0.0
  %1859 = vmatprep.subr.mxu0 0.0
  %1860 = vmatpush1.xpose.msra.mxu0 0.0
  %1861 = vmatprep.subr.mxu0 0.0
  %1862 = vmatpush1.xpose.msra.mxu0 0.0
  %1863 = vmatprep.subr.mxu0 0.0
  %1864 = vmatpush1.xpose.msra.mxu0 0.0
  %1865 = vmatprep.subr.mxu0 0.0
  %1866 = vmatpush1.xpose.msra.mxu0 0.0
  %1867 = vmatprep.subr.mxu0 0.0
  %1868 = vmatpush1.xpose.msra.mxu0 0.0
  %1869 = vmatprep.subr.mxu0 0.0
  %1870 = vmatpush1.xpose.msra.mxu0 0.0
  %1871 = vmatprep.subr.mxu0 0.0
  %1872 = vmatpush1.xpose.msra.mxu0 0.0
  %1873 = vmatprep.subr.mxu0 0.0
  %1874 = vmatpush1.xpose.msra.mxu0 0.0
  %1875 = vmatprep.subr.mxu0 0.0
  %1876 = vmatpush1.xpose.msra.mxu0 0.0
  %1877 = vmatprep.subr.mxu0 0.0
  %1878 = vmatpush1.xpose.msra.mxu0 0.0
  %1879 = vmatprep.subr.mxu0 0.0
  %1880 = vmatpush1.xpose.msra.mxu0 0.0
  %1881 = vmatprep.subr.mxu0 0.0
  %1882 = vmatpush1.xpose.msra.mxu0 0.0
  %1883 = vmatprep.subr.mxu0 0.0
  %1884 = vmatpush1.xpose.msra.mxu0 0.0
  %1885 = vmatprep.subr.mxu0 0.0
  %1886 = vmatpush1.xpose.msra.mxu0 0.0
  %1887 = vmatprep.subr.mxu0 0.0
  %1888 = vmatpush1.xpose.msra.mxu0 0.0
  %1889 = vmatprep.subr.mxu0 0.0
  %1890 = vmatpush1.xpose.msra.mxu0 0.0
  %1891 = vmatprep.subr.mxu0 0.0
  %1892 = vmatpush1.xpose.msra.mxu0 0.0
  %1893 = vmatprep.subr.mxu0 0.0
  %1894 = vmatpush1.xpose.msra.mxu0 0.0
  %1895 = vmatprep.subr.mxu0 0.0
  %1896 = vmatpush1.xpose.msra.mxu0 0.0
  %1897 = vmatprep.subr.mxu0 0.0
  %1898 = vmatpush1.xpose.msra.mxu0 0.0
  %1899 = vmatprep.subr.mxu0 0.0
  %1900 = vmatpush1.xpose.msra.mxu0 0.0
  %1901 = vmatprep.mubr.f32.mxu0 0.0
  %1902 = vmatmul.mubr.f32.gmra.mrb[0].mxu0 %v1832
  %v1903 = vpop.f32.mrb[0].mxu0
  %v1904 = vadd.f32 0.0, %v1903
  %v1905 = vpop.f32.mrb[0].mxu0
  %1906 = vdwg.mxu0
  %v1908 = vsel %vm512, %v1606, 0
  %v1911 = vsel %vm512, %v1707, 0
  %1913 = vmatprep.subr.mxu0 0.0
  %1914 = vmatpush1.xpose.msra.mxu0 %v1911
  %1915 = vmatprep.subr.mxu0 0.0
  %1916 = vmatpush1.xpose.msra.mxu0 0.0
  %1917 = vmatprep.subr.mxu0 0.0
  %1918 = vmatpush1.xpose.msra.mxu0 0.0
  %1919 = vmatprep.subr.mxu0 0.0
  %1920 = vmatpush1.xpose.msra.mxu0 0.0
  %1921 = vmatprep.subr.mxu0 0.0
  %1922 = vmatpush1.xpose.msra.mxu0 0.0
  %1923 = vmatprep.subr.mxu0 0.0
  %1924 = vmatpush1.xpose.msra.mxu0 0.0
  %1925 = vmatprep.subr.mxu0 0.0
  %1926 = vmatpush1.xpose.msra.mxu0 0.0
  %1927 = vmatprep.subr.mxu0 0.0
  %1928 = vmatpush1.xpose.msra.mxu0 0.0
  %1929 = vmatprep.subr.mxu0 0.0
  %1930 = vmatpush1.xpose.msra.mxu0 0.0
  %1931 = vmatprep.subr.mxu0 0.0
  %1932 = vmatpush1.xpose.msra.mxu0 0.0
  %1933 = vmatprep.subr.mxu0 0.0
  %1934 = vmatpush1.xpose.msra.mxu0 0.0
  %1935 = vmatprep.subr.mxu0 0.0
  %1936 = vmatpush1.xpose.msra.mxu0 0.0
  %1937 = vmatprep.subr.mxu0 0.0
  %1938 = vmatpush1.xpose.msra.mxu0 0.0
  %1939 = vmatprep.subr.mxu0 0.0
  %1940 = vmatpush1.xpose.msra.mxu0 0.0
  %1941 = vmatprep.subr.mxu0 0.0
  %1942 = vmatpush1.xpose.msra.mxu0 0.0
  %1943 = vmatprep.subr.mxu0 0.0
  %1944 = vmatpush1.xpose.msra.mxu0 0.0
  %1945 = vmatprep.subr.mxu0 0.0
  %1946 = vmatpush1.xpose.msra.mxu0 0.0
  %1947 = vmatprep.subr.mxu0 0.0
  %1948 = vmatpush1.xpose.msra.mxu0 0.0
  %1949 = vmatprep.subr.mxu0 0.0
  %1950 = vmatpush1.xpose.msra.mxu0 0.0
  %1951 = vmatprep.subr.mxu0 0.0
  %1952 = vmatpush1.xpose.msra.mxu0 0.0
  %1953 = vmatprep.subr.mxu0 0.0
  %1954 = vmatpush1.xpose.msra.mxu0 0.0
  %1955 = vmatprep.subr.mxu0 0.0
  %1956 = vmatpush1.xpose.msra.mxu0 0.0
  %1957 = vmatprep.subr.mxu0 0.0
  %1958 = vmatpush1.xpose.msra.mxu0 0.0
  %1959 = vmatprep.subr.mxu0 0.0
  %1960 = vmatpush1.xpose.msra.mxu0 0.0
  %1961 = vmatprep.subr.mxu0 0.0
  %1962 = vmatpush1.xpose.msra.mxu0 0.0
  %1963 = vmatprep.subr.mxu0 0.0
  %1964 = vmatpush1.xpose.msra.mxu0 0.0
  %1965 = vmatprep.subr.mxu0 0.0
  %1966 = vmatpush1.xpose.msra.mxu0 0.0
  %1967 = vmatprep.subr.mxu0 0.0
  %1968 = vmatpush1.xpose.msra.mxu0 0.0
  %1969 = vmatprep.subr.mxu0 0.0
  %1970 = vmatpush1.xpose.msra.mxu0 0.0
  %1971 = vmatprep.subr.mxu0 0.0
  %1972 = vmatpush1.xpose.msra.mxu0 0.0
  %1973 = vmatprep.subr.mxu0 0.0
  %1974 = vmatpush1.xpose.msra.mxu0 0.0
  %1975 = vmatprep.subr.mxu0 0.0
  %1976 = vmatpush1.xpose.msra.mxu0 0.0
  %1977 = vmatprep.mubr.f32.mxu0 0.0
  %1978 = vmatmul.mubr.f32.gmra.mrb[0].mxu0 %v1908
  %v1979 = vpop.f32.mrb[0].mxu0
  %v1980 = vadd.f32 0.0, %v1979
  %v1981 = vpop.f32.mrb[0].mxu0
  %1982 = vdwg.mxu0
  %v1984 = vsel %vm512, %v1611, 0
  %v1987 = vsel %vm512, %v1712, 0
  %1989 = vmatprep.subr.mxu0 0.0
  %1990 = vmatpush1.xpose.msra.mxu0 %v1987
  %1991 = vmatprep.subr.mxu0 0.0
  %1992 = vmatpush1.xpose.msra.mxu0 0.0
  %1993 = vmatprep.subr.mxu0 0.0
  %1994 = vmatpush1.xpose.msra.mxu0 0.0
  %1995 = vmatprep.subr.mxu0 0.0
  %1996 = vmatpush1.xpose.msra.mxu0 0.0
  %1997 = vmatprep.subr.mxu0 0.0
  %1998 = vmatpush1.xpose.msra.mxu0 0.0
  %1999 = vmatprep.subr.mxu0 0.0
  %2000 = vmatpush1.xpose.msra.mxu0 0.0
  %2001 = vmatprep.subr.mxu0 0.0
  %2002 = vmatpush1.xpose.msra.mxu0 0.0
  %2003 = vmatprep.subr.mxu0 0.0
  %2004 = vmatpush1.xpose.msra.mxu0 0.0
  %2005 = vmatprep.subr.mxu0 0.0
  %2006 = vmatpush1.xpose.msra.mxu0 0.0
  %2007 = vmatprep.subr.mxu0 0.0
  %2008 = vmatpush1.xpose.msra.mxu0 0.0
  %2009 = vmatprep.subr.mxu0 0.0
  %2010 = vmatpush1.xpose.msra.mxu0 0.0
  %2011 = vmatprep.subr.mxu0 0.0
  %2012 = vmatpush1.xpose.msra.mxu0 0.0
  %2013 = vmatprep.subr.mxu0 0.0
  %2014 = vmatpush1.xpose.msra.mxu0 0.0
  %2015 = vmatprep.subr.mxu0 0.0
  %2016 = vmatpush1.xpose.msra.mxu0 0.0
  %2017 = vmatprep.subr.mxu0 0.0
  %2018 = vmatpush1.xpose.msra.mxu0 0.0
  %2019 = vmatprep.subr.mxu0 0.0
  %2020 = vmatpush1.xpose.msra.mxu0 0.0
  %2021 = vmatprep.subr.mxu0 0.0
  %2022 = vmatpush1.xpose.msra.mxu0 0.0
  %2023 = vmatprep.subr.mxu0 0.0
  %2024 = vmatpush1.xpose.msra.mxu0 0.0
  %2025 = vmatprep.subr.mxu0 0.0
  %2026 = vmatpush1.xpose.msra.mxu0 0.0
  %2027 = vmatprep.subr.mxu0 0.0
  %2028 = vmatpush1.xpose.msra.mxu0 0.0
  %2029 = vmatprep.subr.mxu0 0.0
  %2030 = vmatpush1.xpose.msra.mxu0 0.0
  %2031 = vmatprep.subr.mxu0 0.0
  %2032 = vmatpush1.xpose.msra.mxu0 0.0
  %2033 = vmatprep.subr.mxu0 0.0
  %2034 = vmatpush1.xpose.msra.mxu0 0.0
  %2035 = vmatprep.subr.mxu0 0.0
  %2036 = vmatpush1.xpose.msra.mxu0 0.0
  %2037 = vmatprep.subr.mxu0 0.0
  %2038 = vmatpush1.xpose.msra.mxu0 0.0
  %2039 = vmatprep.subr.mxu0 0.0
  %2040 = vmatpush1.xpose.msra.mxu0 0.0
  %2041 = vmatprep.subr.mxu0 0.0
  %2042 = vmatpush1.xpose.msra.mxu0 0.0
  %2043 = vmatprep.subr.mxu0 0.0
  %2044 = vmatpush1.xpose.msra.mxu0 0.0
  %2045 = vmatprep.subr.mxu0 0.0
  %2046 = vmatpush1.xpose.msra.mxu0 0.0
  %2047 = vmatprep.subr.mxu0 0.0
  %2048 = vmatpush1.xpose.msra.mxu0 0.0
  %2049 = vmatprep.subr.mxu0 0.0
  %2050 = vmatpush1.xpose.msra.mxu0 0.0
  %2051 = vmatprep.subr.mxu0 0.0
  %2052 = vmatpush1.xpose.msra.mxu0 0.0
  %2053 = vmatprep.mubr.f32.mxu0 0.0
  %2054 = vmatmul.mubr.f32.gmra.mrb[0].mxu0 %v1984
  %v2055 = vpop.f32.mrb[0].mxu0
  %v2056 = vadd.f32 0.0, %v2055
  %v2057 = vpop.f32.mrb[0].mxu0
  %2058 = vdwg.mxu0
  %v2060 = vsel %vm512, %v1616, 0
  %v2063 = vsel %vm512, %v1717, 0
  %2065 = vmatprep.subr.mxu0 0.0
  %2066 = vmatpush1.xpose.msra.mxu0 %v2063
  %2067 = vmatprep.subr.mxu0 0.0
  %2068 = vmatpush1.xpose.msra.mxu0 0.0
  %2069 = vmatprep.subr.mxu0 0.0
  %2070 = vmatpush1.xpose.msra.mxu0 0.0
  %2071 = vmatprep.subr.mxu0 0.0
  %2072 = vmatpush1.xpose.msra.mxu0 0.0
  %2073 = vmatprep.subr.mxu0 0.0
  %2074 = vmatpush1.xpose.msra.mxu0 0.0
  %2075 = vmatprep.subr.mxu0 0.0
  %2076 = vmatpush1.xpose.msra.mxu0 0.0
  %2077 = vmatprep.subr.mxu0 0.0
  %2078 = vmatpush1.xpose.msra.mxu0 0.0
  %2079 = vmatprep.subr.mxu0 0.0
  %2080 = vmatpush1.xpose.msra.mxu0 0.0
  %2081 = vmatprep.subr.mxu0 0.0
  %2082 = vmatpush1.xpose.msra.mxu0 0.0
  %2083 = vmatprep.subr.mxu0 0.0
  %2084 = vmatpush1.xpose.msra.mxu0 0.0
  %2085 = vmatprep.subr.mxu0 0.0
  %2086 = vmatpush1.xpose.msra.mxu0 0.0
  %2087 = vmatprep.subr.mxu0 0.0
  %2088 = vmatpush1.xpose.msra.mxu0 0.0
  %2089 = vmatprep.subr.mxu0 0.0
  %2090 = vmatpush1.xpose.msra.mxu0 0.0
  %2091 = vmatprep.subr.mxu0 0.0
  %2092 = vmatpush1.xpose.msra.mxu0 0.0
  %2093 = vmatprep.subr.mxu0 0.0
  %2094 = vmatpush1.xpose.msra.mxu0 0.0
  %2095 = vmatprep.subr.mxu0 0.0
  %2096 = vmatpush1.xpose.msra.mxu0 0.0
  %2097 = vmatprep.subr.mxu0 0.0
  %2098 = vmatpush1.xpose.msra.mxu0 0.0
  %2099 = vmatprep.subr.mxu0 0.0
  %2100 = vmatpush1.xpose.msra.mxu0 0.0
  %2101 = vmatprep.subr.mxu0 0.0
  %2102 = vmatpush1.xpose.msra.mxu0 0.0
  %2103 = vmatprep.subr.mxu0 0.0
  %2104 = vmatpush1.xpose.msra.mxu0 0.0
  %2105 = vmatprep.subr.mxu0 0.0
  %2106 = vmatpush1.xpose.msra.mxu0 0.0
  %2107 = vmatprep.subr.mxu0 0.0
  %2108 = vmatpush1.xpose.msra.mxu0 0.0
  %2109 = vmatprep.subr.mxu0 0.0
  %2110 = vmatpush1.xpose.msra.mxu0 0.0
  %2111 = vmatprep.subr.mxu0 0.0
  %2112 = vmatpush1.xpose.msra.mxu0 0.0
  %2113 = vmatprep.subr.mxu0 0.0
  %2114 = vmatpush1.xpose.msra.mxu0 0.0
  %2115 = vmatprep.subr.mxu0 0.0
  %2116 = vmatpush1.xpose.msra.mxu0 0.0
  %2117 = vmatprep.subr.mxu0 0.0
  %2118 = vmatpush1.xpose.msra.mxu0 0.0
  %2119 = vmatprep.subr.mxu0 0.0
  %2120 = vmatpush1.xpose.msra.mxu0 0.0
  %2121 = vmatprep.subr.mxu0 0.0
  %2122 = vmatpush1.xpose.msra.mxu0 0.0
  %2123 = vmatprep.subr.mxu0 0.0
  %2124 = vmatpush1.xpose.msra.mxu0 0.0
  %2125 = vmatprep.subr.mxu0 0.0
  %2126 = vmatpush1.xpose.msra.mxu0 0.0
  %2127 = vmatprep.subr.mxu0 0.0
  %2128 = vmatpush1.xpose.msra.mxu0 0.0
  %2129 = vmatprep.mubr.f32.mxu0 0.0
  %2130 = vmatmul.mubr.f32.gmra.mrb[0].mxu0 %v2060
  %v2131 = vpop.f32.mrb[0].mxu0
  %v2132 = vadd.f32 0.0, %v2131
  %v2133 = vpop.f32.mrb[0].mxu0
  %2134 = vdwg.mxu0
  %v2136 = vsel %vm512, %v1621, 0
  %v2139 = vsel %vm512, %v1722, 0
  %2141 = vmatprep.subr.mxu0 0.0
  %2142 = vmatpush1.xpose.msra.mxu0 %v2139
  %2143 = vmatprep.subr.mxu0 0.0
  %2144 = vmatpush1.xpose.msra.mxu0 0.0
  %2145 = vmatprep.subr.mxu0 0.0
  %2146 = vmatpush1.xpose.msra.mxu0 0.0
  %2147 = vmatprep.subr.mxu0 0.0
  %2148 = vmatpush1.xpose.msra.mxu0 0.0
  %2149 = vmatprep.subr.mxu0 0.0
  %2150 = vmatpush1.xpose.msra.mxu0 0.0
  %2151 = vmatprep.subr.mxu0 0.0
  %2152 = vmatpush1.xpose.msra.mxu0 0.0
  %2153 = vmatprep.subr.mxu0 0.0
  %2154 = vmatpush1.xpose.msra.mxu0 0.0
  %2155 = vmatprep.subr.mxu0 0.0
  %2156 = vmatpush1.xpose.msra.mxu0 0.0
  %2157 = vmatprep.subr.mxu0 0.0
  %2158 = vmatpush1.xpose.msra.mxu0 0.0
  %2159 = vmatprep.subr.mxu0 0.0
  %2160 = vmatpush1.xpose.msra.mxu0 0.0
  %2161 = vmatprep.subr.mxu0 0.0
  %2162 = vmatpush1.xpose.msra.mxu0 0.0
  %2163 = vmatprep.subr.mxu0 0.0
  %2164 = vmatpush1.xpose.msra.mxu0 0.0
  %2165 = vmatprep.subr.mxu0 0.0
  %2166 = vmatpush1.xpose.msra.mxu0 0.0
  %2167 = vmatprep.subr.mxu0 0.0
  %2168 = vmatpush1.xpose.msra.mxu0 0.0
  %2169 = vmatprep.subr.mxu0 0.0
  %2170 = vmatpush1.xpose.msra.mxu0 0.0
  %2171 = vmatprep.subr.mxu0 0.0
  %2172 = vmatpush1.xpose.msra.mxu0 0.0
  %2173 = vmatprep.subr.mxu0 0.0
  %2174 = vmatpush1.xpose.msra.mxu0 0.0
  %2175 = vmatprep.subr.mxu0 0.0
  %2176 = vmatpush1.xpose.msra.mxu0 0.0
  %2177 = vmatprep.subr.mxu0 0.0
  %2178 = vmatpush1.xpose.msra.mxu0 0.0
  %2179 = vmatprep.subr.mxu0 0.0
  %2180 = vmatpush1.xpose.msra.mxu0 0.0
  %2181 = vmatprep.subr.mxu0 0.0
  %2182 = vmatpush1.xpose.msra.mxu0 0.0
  %2183 = vmatprep.subr.mxu0 0.0
  %2184 = vmatpush1.xpose.msra.mxu0 0.0
  %2185 = vmatprep.subr.mxu0 0.0
  %2186 = vmatpush1.xpose.msra.mxu0 0.0
  %2187 = vmatprep.subr.mxu0 0.0
  %2188 = vmatpush1.xpose.msra.mxu0 0.0
  %2189 = vmatprep.subr.mxu0 0.0
  %2190 = vmatpush1.xpose.msra.mxu0 0.0
  %2191 = vmatprep.subr.mxu0 0.0
  %2192 = vmatpush1.xpose.msra.mxu0 0.0
  %2193 = vmatprep.subr.mxu0 0.0
  %2194 = vmatpush1.xpose.msra.mxu0 0.0
  %2195 = vmatprep.subr.mxu0 0.0
  %2196 = vmatpush1.xpose.msra.mxu0 0.0
  %2197 = vmatprep.subr.mxu0 0.0
  %2198 = vmatpush1.xpose.msra.mxu0 0.0
  %2199 = vmatprep.subr.mxu0 0.0
  %2200 = vmatpush1.xpose.msra.mxu0 0.0
  %2201 = vmatprep.subr.mxu0 0.0
  %2202 = vmatpush1.xpose.msra.mxu0 0.0
  %2203 = vmatprep.subr.mxu0 0.0
  %2204 = vmatpush1.xpose.msra.mxu0 0.0
  %2205 = vmatprep.mubr.f32.mxu0 0.0
  %2206 = vmatmul.mubr.f32.gmra.mrb[0].mxu0 %v2136
  %v2207 = vpop.f32.mrb[0].mxu0
  %v2208 = vadd.f32 0.0, %v2207
  %v2209 = vpop.f32.mrb[0].mxu0
  %2210 = vdwg.mxu0
  %v2212 = vsel %vm512, %v1626, 0
  %v2215 = vsel %vm512, %v1727, 0
  %2217 = vmatprep.subr.mxu0 0.0
  %2218 = vmatpush1.xpose.msra.mxu0 %v2215
  %2219 = vmatprep.subr.mxu0 0.0
  %2220 = vmatpush1.xpose.msra.mxu0 0.0
  %2221 = vmatprep.subr.mxu0 0.0
  %2222 = vmatpush1.xpose.msra.mxu0 0.0
  %2223 = vmatprep.subr.mxu0 0.0
  %2224 = vmatpush1.xpose.msra.mxu0 0.0
  %2225 = vmatprep.subr.mxu0 0.0
  %2226 = vmatpush1.xpose.msra.mxu0 0.0
  %2227 = vmatprep.subr.mxu0 0.0
  %2228 = vmatpush1.xpose.msra.mxu0 0.0
  %2229 = vmatprep.subr.mxu0 0.0
  %2230 = vmatpush1.xpose.msra.mxu0 0.0
  %2231 = vmatprep.subr.mxu0 0.0
  %2232 = vmatpush1.xpose.msra.mxu0 0.0
  %2233 = vmatprep.subr.mxu0 0.0
  %2234 = vmatpush1.xpose.msra.mxu0 0.0
  %2235 = vmatprep.subr.mxu0 0.0
  %2236 = vmatpush1.xpose.msra.mxu0 0.0
  %2237 = vmatprep.subr.mxu0 0.0
  %2238 = vmatpush1.xpose.msra.mxu0 0.0
  %2239 = vmatprep.subr.mxu0 0.0
  %2240 = vmatpush1.xpose.msra.mxu0 0.0
  %2241 = vmatprep.subr.mxu0 0.0
  %2242 = vmatpush1.xpose.msra.mxu0 0.0
  %2243 = vmatprep.subr.mxu0 0.0
  %2244 = vmatpush1.xpose.msra.mxu0 0.0
  %2245 = vmatprep.subr.mxu0 0.0
  %2246 = vmatpush1.xpose.msra.mxu0 0.0
  %2247 = vmatprep.subr.mxu0 0.0
  %2248 = vmatpush1.xpose.msra.mxu0 0.0
  %2249 = vmatprep.subr.mxu0 0.0
  %2250 = vmatpush1.xpose.msra.mxu0 0.0
  %2251 = vmatprep.subr.mxu0 0.0
  %2252 = vmatpush1.xpose.msra.mxu0 0.0
  %2253 = vmatprep.subr.mxu0 0.0
  %2254 = vmatpush1.xpose.msra.mxu0 0.0
  %2255 = vmatprep.subr.mxu0 0.0
  %2256 = vmatpush1.xpose.msra.mxu0 0.0
  %2257 = vmatprep.subr.mxu0 0.0
  %2258 = vmatpush1.xpose.msra.mxu0 0.0
  %2259 = vmatprep.subr.mxu0 0.0
  %2260 = vmatpush1.xpose.msra.mxu0 0.0
  %2261 = vmatprep.subr.mxu0 0.0
  %2262 = vmatpush1.xpose.msra.mxu0 0.0
  %2263 = vmatprep.subr.mxu0 0.0
  %2264 = vmatpush1.xpose.msra.mxu0 0.0
  %2265 = vmatprep.subr.mxu0 0.0
  %2266 = vmatpush1.xpose.msra.mxu0 0.0
  %2267 = vmatprep.subr.mxu0 0.0
  %2268 = vmatpush1.xpose.msra.mxu0 0.0
  %2269 = vmatprep.subr.mxu0 0.0
  %2270 = vmatpush1.xpose.msra.mxu0 0.0
  %2271 = vmatprep.subr.mxu0 0.0
  %2272 = vmatpush1.xpose.msra.mxu0 0.0
  %2273 = vmatprep.subr.mxu0 0.0
  %2274 = vmatpush1.xpose.msra.mxu0 0.0
  %2275 = vmatprep.subr.mxu0 0.0
  %2276 = vmatpush1.xpose.msra.mxu0 0.0
  %2277 = vmatprep.subr.mxu0 0.0
  %2278 = vmatpush1.xpose.msra.mxu0 0.0
  %2279 = vmatprep.subr.mxu0 0.0
  %2280 = vmatpush1.xpose.msra.mxu0 0.0
  %2281 = vmatprep.mubr.f32.mxu0 0.0
  %2282 = vmatmul.mubr.f32.gmra.mrb[0].mxu0 %v2212
  %v2283 = vpop.f32.mrb[0].mxu0
  %v2284 = vadd.f32 0.0, %v2283
  %v2285 = vpop.f32.mrb[0].mxu0
  %2286 = vdwg.mxu0
  %v2287 = vsel %vm512, %v1904, -inf
  %2288 = vmax.xlane.f32.xlu0 %v2287
  %v2289 = vpop.xlane.xlu0 %2288
  %v2290 = vsel %vm512, %v1980, -inf
  %2291 = vmax.xlane.f32.xlu0 %v2290
  %v2292 = vpop.xlane.xlu0 %2291
  %v2293 = vsel %vm512, %v2056, -inf
  %2294 = vmax.xlane.f32.xlu0 %v2293
  %v2295 = vpop.xlane.xlu0 %2294
  %v2296 = vsel %vm512, %v2132, -inf
  %2297 = vmax.xlane.f32.xlu0 %v2296
  %v2298 = vpop.xlane.xlu0 %2297
  %v2299 = vsel %vm512, %v2208, -inf
  %2300 = vmax.xlane.f32.xlu0 %v2299
  %v2301 = vpop.xlane.xlu0 %2300
  %v2302 = vsel %vm512, %v2284, -inf
  %2303 = vmax.xlane.f32.xlu0 %v2302
  %v2304 = vpop.xlane.xlu0 %2303
  %v2305 = vsub.f32 %v1904, %v2289
  %v2306 = vsub.f32 %v1980, %v2292
  %v2307 = vsub.f32 %v2056, %v2295
  %v2308 = vsub.f32 %v2132, %v2298
  %v2309 = vsub.f32 %v2208, %v2301
  %v2310 = vsub.f32 %v2284, %v2304
  %v2311 = vmul.f32 %v2305, 1.442695
  %v2312 = vpow.pop %v2311
  %v2313 = vmul.f32 %v2306, 1.442695
  %v2314 = vpow.pop %v2313
  %v2315 = vmul.f32 %v2307, 1.442695
  %v2316 = vpow.pop %v2315
  %v2317 = vmul.f32 %v2308, 1.442695
  %v2318 = vpow.pop %v2317
  %v2319 = vmul.f32 %v2309, 1.442695
  %v2320 = vpow.pop %v2319
  %v2321 = vmul.f32 %v2310, 1.442695
  %v2322 = vpow.pop %v2321
  %v2323 = vsel %vm512, %v2312, 0.0
  %2324 = vadd.xlane.f32.xlu0 %v2323
  %v2325 = vpop.xlane.xlu0 %2324
  %v2326 = vsel %vm512, %v2314, 0.0
  %2327 = vadd.xlane.f32.xlu0 %v2326
  %v2328 = vpop.xlane.xlu0 %2327
  %v2329 = vsel %vm512, %v2316, 0.0
  %2330 = vadd.xlane.f32.xlu0 %v2329
  %v2331 = vpop.xlane.xlu0 %2330
  %v2332 = vsel %vm512, %v2318, 0.0
  %2333 = vadd.xlane.f32.xlu0 %v2332
  %v2334 = vpop.xlane.xlu0 %2333
  %v2335 = vsel %vm512, %v2320, 0.0
  %2336 = vadd.xlane.f32.xlu0 %v2335
  %v2337 = vpop.xlane.xlu0 %2336
  %v2338 = vsel %vm512, %v2322, 0.0
  %2339 = vadd.xlane.f32.xlu0 %v2338
  %v2340 = vpop.xlane.xlu0 %2339
  %v2341 = vrcp.pop %v2325
  %v2342 = vrcp.pop %v2328
  %v2343 = vrcp.pop %v2331
  %v2344 = vrcp.pop %v2334
  %v2345 = vrcp.pop %v2337
  %v2346 = vrcp.pop %v2340
  %v2347 = vmul.f32 %v2312, %v2341
  %v2348 = vmul.f32 %v2314, %v2342
  %v2349 = vmul.f32 %v2316, %v2343
  %v2350 = vmul.f32 %v2318, %v2344
  %v2351 = vmul.f32 %v2320, %v2345
  %v2352 = vmul.f32 %v2322, %v2346
  %v2354 = vsel %vm512, %v2347, 0
  %2356 = vmatprep.subr.mxu0 0.0
  %2357 = vmatpush1.msra.mxu0 %v1803
  %2358 = vmatprep.subr.mxu0 0.0
  %2359 = vmatpush1.msra.mxu0 0.0
  %2360 = vmatprep.subr.mxu0 0.0
  %2361 = vmatpush1.msra.mxu0 0.0
  %2362 = vmatprep.subr.mxu0 0.0
  %2363 = vmatpush1.msra.mxu0 0.0
  %2364 = vmatprep.subr.mxu0 0.0
  %2365 = vmatpush1.msra.mxu0 0.0
  %2366 = vmatprep.subr.mxu0 0.0
  %2367 = vmatpush1.msra.mxu0 0.0
  %2368 = vmatprep.subr.mxu0 0.0
  %2369 = vmatpush1.msra.mxu0 0.0
  %2370 = vmatprep.subr.mxu0 0.0
  %2371 = vmatpush1.msra.mxu0 0.0
  %2372 = vmatprep.subr.mxu0 0.0
  %2373 = vmatpush1.msra.mxu0 0.0
  %2374 = vmatprep.subr.mxu0 0.0
  %2375 = vmatpush1.msra.mxu0 0.0
  %2376 = vmatprep.subr.mxu0 0.0
  %2377 = vmatpush1.msra.mxu0 0.0
  %2378 = vmatprep.subr.mxu0 0.0
  %2379 = vmatpush1.msra.mxu0 0.0
  %2380 = vmatprep.subr.mxu0 0.0
  %2381 = vmatpush1.msra.mxu0 0.0
  %2382 = vmatprep.subr.mxu0 0.0
  %2383 = vmatpush1.msra.mxu0 0.0
  %2384 = vmatprep.subr.mxu0 0.0
  %2385 = vmatpush1.msra.mxu0 0.0
  %2386 = vmatprep.subr.mxu0 0.0
  %2387 = vmatpush1.msra.mxu0 0.0
  %2388 = vmatprep.subr.mxu0 0.0
  %2389 = vmatpush1.msra.mxu0 0.0
  %2390 = vmatprep.subr.mxu0 0.0
  %2391 = vmatpush1.msra.mxu0 0.0
  %2392 = vmatprep.subr.mxu0 0.0
  %2393 = vmatpush1.msra.mxu0 0.0
  %2394 = vmatprep.subr.mxu0 0.0
  %2395 = vmatpush1.msra.mxu0 0.0
  %2396 = vmatprep.subr.mxu0 0.0
  %2397 = vmatpush1.msra.mxu0 0.0
  %2398 = vmatprep.subr.mxu0 0.0
  %2399 = vmatpush1.msra.mxu0 0.0
  %2400 = vmatprep.subr.mxu0 0.0
  %2401 = vmatpush1.msra.mxu0 0.0
  %2402 = vmatprep.subr.mxu0 0.0
  %2403 = vmatpush1.msra.mxu0 0.0
  %2404 = vmatprep.subr.mxu0 0.0
  %2405 = vmatpush1.msra.mxu0 0.0
  %2406 = vmatprep.subr.mxu0 0.0
  %2407 = vmatpush1.msra.mxu0 0.0
  %2408 = vmatprep.subr.mxu0 0.0
  %2409 = vmatpush1.msra.mxu0 0.0
  %2410 = vmatprep.subr.mxu0 0.0
  %2411 = vmatpush1.msra.mxu0 0.0
  %2412 = vmatprep.subr.mxu0 0.0
  %2413 = vmatpush1.msra.mxu0 0.0
  %2414 = vmatprep.subr.mxu0 0.0
  %2415 = vmatpush1.msra.mxu0 0.0
  %2416 = vmatprep.subr.mxu0 0.0
  %2417 = vmatpush1.msra.mxu0 0.0
  %2418 = vmatprep.subr.mxu0 0.0
  %2419 = vmatpush1.msra.mxu0 0.0
  %2420 = vmatprep.mubr.f32.mxu0 0.0
  %2421 = vmatmul.mubr.f32.gmra.mrb[0].mxu0 %v2354
  %v2422 = vpop.f32.mrb[0].mxu0
  %v2423 = vadd.f32 0.0, %v2422
  %v2424 = vpop.f32.mrb[0].mxu0
  %2425 = vdwg.mxu0
  %v2427 = vsel %vm512, %v2348, 0
  %2429 = vmatprep.subr.mxu0 0.0
  %2430 = vmatpush1.msra.mxu0 %v1808
  %2431 = vmatprep.subr.mxu0 0.0
  %2432 = vmatpush1.msra.mxu0 0.0
  %2433 = vmatprep.subr.mxu0 0.0
  %2434 = vmatpush1.msra.mxu0 0.0
  %2435 = vmatprep.subr.mxu0 0.0
  %2436 = vmatpush1.msra.mxu0 0.0
  %2437 = vmatprep.subr.mxu0 0.0
  %2438 = vmatpush1.msra.mxu0 0.0
  %2439 = vmatprep.subr.mxu0 0.0
  %2440 = vmatpush1.msra.mxu0 0.0
  %2441 = vmatprep.subr.mxu0 0.0
  %2442 = vmatpush1.msra.mxu0 0.0
  %2443 = vmatprep.subr.mxu0 0.0
  %2444 = vmatpush1.msra.mxu0 0.0
  %2445 = vmatprep.subr.mxu0 0.0
  %2446 = vmatpush1.msra.mxu0 0.0
  %2447 = vmatprep.subr.mxu0 0.0
  %2448 = vmatpush1.msra.mxu0 0.0
  %2449 = vmatprep.subr.mxu0 0.0
  %2450 = vmatpush1.msra.mxu0 0.0
  %2451 = vmatprep.subr.mxu0 0.0
  %2452 = vmatpush1.msra.mxu0 0.0
  %2453 = vmatprep.subr.mxu0 0.0
  %2454 = vmatpush1.msra.mxu0 0.0
  %2455 = vmatprep.subr.mxu0 0.0
  %2456 = vmatpush1.msra.mxu0 0.0
  %2457 = vmatprep.subr.mxu0 0.0
  %2458 = vmatpush1.msra.mxu0 0.0
  %2459 = vmatprep.subr.mxu0 0.0
  %2460 = vmatpush1.msra.mxu0 0.0
  %2461 = vmatprep.subr.mxu0 0.0
  %2462 = vmatpush1.msra.mxu0 0.0
  %2463 = vmatprep.subr.mxu0 0.0
  %2464 = vmatpush1.msra.mxu0 0.0
  %2465 = vmatprep.subr.mxu0 0.0
  %2466 = vmatpush1.msra.mxu0 0.0
  %2467 = vmatprep.subr.mxu0 0.0
  %2468 = vmatpush1.msra.mxu0 0.0
  %2469 = vmatprep.subr.mxu0 0.0
  %2470 = vmatpush1.msra.mxu0 0.0
  %2471 = vmatprep.subr.mxu0 0.0
  %2472 = vmatpush1.msra.mxu0 0.0
  %2473 = vmatprep.subr.mxu0 0.0
  %2474 = vmatpush1.msra.mxu0 0.0
  %2475 = vmatprep.subr.mxu0 0.0
  %2476 = vmatpush1.msra.mxu0 0.0
  %2477 = vmatprep.subr.mxu0 0.0
  %2478 = vmatpush1.msra.mxu0 0.0
  %2479 = vmatprep.subr.mxu0 0.0
  %2480 = vmatpush1.msra.mxu0 0.0
  %2481 = vmatprep.subr.mxu0 0.0
  %2482 = vmatpush1.msra.mxu0 0.0
  %2483 = vmatprep.subr.mxu0 0.0
  %2484 = vmatpush1.msra.mxu0 0.0
  %2485 = vmatprep.subr.mxu0 0.0
  %2486 = vmatpush1.msra.mxu0 0.0
  %2487 = vmatprep.subr.mxu0 0.0
  %2488 = vmatpush1.msra.mxu0 0.0
  %2489 = vmatprep.subr.mxu0 0.0
  %2490 = vmatpush1.msra.mxu0 0.0
  %2491 = vmatprep.subr.mxu0 0.0
  %2492 = vmatpush1.msra.mxu0 0.0
  %2493 = vmatprep.mubr.f32.mxu0 0.0
  %2494 = vmatmul.mubr.f32.gmra.mrb[0].mxu0 %v2427
  %v2495 = vpop.f32.mrb[0].mxu0
  %v2496 = vadd.f32 0.0, %v2495
  %v2497 = vpop.f32.mrb[0].mxu0
  %2498 = vdwg.mxu0
  %v2500 = vsel %vm512, %v2349, 0
  %2502 = vmatprep.subr.mxu0 0.0
  %2503 = vmatpush1.msra.mxu0 %v1813
  %2504 = vmatprep.subr.mxu0 0.0
  %2505 = vmatpush1.msra.mxu0 0.0
  %2506 = vmatprep.subr.mxu0 0.0
  %2507 = vmatpush1.msra.mxu0 0.0
  %2508 = vmatprep.subr.mxu0 0.0
  %2509 = vmatpush1.msra.mxu0 0.0
  %2510 = vmatprep.subr.mxu0 0.0
  %2511 = vmatpush1.msra.mxu0 0.0
  %2512 = vmatprep.subr.mxu0 0.0
  %2513 = vmatpush1.msra.mxu0 0.0
  %2514 = vmatprep.subr.mxu0 0.0
  %2515 = vmatpush1.msra.mxu0 0.0
  %2516 = vmatprep.subr.mxu0 0.0
  %2517 = vmatpush1.msra.mxu0 0.0
  %2518 = vmatprep.subr.mxu0 0.0
  %2519 = vmatpush1.msra.mxu0 0.0
  %2520 = vmatprep.subr.mxu0 0.0
  %2521 = vmatpush1.msra.mxu0 0.0
  %2522 = vmatprep.subr.mxu0 0.0
  %2523 = vmatpush1.msra.mxu0 0.0
  %2524 = vmatprep.subr.mxu0 0.0
  %2525 = vmatpush1.msra.mxu0 0.0
  %2526 = vmatprep.subr.mxu0 0.0
  %2527 = vmatpush1.msra.mxu0 0.0
  %2528 = vmatprep.subr.mxu0 0.0
  %2529 = vmatpush1.msra.mxu0 0.0
  %2530 = vmatprep.subr.mxu0 0.0
  %2531 = vmatpush1.msra.mxu0 0.0
  %2532 = vmatprep.subr.mxu0 0.0
  %2533 = vmatpush1.msra.mxu0 0.0
  %2534 = vmatprep.subr.mxu0 0.0
  %2535 = vmatpush1.msra.mxu0 0.0
  %2536 = vmatprep.subr.mxu0 0.0
  %2537 = vmatpush1.msra.mxu0 0.0
  %2538 = vmatprep.subr.mxu0 0.0
  %2539 = vmatpush1.msra.mxu0 0.0
  %2540 = vmatprep.subr.mxu0 0.0
  %2541 = vmatpush1.msra.mxu0 0.0
  %2542 = vmatprep.subr.mxu0 0.0
  %2543 = vmatpush1.msra.mxu0 0.0
  %2544 = vmatprep.subr.mxu0 0.0
  %2545 = vmatpush1.msra.mxu0 0.0
  %2546 = vmatprep.subr.mxu0 0.0
  %2547 = vmatpush1.msra.mxu0 0.0
  %2548 = vmatprep.subr.mxu0 0.0
  %2549 = vmatpush1.msra.mxu0 0.0
  %2550 = vmatprep.subr.mxu0 0.0
  %2551 = vmatpush1.msra.mxu0 0.0
  %2552 = vmatprep.subr.mxu0 0.0
  %2553 = vmatpush1.msra.mxu0 0.0
  %2554 = vmatprep.subr.mxu0 0.0
  %2555 = vmatpush1.msra.mxu0 0.0
  %2556 = vmatprep.subr.mxu0 0.0
  %2557 = vmatpush1.msra.mxu0 0.0
  %2558 = vmatprep.subr.mxu0 0.0
  %2559 = vmatpush1.msra.mxu0 0.0
  %2560 = vmatprep.subr.mxu0 0.0
  %2561 = vmatpush1.msra.mxu0 0.0
  %2562 = vmatprep.subr.mxu0 0.0
  %2563 = vmatpush1.msra.mxu0 0.0
  %2564 = vmatprep.subr.mxu0 0.0
  %2565 = vmatpush1.msra.mxu0 0.0
  %2566 = vmatprep.mubr.f32.mxu0 0.0
  %2567 = vmatmul.mubr.f32.gmra.mrb[0].mxu0 %v2500
  %v2568 = vpop.f32.mrb[0].mxu0
  %v2569 = vadd.f32 0.0, %v2568
  %v2570 = vpop.f32.mrb[0].mxu0
  %2571 = vdwg.mxu0
  %v2573 = vsel %vm512, %v2350, 0
  %2575 = vmatprep.subr.mxu0 0.0
  %2576 = vmatpush1.msra.mxu0 %v1818
  %2577 = vmatprep.subr.mxu0 0.0
  %2578 = vmatpush1.msra.mxu0 0.0
  %2579 = vmatprep.subr.mxu0 0.0
  %2580 = vmatpush1.msra.mxu0 0.0
  %2581 = vmatprep.subr.mxu0 0.0
  %2582 = vmatpush1.msra.mxu0 0.0
  %2583 = vmatprep.subr.mxu0 0.0
  %2584 = vmatpush1.msra.mxu0 0.0
  %2585 = vmatprep.subr.mxu0 0.0
  %2586 = vmatpush1.msra.mxu0 0.0
  %2587 = vmatprep.subr.mxu0 0.0
  %2588 = vmatpush1.msra.mxu0 0.0
  %2589 = vmatprep.subr.mxu0 0.0
  %2590 = vmatpush1.msra.mxu0 0.0
  %2591 = vmatprep.subr.mxu0 0.0
  %2592 = vmatpush1.msra.mxu0 0.0
  %2593 = vmatprep.subr.mxu0 0.0
  %2594 = vmatpush1.msra.mxu0 0.0
  %2595 = vmatprep.subr.mxu0 0.0
  %2596 = vmatpush1.msra.mxu0 0.0
  %2597 = vmatprep.subr.mxu0 0.0
  %2598 = vmatpush1.msra.mxu0 0.0
  %2599 = vmatprep.subr.mxu0 0.0
  %2600 = vmatpush1.msra.mxu0 0.0
  %2601 = vmatprep.subr.mxu0 0.0
  %2602 = vmatpush1.msra.mxu0 0.0
  %2603 = vmatprep.subr.mxu0 0.0
  %2604 = vmatpush1.msra.mxu0 0.0
  %2605 = vmatprep.subr.mxu0 0.0
  %2606 = vmatpush1.msra.mxu0 0.0
  %2607 = vmatprep.subr.mxu0 0.0
  %2608 = vmatpush1.msra.mxu0 0.0
  %2609 = vmatprep.subr.mxu0 0.0
  %2610 = vmatpush1.msra.mxu0 0.0
  %2611 = vmatprep.subr.mxu0 0.0
  %2612 = vmatpush1.msra.mxu0 0.0
  %2613 = vmatprep.subr.mxu0 0.0
  %2614 = vmatpush1.msra.mxu0 0.0
  %2615 = vmatprep.subr.mxu0 0.0
  %2616 = vmatpush1.msra.mxu0 0.0
  %2617 = vmatprep.subr.mxu0 0.0
  %2618 = vmatpush1.msra.mxu0 0.0
  %2619 = vmatprep.subr.mxu0 0.0
  %2620 = vmatpush1.msra.mxu0 0.0
  %2621 = vmatprep.subr.mxu0 0.0
  %2622 = vmatpush1.msra.mxu0 0.0
  %2623 = vmatprep.subr.mxu0 0.0
  %2624 = vmatpush1.msra.mxu0 0.0
  %2625 = vmatprep.subr.mxu0 0.0
  %2626 = vmatpush1.msra.mxu0 0.0
  %2627 = vmatprep.subr.mxu0 0.0
  %2628 = vmatpush1.msra.mxu0 0.0
  %2629 = vmatprep.subr.mxu0 0.0
  %2630 = vmatpush1.msra.mxu0 0.0
  %2631 = vmatprep.subr.mxu0 0.0
  %2632 = vmatpush1.msra.mxu0 0.0
  %2633 = vmatprep.subr.mxu0 0.0
  %2634 = vmatpush1.msra.mxu0 0.0
  %2635 = vmatprep.subr.mxu0 0.0
  %2636 = vmatpush1.msra.mxu0 0.0
  %2637 = vmatprep.subr.mxu0 0.0
  %2638 = vmatpush1.msra.mxu0 0.0
  %2639 = vmatprep.mubr.f32.mxu0 0.0
  %2640 = vmatmul.mubr.f32.gmra.mrb[0].mxu0 %v2573
  %v2641 = vpop.f32.mrb[0].mxu0
  %v2642 = vadd.f32 0.0, %v2641
  %v2643 = vpop.f32.mrb[0].mxu0
  %2644 = vdwg.mxu0
  %v2646 = vsel %vm512, %v2351, 0
  %2648 = vmatprep.subr.mxu0 0.0
  %2649 = vmatpush1.msra.mxu0 %v1823
  %2650 = vmatprep.subr.mxu0 0.0
  %2651 = vmatpush1.msra.mxu0 0.0
  %2652 = vmatprep.subr.mxu0 0.0
  %2653 = vmatpush1.msra.mxu0 0.0
  %2654 = vmatprep.subr.mxu0 0.0
  %2655 = vmatpush1.msra.mxu0 0.0
  %2656 = vmatprep.subr.mxu0 0.0
  %2657 = vmatpush1.msra.mxu0 0.0
  %2658 = vmatprep.subr.mxu0 0.0
  %2659 = vmatpush1.msra.mxu0 0.0
  %2660 = vmatprep.subr.mxu0 0.0
  %2661 = vmatpush1.msra.mxu0 0.0
  %2662 = vmatprep.subr.mxu0 0.0
  %2663 = vmatpush1.msra.mxu0 0.0
  %2664 = vmatprep.subr.mxu0 0.0
  %2665 = vmatpush1.msra.mxu0 0.0
  %2666 = vmatprep.subr.mxu0 0.0
  %2667 = vmatpush1.msra.mxu0 0.0
  %2668 = vmatprep.subr.mxu0 0.0
  %2669 = vmatpush1.msra.mxu0 0.0
  %2670 = vmatprep.subr.mxu0 0.0
  %2671 = vmatpush1.msra.mxu0 0.0
  %2672 = vmatprep.subr.mxu0 0.0
  %2673 = vmatpush1.msra.mxu0 0.0
  %2674 = vmatprep.subr.mxu0 0.0
  %2675 = vmatpush1.msra.mxu0 0.0
  %2676 = vmatprep.subr.mxu0 0.0
  %2677 = vmatpush1.msra.mxu0 0.0
  %2678 = vmatprep.subr.mxu0 0.0
  %2679 = vmatpush1.msra.mxu0 0.0
  %2680 = vmatprep.subr.mxu0 0.0
  %2681 = vmatpush1.msra.mxu0 0.0
  %2682 = vmatprep.subr.mxu0 0.0
  %2683 = vmatpush1.msra.mxu0 0.0
  %2684 = vmatprep.subr.mxu0 0.0
  %2685 = vmatpush1.msra.mxu0 0.0
  %2686 = vmatprep.subr.mxu0 0.0
  %2687 = vmatpush1.msra.mxu0 0.0
  %2688 = vmatprep.subr.mxu0 0.0
  %2689 = vmatpush1.msra.mxu0 0.0
  %2690 = vmatprep.subr.mxu0 0.0
  %2691 = vmatpush1.msra.mxu0 0.0
  %2692 = vmatprep.subr.mxu0 0.0
  %2693 = vmatpush1.msra.mxu0 0.0
  %2694 = vmatprep.subr.mxu0 0.0
  %2695 = vmatpush1.msra.mxu0 0.0
  %2696 = vmatprep.subr.mxu0 0.0
  %2697 = vmatpush1.msra.mxu0 0.0
  %2698 = vmatprep.subr.mxu0 0.0
  %2699 = vmatpush1.msra.mxu0 0.0
  %2700 = vmatprep.subr.mxu0 0.0
  %2701 = vmatpush1.msra.mxu0 0.0
  %2702 = vmatprep.subr.mxu0 0.0
  %2703 = vmatpush1.msra.mxu0 0.0
  %2704 = vmatprep.subr.mxu0 0.0
  %2705 = vmatpush1.msra.mxu0 0.0
  %2706 = vmatprep.subr.mxu0 0.0
  %2707 = vmatpush1.msra.mxu0 0.0
  %2708 = vmatprep.subr.mxu0 0.0
  %2709 = vmatpush1.msra.mxu0 0.0
  %2710 = vmatprep.subr.mxu0 0.0
  %2711 = vmatpush1.msra.mxu0 0.0
  %2712 = vmatprep.mubr.f32.mxu0 0.0
  %2713 = vmatmul.mubr.f32.gmra.mrb[0].mxu0 %v2646
  %v2714 = vpop.f32.mrb[0].mxu0
  %v2715 = vadd.f32 0.0, %v2714
  %v2716 = vpop.f32.mrb[0].mxu0
  %2717 = vdwg.mxu0
  %v2719 = vsel %vm512, %v2352, 0
  %2721 = vmatprep.subr.mxu0 0.0
  %2722 = vmatpush1.msra.mxu0 %v1828
  %2723 = vmatprep.subr.mxu0 0.0
  %2724 = vmatpush1.msra.mxu0 0.0
  %2725 = vmatprep.subr.mxu0 0.0
  %2726 = vmatpush1.msra.mxu0 0.0
  %2727 = vmatprep.subr.mxu0 0.0
  %2728 = vmatpush1.msra.mxu0 0.0
  %2729 = vmatprep.subr.mxu0 0.0
  %2730 = vmatpush1.msra.mxu0 0.0
  %2731 = vmatprep.subr.mxu0 0.0
  %2732 = vmatpush1.msra.mxu0 0.0
  %2733 = vmatprep.subr.mxu0 0.0
  %2734 = vmatpush1.msra.mxu0 0.0
  %2735 = vmatprep.subr.mxu0 0.0
  %2736 = vmatpush1.msra.mxu0 0.0
  %2737 = vmatprep.subr.mxu0 0.0
  %2738 = vmatpush1.msra.mxu0 0.0
  %2739 = vmatprep.subr.mxu0 0.0
  %2740 = vmatpush1.msra.mxu0 0.0
  %2741 = vmatprep.subr.mxu0 0.0
  %2742 = vmatpush1.msra.mxu0 0.0
  %2743 = vmatprep.subr.mxu0 0.0
  %2744 = vmatpush1.msra.mxu0 0.0
  %2745 = vmatprep.subr.mxu0 0.0
  %2746 = vmatpush1.msra.mxu0 0.0
  %2747 = vmatprep.subr.mxu0 0.0
  %2748 = vmatpush1.msra.mxu0 0.0
  %2749 = vmatprep.subr.mxu0 0.0
  %2750 = vmatpush1.msra.mxu0 0.0
  %2751 = vmatprep.subr.mxu0 0.0
  %2752 = vmatpush1.msra.mxu0 0.0
  %2753 = vmatprep.subr.mxu0 0.0
  %2754 = vmatpush1.msra.mxu0 0.0
  %2755 = vmatprep.subr.mxu0 0.0
  %2756 = vmatpush1.msra.mxu0 0.0
  %2757 = vmatprep.subr.mxu0 0.0
  %2758 = vmatpush1.msra.mxu0 0.0
  %2759 = vmatprep.subr.mxu0 0.0
  %2760 = vmatpush1.msra.mxu0 0.0
  %2761 = vmatprep.subr.mxu0 0.0
  %2762 = vmatpush1.msra.mxu0 0.0
  %2763 = vmatprep.subr.mxu0 0.0
  %2764 = vmatpush1.msra.mxu0 0.0
  %2765 = vmatprep.subr.mxu0 0.0
  %2766 = vmatpush1.msra.mxu0 0.0
  %2767 = vmatprep.subr.mxu0 0.0
  %2768 = vmatpush1.msra.mxu0 0.0
  %2769 = vmatprep.subr.mxu0 0.0
  %2770 = vmatpush1.msra.mxu0 0.0
  %2771 = vmatprep.subr.mxu0 0.0
  %2772 = vmatpush1.msra.mxu0 0.0
  %2773 = vmatprep.subr.mxu0 0.0
  %2774 = vmatpush1.msra.mxu0 0.0
  %2775 = vmatprep.subr.mxu0 0.0
  %2776 = vmatpush1.msra.mxu0 0.0
  %2777 = vmatprep.subr.mxu0 0.0
  %2778 = vmatpush1.msra.mxu0 0.0
  %2779 = vmatprep.subr.mxu0 0.0
  %2780 = vmatpush1.msra.mxu0 0.0
  %2781 = vmatprep.subr.mxu0 0.0
  %2782 = vmatpush1.msra.mxu0 0.0
  %2783 = vmatprep.subr.mxu0 0.0
  %2784 = vmatpush1.msra.mxu0 0.0
  %2785 = vmatprep.mubr.f32.mxu0 0.0
  %2786 = vmatmul.mubr.f32.gmra.mrb[0].mxu0 %v2719
  %v2787 = vpop.f32.mrb[0].mxu0
  %v2788 = vadd.f32 0.0, %v2787
  %v2789 = vpop.f32.mrb[0].mxu0
  %2790 = vdwg.mxu0
  %v2791 = vsel %vm512, %v2423, 0.0
  %v2792 = vrot.slane %v2791, 4
  %v2793 = vadd.f32 %v2791, %v2792
  %v2794 = vrot.slane %v2793, 2
  %v2795 = vadd.f32 %v2793, %v2794
  %v2796 = vrot.slane %v2795, 1
  %v2797 = vadd.f32 %v2795, %v2796
  %v2798 = vsel %vm512, %v2496, 0.0
  %v2799 = vrot.slane %v2798, 4
  %v2800 = vadd.f32 %v2798, %v2799
  %v2801 = vrot.slane %v2800, 2
  %v2802 = vadd.f32 %v2800, %v2801
  %v2803 = vrot.slane %v2802, 1
  %v2804 = vadd.f32 %v2802, %v2803
  %v2805 = vsel %vm512, %v2569, 0.0
  %v2806 = vrot.slane %v2805, 4
  %v2807 = vadd.f32 %v2805, %v2806
  %v2808 = vrot.slane %v2807, 2
  %v2809 = vadd.f32 %v2807, %v2808
  %v2810 = vrot.slane %v2809, 1
  %v2811 = vadd.f32 %v2809, %v2810
  %v2812 = vsel %vm512, %v2642, 0.0
  %v2813 = vrot.slane %v2812, 4
  %v2814 = vadd.f32 %v2812, %v2813
  %v2815 = vrot.slane %v2814, 2
  %v2816 = vadd.f32 %v2814, %v2815
  %v2817 = vrot.slane %v2816, 1
  %v2818 = vadd.f32 %v2816, %v2817
  %v2819 = vsel %vm512, %v2715, 0.0
  %v2820 = vrot.slane %v2819, 4
  %v2821 = vadd.f32 %v2819, %v2820
  %v2822 = vrot.slane %v2821, 2
  %v2823 = vadd.f32 %v2821, %v2822
  %v2824 = vrot.slane %v2823, 1
  %v2825 = vadd.f32 %v2823, %v2824
  %v2826 = vsel %vm512, %v2788, 0.0
  %v2827 = vrot.slane %v2826, 4
  %v2828 = vadd.f32 %v2826, %v2827
  %v2829 = vrot.slane %v2828, 2
  %v2830 = vadd.f32 %v2828, %v2829
  %v2831 = vrot.slane %v2830, 1
  %v2832 = vadd.f32 %v2830, %v2831
  %v2833 = vld [vmem:[%s2 + $0x8] sm:$0xff]
  %vm2840 = vcmask 1041409
  %v2841 = vsel %vm2840, %v2804, %v2797
  %vm2842 = vcmask 1042434
  %v2843 = vsel %vm2842, %v2811, %v2841
  %vm2844 = vcmask 1043459
  %v2845 = vsel %vm2844, %v2818, %v2843
  %vm2846 = vcmask 1044484
  %v2847 = vsel %vm2846, %v2825, %v2845
  %vm2848 = vcmask 1045509
  %v2849 = vsel %vm2848, %v2832, %v2847
  %2851 = vrot.lane.b32.xlu0 %v2833, 80
  %v2852 = vpop.permute.xlu0 %2851
  %v2854 = vsel %vm512, %v2849, 0
  %2856 = vmatprep.subr.mxu0 0.0
  %2857 = vmatpush1.msra.mxu0 %v2852
  %2858 = vmatprep.subr.mxu0 0.0
  %2859 = vmatpush1.msra.mxu0 0.0
  %2860 = vmatprep.subr.mxu0 0.0
  %2861 = vmatpush1.msra.mxu0 0.0
  %2862 = vmatprep.subr.mxu0 0.0
  %2863 = vmatpush1.msra.mxu0 0.0
  %2864 = vmatprep.subr.mxu0 0.0
  %2865 = vmatpush1.msra.mxu0 0.0
  %2866 = vmatprep.subr.mxu0 0.0
  %2867 = vmatpush1.msra.mxu0 0.0
  %2868 = vmatprep.subr.mxu0 0.0
  %2869 = vmatpush1.msra.mxu0 0.0
  %2870 = vmatprep.subr.mxu0 0.0
  %2871 = vmatpush1.msra.mxu0 0.0
  %2872 = vmatprep.subr.mxu0 0.0
  %2873 = vmatpush1.msra.mxu0 0.0
  %2874 = vmatprep.subr.mxu0 0.0
  %2875 = vmatpush1.msra.mxu0 0.0
  %2876 = vmatprep.subr.mxu0 0.0
  %2877 = vmatpush1.msra.mxu0 0.0
  %2878 = vmatprep.subr.mxu0 0.0
  %2879 = vmatpush1.msra.mxu0 0.0
  %2880 = vmatprep.subr.mxu0 0.0
  %2881 = vmatpush1.msra.mxu0 0.0
  %2882 = vmatprep.subr.mxu0 0.0
  %2883 = vmatpush1.msra.mxu0 0.0
  %2884 = vmatprep.subr.mxu0 0.0
  %2885 = vmatpush1.msra.mxu0 0.0
  %2886 = vmatprep.subr.mxu0 0.0
  %2887 = vmatpush1.msra.mxu0 0.0
  %2888 = vmatprep.subr.mxu0 0.0
  %2889 = vmatpush1.msra.mxu0 0.0
  %2890 = vmatprep.subr.mxu0 0.0
  %2891 = vmatpush1.msra.mxu0 0.0
  %2892 = vmatprep.subr.mxu0 0.0
  %2893 = vmatpush1.msra.mxu0 0.0
  %2894 = vmatprep.subr.mxu0 0.0
  %2895 = vmatpush1.msra.mxu0 0.0
  %2896 = vmatprep.subr.mxu0 0.0
  %2897 = vmatpush1.msra.mxu0 0.0
  %2898 = vmatprep.subr.mxu0 0.0
  %2899 = vmatpush1.msra.mxu0 0.0
  %2900 = vmatprep.subr.mxu0 0.0
  %2901 = vmatpush1.msra.mxu0 0.0
  %2902 = vmatprep.subr.mxu0 0.0
  %2903 = vmatpush1.msra.mxu0 0.0
  %2904 = vmatprep.subr.mxu0 0.0
  %2905 = vmatpush1.msra.mxu0 0.0
  %2906 = vmatprep.subr.mxu0 0.0
  %2907 = vmatpush1.msra.mxu0 0.0
  %2908 = vmatprep.subr.mxu0 0.0
  %2909 = vmatpush1.msra.mxu0 0.0
  %2910 = vmatprep.subr.mxu0 0.0
  %2911 = vmatpush1.msra.mxu0 0.0
  %2912 = vmatprep.subr.mxu0 0.0
  %2913 = vmatpush1.msra.mxu0 0.0
  %2914 = vmatprep.subr.mxu0 0.0
  %2915 = vmatpush1.msra.mxu0 0.0
  %2916 = vmatprep.subr.mxu0 0.0
  %2917 = vmatpush1.msra.mxu0 0.0
  %2918 = vmatprep.subr.mxu0 0.0
  %2919 = vmatpush1.msra.mxu0 0.0
  %2920 = vmatprep.mubr.f32.mxu0 0.0
  %2921 = vmatmul.mubr.f32.gmra.mrb[0].mxu0 %v2854
  %v2922 = vpop.f32.mrb[0].mxu0
  %v2923 = vadd.f32 0.0, %v2922
  %v2924 = vpop.f32.mrb[0].mxu0
  %2925 = vdwg.mxu0
  %v2932 = vsel %vm2840, %v1486, %v1479
  %v2933 = vsel %vm2842, %v1493, %v2932
  %v2934 = vsel %vm2844, %v1500, %v2933
  %v2935 = vsel %vm2846, %v1507, %v2934
  %v2936 = vsel %vm2848, %v1514, %v2935
  %2937 = vrot.lane.b32.xlu0 %v1515, 80
  %v2938 = vpop.permute.xlu0 %2937
  %v2940 = vsel %vm512, %v2936, 0
  %2942 = vmatprep.subr.mxu0 0.0
  %2943 = vmatpush1.msra.mxu0 %v2938
  %2944 = vmatprep.subr.mxu0 0.0
  %2945 = vmatpush1.msra.mxu0 0.0
  %2946 = vmatprep.subr.mxu0 0.0
  %2947 = vmatpush1.msra.mxu0 0.0
  %2948 = vmatprep.subr.mxu0 0.0
  %2949 = vmatpush1.msra.mxu0 0.0
  %2950 = vmatprep.subr.mxu0 0.0
  %2951 = vmatpush1.msra.mxu0 0.0
  %2952 = vmatprep.subr.mxu0 0.0
  %2953 = vmatpush1.msra.mxu0 0.0
  %2954 = vmatprep.subr.mxu0 0.0
  %2955 = vmatpush1.msra.mxu0 0.0
  %2956 = vmatprep.subr.mxu0 0.0
  %2957 = vmatpush1.msra.mxu0 0.0
  %2958 = vmatprep.subr.mxu0 0.0
  %2959 = vmatpush1.msra.mxu0 0.0
  %2960 = vmatprep.subr.mxu0 0.0
  %2961 = vmatpush1.msra.mxu0 0.0
  %2962 = vmatprep.subr.mxu0 0.0
  %2963 = vmatpush1.msra.mxu0 0.0
  %2964 = vmatprep.subr.mxu0 0.0
  %2965 = vmatpush1.msra.mxu0 0.0
  %2966 = vmatprep.subr.mxu0 0.0
  %2967 = vmatpush1.msra.mxu0 0.0
  %2968 = vmatprep.subr.mxu0 0.0
  %2969 = vmatpush1.msra.mxu0 0.0
  %2970 = vmatprep.subr.mxu0 0.0
  %2971 = vmatpush1.msra.mxu0 0.0
  %2972 = vmatprep.subr.mxu0 0.0
  %2973 = vmatpush1.msra.mxu0 0.0
  %2974 = vmatprep.subr.mxu0 0.0
  %2975 = vmatpush1.msra.mxu0 0.0
  %2976 = vmatprep.subr.mxu0 0.0
  %2977 = vmatpush1.msra.mxu0 0.0
  %2978 = vmatprep.subr.mxu0 0.0
  %2979 = vmatpush1.msra.mxu0 0.0
  %2980 = vmatprep.subr.mxu0 0.0
  %2981 = vmatpush1.msra.mxu0 0.0
  %2982 = vmatprep.subr.mxu0 0.0
  %2983 = vmatpush1.msra.mxu0 0.0
  %2984 = vmatprep.subr.mxu0 0.0
  %2985 = vmatpush1.msra.mxu0 0.0
  %2986 = vmatprep.subr.mxu0 0.0
  %2987 = vmatpush1.msra.mxu0 0.0
  %2988 = vmatprep.subr.mxu0 0.0
  %2989 = vmatpush1.msra.mxu0 0.0
  %2990 = vmatprep.subr.mxu0 0.0
  %2991 = vmatpush1.msra.mxu0 0.0
  %2992 = vmatprep.subr.mxu0 0.0
  %2993 = vmatpush1.msra.mxu0 0.0
  %2994 = vmatprep.subr.mxu0 0.0
  %2995 = vmatpush1.msra.mxu0 0.0
  %2996 = vmatprep.subr.mxu0 0.0
  %2997 = vmatpush1.msra.mxu0 0.0
  %2998 = vmatprep.subr.mxu0 0.0
  %2999 = vmatpush1.msra.mxu0 0.0
  %3000 = vmatprep.subr.mxu0 0.0
  %3001 = vmatpush1.msra.mxu0 0.0
  %3002 = vmatprep.subr.mxu0 0.0
  %3003 = vmatpush1.msra.mxu0 0.0
  %3004 = vmatprep.subr.mxu0 0.0
  %3005 = vmatpush1.msra.mxu0 0.0
  %3006 = vmatprep.mubr.f32.mxu0 0.0
  %3007 = vmatmul.mubr.f32.gmra.mrb[0].mxu0 %v2940
  %v3008 = vpop.f32.mrb[0].mxu0
  %v3009 = vadd.f32 %v2923, %v3008
  %v3010 = vpop.f32.mrb[0].mxu0
  %3011 = vdwg.mxu0
  %v3012 = vmul.f32 %v3009, 0.125
  %v3013 = vld [vmem:[%s4] sm:$0x1]
  %v3015 = vlaneseq
  %v3016 = vshrl.u32 %v3015, 7
  %v3017 = vsub.s32 0, %v3016
  %v3018 = vrot.slane %v3013, %v3017
  %3019 = vrot.lane.b32.xlu0 %v3018, 112
  %v3020 = vpop.permute.xlu0 %3019
  %v3022 = vadd.f32 %v3012, %v3020
  %v3023 = vmax.f32 %v3022, 0.0
  %v3024 = vld [vmem:[%s3] sm:$0xff]
  %v3025 = vld [vmem:[%s3 + $0x8] sm:$0xff]
  %v3026 = vld [vmem:[%s3 + $0x10] sm:$0xff]
  %v3027 = vld [vmem:[%s3 + $0x18] sm:$0xff]
  %3028 = vrot.lane.b32.xlu0 %v3018, 80
  %v3029 = vpop.permute.xlu0 %3028
  %vm3031 = vcmask 261120
  %v3033 = vsel %vm3031, %v3023, 0
  %3035 = vmatprep.subr.mxu0 0.0
  %3036 = vmatpush1.msra.mxu0 %v3024
  %3037 = vmatprep.subr.mxu0 0.0
  %3038 = vmatpush1.msra.mxu0 %v3025
  %3039 = vmatprep.subr.mxu0 0.0
  %3040 = vmatpush1.msra.mxu0 %v3026
  %3041 = vmatprep.subr.mxu0 0.0
  %3042 = vmatpush1.msra.mxu0 %v3027
  %3043 = vmatprep.subr.mxu0 0.0
  %3044 = vmatpush1.msra.mxu0 0.0
  %3045 = vmatprep.subr.mxu0 0.0
  %3046 = vmatpush1.msra.mxu0 0.0
  %3047 = vmatprep.subr.mxu0 0.0
  %3048 = vmatpush1.msra.mxu0 0.0
  %3049 = vmatprep.subr.mxu0 0.0
  %3050 = vmatpush1.msra.mxu0 0.0
  %3051 = vmatprep.subr.mxu0 0.0
  %3052 = vmatpush1.msra.mxu0 0.0
  %3053 = vmatprep.subr.mxu0 0.0
  %3054 = vmatpush1.msra.mxu0 0.0
  %3055 = vmatprep.subr.mxu0 0.0
  %3056 = vmatpush1.msra.mxu0 0.0
  %3057 = vmatprep.subr.mxu0 0.0
  %3058 = vmatpush1.msra.mxu0 0.0
  %3059 = vmatprep.subr.mxu0 0.0
  %3060 = vmatpush1.msra.mxu0 0.0
  %3061 = vmatprep.subr.mxu0 0.0
  %3062 = vmatpush1.msra.mxu0 0.0
  %3063 = vmatprep.subr.mxu0 0.0
  %3064 = vmatpush1.msra.mxu0 0.0
  %3065 = vmatprep.subr.mxu0 0.0
  %3066 = vmatpush1.msra.mxu0 0.0
  %3067 = vmatprep.subr.mxu0 0.0
  %3068 = vmatpush1.msra.mxu0 0.0
  %3069 = vmatprep.subr.mxu0 0.0
  %3070 = vmatpush1.msra.mxu0 0.0
  %3071 = vmatprep.subr.mxu0 0.0
  %3072 = vmatpush1.msra.mxu0 0.0
  %3073 = vmatprep.subr.mxu0 0.0
  %3074 = vmatpush1.msra.mxu0 0.0
  %3075 = vmatprep.subr.mxu0 0.0
  %3076 = vmatpush1.msra.mxu0 0.0
  %3077 = vmatprep.subr.mxu0 0.0
  %3078 = vmatpush1.msra.mxu0 0.0
  %3079 = vmatprep.subr.mxu0 0.0
  %3080 = vmatpush1.msra.mxu0 0.0
  %3081 = vmatprep.subr.mxu0 0.0
  %3082 = vmatpush1.msra.mxu0 0.0
  %3083 = vmatprep.subr.mxu0 0.0
  %3084 = vmatpush1.msra.mxu0 0.0
  %3085 = vmatprep.subr.mxu0 0.0
  %3086 = vmatpush1.msra.mxu0 0.0
  %3087 = vmatprep.subr.mxu0 0.0
  %3088 = vmatpush1.msra.mxu0 0.0
  %3089 = vmatprep.subr.mxu0 0.0
  %3090 = vmatpush1.msra.mxu0 0.0
  %3091 = vmatprep.subr.mxu0 0.0
  %3092 = vmatpush1.msra.mxu0 0.0
  %3093 = vmatprep.subr.mxu0 0.0
  %3094 = vmatpush1.msra.mxu0 0.0
  %3095 = vmatprep.subr.mxu0 0.0
  %3096 = vmatpush1.msra.mxu0 0.0
  %3097 = vmatprep.subr.mxu0 0.0
  %3098 = vmatpush1.msra.mxu0 0.0
  %3099 = vmatprep.mubr.f32.mxu0 0.0
  %3100 = vmatmul.mubr.f32.gmra.mrb[0].mxu0 %v3033
  %v3101 = vpop.f32.mrb[0].mxu0
  %v3102 = vadd.f32 %v3029, %v3101
  %v3103 = vpop.f32.mrb[0].mxu0
  %3104 = vdwg.mxu0
  %vm3105 = vcmask 259072
  %3106 = vst.msk [vmem:[%s5] sm:$0x3f] %vm3105, %v3102
  // Predicated region
  $region22: #{plane_embedding_forward.1} parent=0 // pred_check
    _
  $region23: #{plane_embedding_forward.1} parent=0 // pred_check_branch
    %3108 = sbr.rel (0) target = $region25
  $region24: #{plane_embedding_forward.1} parent=0 // pred_region
    _
  $region25: #{plane_embedding_forward.1} parent=0 // pred_fallthru
    _
  // Predicated region
  $region26: #{plane_embedding_forward.1} parent=0 // pred_check
    _
  $region27: #{plane_embedding_forward.1} parent=0 // pred_check_branch
    %3110 = sbr.rel (0) target = $region29
  $region28: #{plane_embedding_forward.1} parent=0 // pred_region
    _
  $region29: #{plane_embedding_forward.1} parent=0 // pred_fallthru
    _

</llo_original>
